<compile_context>
chip_gen: v7x
topology: tpu7x:2x2x1
jax: 0.10.0
libtpu: 0.0.40
codegen_flags: <defaults>
</compile_context>

<pallas_src>
import jax
import jax.numpy as jnp
from jax.experimental import pallas as pl
from jax.experimental.pallas import tpu as pltpu

EPS = 1e-5


def _fused_kernel(x_ref, w1_ref, g1_ref, b1_ref, w2_ref, g2_ref, b2_ref, o_ref):
    # x_ref: (C1, P) channel-major, w1_ref: (C1, C2)  (scale already folded in).
    # First 1x1 conv == matmul contracting the channel axis (trans_a form, MXU).
    y1 = jax.lax.dot_general(
        x_ref[...], w1_ref[...],
        dimension_numbers=(((0,), (0,)), ((), ())),
        preferred_element_type=jnp.float32)                      # (P, C2)

    inv_p = 1.0 / y1.shape[0]

    # BatchNorm2d #1 (training-mode batch stats), one-pass variance.
    m1 = jnp.sum(y1, axis=0, keepdims=True) * inv_p              # (1, C2)
    v1 = jnp.sum(y1 * y1, axis=0, keepdims=True) * inv_p - m1 * m1
    y1n = (y1 - m1) * (jax.lax.rsqrt(v1 + EPS) * g1_ref[...]) + b1_ref[...]

    # Second 1x1 conv over this block of output channels (streamed w2 columns).
    y2 = jnp.dot(y1n, w2_ref[...], preferred_element_type=jnp.float32)  # (P, TN)

    # BatchNorm2d #2 (per output channel == per column of this block).
    m2 = jnp.sum(y2, axis=0, keepdims=True) * inv_p              # (1, TN)
    v2 = jnp.sum(y2 * y2, axis=0, keepdims=True) * inv_p - m2 * m2
    o_ref[...] = ((y2 - m2) * (jax.lax.rsqrt(v2 + EPS) * g2_ref[...])
                  + b2_ref[...]).astype(o_ref.dtype)


def fused_mul_conv_bn_conv_bn(x332, x327, w1, g1, b1, w2, g2, b2, *, tn=384):
    """x332: (N, C1, 1, 1), x327: (N, C1, H, W)  -> (N, C3, H, W)."""
    N, C1, H, W = x327.shape
    C2 = w1.shape[0]
    C3 = w2.shape[0]
    P = N * H * W

    w1_t = jnp.transpose(w1.reshape(C2, C1))                     # (C1, C2)
    w2_t = jnp.transpose(w2.reshape(C3, C2))                     # (C2, C3)

    if N == 1:
        # Fold per-channel scale into the first conv's weights (valid for N==1).
        w1_t = w1_t * x332.reshape(C1, 1)
        x_in = x327
    else:
        # General path: preserve the per-sample broadcast multiply.
        x_in = x327 * x332

    # Native channel-major flatten: (N, C1, H, W) -> (C1, N*H*W).
    # For N == 1 this is a pure reshape (no HBM transpose).
    x_cp = jnp.transpose(x_in, (1, 0, 2, 3)).reshape(C1, P)

    g1r, b1r = g1.reshape(1, C2), b1.reshape(1, C2)
    g2r, b2r = g2.reshape(1, C3), b2.reshape(1, C3)

    if C3 % tn != 0 or C3 < tn:
        tn = C3
    n_blocks = C3 // tn

    const2 = lambda shp: pl.BlockSpec(shp, lambda j: (0, 0))

    out_rows = pl.pallas_call(
        _fused_kernel,
        out_shape=jax.ShapeDtypeStruct((P, C3), jnp.float32),
        grid_spec=pltpu.PrefetchScalarGridSpec(
            num_scalar_prefetch=0,
            grid=(n_blocks,),
            in_specs=[
                const2((C1, P)),                                  # x  (resident)
                const2((C1, C2)),                                 # w1 (resident)
                const2((1, C2)),                                  # gamma1
                const2((1, C2)),                                  # beta1
                pl.BlockSpec((C2, tn), lambda j: (0, j)),         # w2 (streamed)
                pl.BlockSpec((1, tn), lambda j: (0, j)),          # gamma2
                pl.BlockSpec((1, tn), lambda j: (0, j)),          # beta2
            ],
            out_specs=pl.BlockSpec((P, tn), lambda j: (0, j)),
        ),
        compiler_params=pltpu.CompilerParams(
            dimension_semantics=("parallel",),
            vmem_limit_bytes=32 << 20,
        ),
    )(x_cp, w1_t, g1r, b1r, w2_t, g2r, b2r)

    # (P, C3) lane-dense rows -> NCHW.
    return jnp.transpose(out_rows.reshape(N, H, W, C3), (0, 3, 1, 2))


def _reference(x332, x327, w1, g1, b1, w2, g2, b2):
    """Pure-JAX reference (training-mode BN, biased batch variance)."""
    N, C1, H, W = x327.shape
    C2, C3 = w1.shape[0], w2.shape[0]
    x = x332 * x327
    y1 = jnp.einsum("nchw,oc->nohw", x, w1.reshape(C2, C1))
    m1 = jnp.mean(y1, axis=(0, 2, 3), keepdims=True)
    v1 = jnp.mean((y1 - m1) ** 2, axis=(0, 2, 3), keepdims=True)
    y1 = (y1 - m1) / jnp.sqrt(v1 + EPS) * g1.reshape(1, C2, 1, 1) + b1.reshape(1, C2, 1, 1)
    y2 = jnp.einsum("nchw,oc->nohw", y1, w2.reshape(C3, C2))
    m2 = jnp.mean(y2, axis=(0, 2, 3), keepdims=True)
    v2 = jnp.mean((y2 - m2) ** 2, axis=(0, 2, 3), keepdims=True)
    return (y2 - m2) / jnp.sqrt(v2 + EPS) * g2.reshape(1, C3, 1, 1) + b2.reshape(1, C3, 1, 1)


if __name__ == "__main__":
    # Shapes implied by the module: 1152 -> 320 -> 1920, batch=1, spatial=7x7.
    N, C1, H, W = 1, 1152, 7, 7
    C2, C3 = 320, 1920

    key = jax.random.PRNGKey(0)
    k1, k2, k3, k4, k5, k6, k7, k8 = jax.random.split(key, 8)

    x327 = jax.random.normal(k1, (N, C1, H, W), jnp.float32)
    x332 = jax.random.normal(k2, (N, C1, 1, 1), jnp.float32)

    w1 = jax.random.normal(k3, (C2, C1, 1, 1), jnp.float32) * 0.03   # Conv2d(1152,320,1x1)
    w2 = jax.random.normal(k4, (C3, C2, 1, 1), jnp.float32) * 0.05   # Conv2d(320,1920,1x1)
    g1 = 1.0 + 0.1 * jax.random.normal(k5, (C2,), jnp.float32)       # BN1 gamma
    b1 = 0.1 * jax.random.normal(k6, (C2,), jnp.float32)             # BN1 beta
    g2 = 1.0 + 0.1 * jax.random.normal(k7, (C3,), jnp.float32)       # BN2 gamma
    b2 = 0.1 * jax.random.normal(k8, (C3,), jnp.float32)             # BN2 beta

    out = fused_mul_conv_bn_conv_bn(x332, x327, w1, g1, b1, w2, g2, b2)
    out = jax.block_until_ready(out)

    ref = jax.block_until_ready(_reference(x332, x327, w1, g1, b1, w2, g2, b2))
    assert out.shape == (N, C3, H, W)
    assert jnp.allclose(out, ref, atol=2e-3, rtol=2e-3), "mismatch vs reference"

    print("KERNEL_OK")
</pallas_src>

<mosaic_0001>
module attributes {stable_mosaic.version = 11 : i64} {
  func.func @_fused_kernel(%arg0: i32, %arg1: memref<1152x49xf32, #tpu.memory_space<vmem>>, %arg2: memref<1152x320xf32, #tpu.memory_space<vmem>>, %arg3: memref<1x320xf32, #tpu.memory_space<vmem>>, %arg4: memref<1x320xf32, #tpu.memory_space<vmem>>, %arg5: memref<320x384xf32, #tpu.memory_space<vmem>>, %arg6: memref<1x384xf32, #tpu.memory_space<vmem>>, %arg7: memref<1x384xf32, #tpu.memory_space<vmem>>, %arg8: memref<49x384xf32, #tpu.memory_space<vmem>>) attributes {dimension_semantics = [#tpu.dimension_semantics<parallel>], iteration_bounds = array<i64: 5>, scalar_prefetch = 0 : i64, scratch_operands = 0 : i64, tpu.core_type = #tpu.core_type<tc>, window_params = [{pipeline_mode = #tpu.pipeline_mode<synchronous>, transform_indices = @transform_0, window_bounds = array<i64: 1152, 49>}, {pipeline_mode = #tpu.pipeline_mode<synchronous>, transform_indices = @transform_1, window_bounds = array<i64: 1152, 320>}, {pipeline_mode = #tpu.pipeline_mode<synchronous>, transform_indices = @transform_2, window_bounds = array<i64: 1, 320>}, {pipeline_mode = #tpu.pipeline_mode<synchronous>, transform_indices = @transform_3, window_bounds = array<i64: 1, 320>}, {transform_indices = @transform_4, window_bounds = array<i64: 320, 384>}, {transform_indices = @transform_5, window_bounds = array<i64: 1, 384>}, {transform_indices = @transform_6, window_bounds = array<i64: 1, 384>}, {transform_indices = @transform_7, window_bounds = array<i64: 49, 384>}]} {
    %c0 = arith.constant 0 : index
    %c0_0 = arith.constant 0 : index
    %0 = vector.load %arg1[%c0, %c0_0] : memref<1152x49xf32, #tpu.memory_space<vmem>>, vector<1152x49xf32>
    %c0_1 = arith.constant 0 : index
    %c0_2 = arith.constant 0 : index
    %1 = vector.load %arg2[%c0_1, %c0_2] : memref<1152x320xf32, #tpu.memory_space<vmem>>, vector<1152x320xf32>
    %cst = arith.constant dense<0.000000e+00> : vector<49x320xf32>
    %2 = tpu.matmul %0, %1, %cst {dimension_numbers = #tpu.dot_dimension_numbers<[0], [0], [1], [1], [0, 1, 1, 1], [], []>} : vector<1152x49xf32>, vector<1152x320xf32>, vector<49x320xf32> -> vector<49x320xf32>
    %cst_3 = arith.constant dense<0.000000e+00> : vector<320xf32>
    %3 = vector.multi_reduction <add>, %2, %cst_3 [0] : vector<49x320xf32> to vector<320xf32>
    %4 = vector.shape_cast %3 : vector<320xf32> to vector<1x320xf32>
    %cst_4 = arith.constant 0.0204081628 : f32
    %5 = vector.broadcast %cst_4 : f32 to vector<1x320xf32>
    %6 = arith.mulf %4, %5 : vector<1x320xf32>
    %7 = arith.mulf %2, %2 : vector<49x320xf32>
    %cst_5 = arith.constant dense<0.000000e+00> : vector<320xf32>
    %8 = vector.multi_reduction <add>, %7, %cst_5 [0] : vector<49x320xf32> to vector<320xf32>
    %9 = vector.shape_cast %8 : vector<320xf32> to vector<1x320xf32>
    %cst_6 = arith.constant 0.0204081628 : f32
    %10 = vector.broadcast %cst_6 : f32 to vector<1x320xf32>
    %11 = arith.mulf %9, %10 : vector<1x320xf32>
    %12 = arith.mulf %6, %6 : vector<1x320xf32>
    %13 = arith.subf %11, %12 : vector<1x320xf32>
    %14 = vector.broadcast %6 : vector<1x320xf32> to vector<49x320xf32>
    %15 = arith.subf %2, %14 : vector<49x320xf32>
    %cst_7 = arith.constant 9.99999974E-6 : f32
    %16 = vector.broadcast %cst_7 : f32 to vector<1x320xf32>
    %17 = arith.addf %13, %16 : vector<1x320xf32>
    %18 = math.rsqrt %17 : vector<1x320xf32>
    %c0_8 = arith.constant 0 : index
    %c0_9 = arith.constant 0 : index
    %19 = vector.load %arg3[%c0_8, %c0_9] : memref<1x320xf32, #tpu.memory_space<vmem>>, vector<1x320xf32>
    %20 = arith.mulf %18, %19 : vector<1x320xf32>
    %21 = vector.broadcast %20 : vector<1x320xf32> to vector<49x320xf32>
    %22 = arith.mulf %15, %21 : vector<49x320xf32>
    %c0_10 = arith.constant 0 : index
    %c0_11 = arith.constant 0 : index
    %23 = vector.load %arg4[%c0_10, %c0_11] : memref<1x320xf32, #tpu.memory_space<vmem>>, vector<1x320xf32>
    %24 = vector.broadcast %23 : vector<1x320xf32> to vector<49x320xf32>
    %25 = arith.addf %22, %24 : vector<49x320xf32>
    %c0_12 = arith.constant 0 : index
    %c0_13 = arith.constant 0 : index
    %26 = vector.load %arg5[%c0_12, %c0_13] : memref<320x384xf32, #tpu.memory_space<vmem>>, vector<320x384xf32>
    %cst_14 = arith.constant dense<0.000000e+00> : vector<49x384xf32>
    %27 = tpu.matmul %25, %26, %cst_14 {dimension_numbers = #tpu.dot_dimension_numbers<[1], [0], [0], [1], [0, 0, 1, 1], [], []>} : vector<49x320xf32>, vector<320x384xf32>, vector<49x384xf32> -> vector<49x384xf32>
    %cst_15 = arith.constant dense<0.000000e+00> : vector<384xf32>
    %28 = vector.multi_reduction <add>, %27, %cst_15 [0] : vector<49x384xf32> to vector<384xf32>
    %29 = vector.shape_cast %28 : vector<384xf32> to vector<1x384xf32>
    %cst_16 = arith.constant 0.0204081628 : f32
    %30 = vector.broadcast %cst_16 : f32 to vector<1x384xf32>
    %31 = arith.mulf %29, %30 : vector<1x384xf32>
    %32 = arith.mulf %27, %27 : vector<49x384xf32>
    %cst_17 = arith.constant dense<0.000000e+00> : vector<384xf32>
    %33 = vector.multi_reduction <add>, %32, %cst_17 [0] : vector<49x384xf32> to vector<384xf32>
    %34 = vector.shape_cast %33 : vector<384xf32> to vector<1x384xf32>
    %cst_18 = arith.constant 0.0204081628 : f32
    %35 = vector.broadcast %cst_18 : f32 to vector<1x384xf32>
    %36 = arith.mulf %34, %35 : vector<1x384xf32>
    %37 = arith.mulf %31, %31 : vector<1x384xf32>
    %38 = arith.subf %36, %37 : vector<1x384xf32>
    %39 = vector.broadcast %31 : vector<1x384xf32> to vector<49x384xf32>
    %40 = arith.subf %27, %39 : vector<49x384xf32>
    %cst_19 = arith.constant 9.99999974E-6 : f32
    %41 = vector.broadcast %cst_19 : f32 to vector<1x384xf32>
    %42 = arith.addf %38, %41 : vector<1x384xf32>
    %43 = math.rsqrt %42 : vector<1x384xf32>
    %c0_20 = arith.constant 0 : index
    %c0_21 = arith.constant 0 : index
    %44 = vector.load %arg6[%c0_20, %c0_21] : memref<1x384xf32, #tpu.memory_space<vmem>>, vector<1x384xf32>
    %45 = arith.mulf %43, %44 : vector<1x384xf32>
    %46 = vector.broadcast %45 : vector<1x384xf32> to vector<49x384xf32>
    %47 = arith.mulf %40, %46 : vector<49x384xf32>
    %c0_22 = arith.constant 0 : index
    %c0_23 = arith.constant 0 : index
    %48 = vector.load %arg7[%c0_22, %c0_23] : memref<1x384xf32, #tpu.memory_space<vmem>>, vector<1x384xf32>
    %49 = vector.broadcast %48 : vector<1x384xf32> to vector<49x384xf32>
    %50 = arith.addf %47, %49 : vector<49x384xf32>
    %c0_24 = arith.constant 0 : index
    %c0_25 = arith.constant 0 : index
    %51 = vector.load %arg8[%c0_24, %c0_25] : memref<49x384xf32, #tpu.memory_space<vmem>>, vector<49x384xf32>
    tpu.vector_store %arg8[%c0_24, %c0_25], %50 {strides = array<i32>} : memref<49x384xf32, #tpu.memory_space<vmem>>, vector<49x384xf32>,
    return
  }
  func.func @transform_0(%arg0: i32) -> (i32, i32) {
    %c0_i32 = arith.constant 0 : i32
    %c0_i32_0 = arith.constant 0 : i32
    %c0_i32_1 = arith.constant 0 : i32
    return %c0_i32, %c0_i32_0 : i32, i32
  }
  func.func @transform_1(%arg0: i32) -> (i32, i32) {
    %c0_i32 = arith.constant 0 : i32
    %c0_i32_0 = arith.constant 0 : i32
    %c0_i32_1 = arith.constant 0 : i32
    return %c0_i32, %c0_i32_0 : i32, i32
  }
  func.func @transform_2(%arg0: i32) -> (i32, i32) {
    %c0_i32 = arith.constant 0 : i32
    %c0_i32_0 = arith.constant 0 : i32
    %c0_i32_1 = arith.constant 0 : i32
    return %c0_i32, %c0_i32_0 : i32, i32
  }
  func.func @transform_3(%arg0: i32) -> (i32, i32) {
    %c0_i32 = arith.constant 0 : i32
    %c0_i32_0 = arith.constant 0 : i32
    %c0_i32_1 = arith.constant 0 : i32
    return %c0_i32, %c0_i32_0 : i32, i32
  }
  func.func @transform_4(%arg0: i32) -> (i32, i32) {
    %c0_i32 = arith.constant 0 : i32
    %c0_i32_0 = arith.constant 0 : i32
    return %c0_i32, %arg0 : i32, i32
  }
  func.func @transform_5(%arg0: i32) -> (i32, i32) {
    %c0_i32 = arith.constant 0 : i32
    %c0_i32_0 = arith.constant 0 : i32
    return %c0_i32, %arg0 : i32, i32
  }
  func.func @transform_6(%arg0: i32) -> (i32, i32) {
    %c0_i32 = arith.constant 0 : i32
    %c0_i32_0 = arith.constant 0 : i32
    return %c0_i32, %arg0 : i32, i32
  }
  func.func @transform_7(%arg0: i32) -> (i32, i32) {
    %c0_i32 = arith.constant 0 : i32
    %c0_i32_0 = arith.constant 0 : i32
    return %c0_i32, %arg0 : i32, i32
  }
}

</mosaic_0001>

<llo_original>
// kernel: tpu_custom_call.1
$region0: #{tpu_custom_call.1}
  #allocation0 [shape = 'u32[]', space=smem, size = 0x4, offset = 0x4, fixed_abs, tag = 'smem constant byte address 0x4 - core index']
  #allocation1 [shape = 'u32[144,128]{1,0:T(1,128)}', space=vmem, size = 0x12000, scoped, tag = 'internal scratch']
  %s0 = inlined_call_operand.vmem [shape: f32[1152,49], index: 0, kind: input, shape index: {}]
  %s1 = inlined_call_operand.vmem [shape: f32[1152,320], index: 1, kind: input, shape index: {}]
  %s2 = inlined_call_operand.vmem [shape: f32[1,320], index: 2, kind: input, shape index: {}]
  %s3 = inlined_call_operand.vmem [shape: f32[1,320], index: 3, kind: input, shape index: {}]
  %s4 = inlined_call_operand.vmem [shape: f32[320,1920], index: 4, kind: input, shape index: {}]
  %s5 = inlined_call_operand.vmem [shape: f32[1,1920], index: 5, kind: input, shape index: {}]
  %s6 = inlined_call_operand.vmem [shape: f32[1,1920], index: 6, kind: input, shape index: {}]
  %s7 = inlined_call_operand.hbm [shape: f32[49,1920], index: 7, kind: output, shape index: {}]
  %s8 = sld [smem:[#allocation0]]
  $region84: #{tpu_custom_call.1} parent=0
    _
  %s10 = ssub.s32 1, %s8
  %s11 = scalar_select 0, %s10, %s8
  $region1: #{tpu_custom_call.1} parent=0
    #allocation2 [shape = 'u8[983040]{0}', space=vmem, size = 0xf0000, scoped, tag = 'input window, operand 4']
    #allocation3 [shape = 'u8[172032]{0}', space=vmem, size = 0x2a000, scoped, tag = 'output window, operand 0']
    #allocation4 [shape = 's32[2]{0}', space=sflag, size = 0x8, scoped, tag = 'scoped memory for tpu_custom_call.1']
    %12 = vsyncpa [#allocation4], 0
    %s13 = scalar_lea.sflag [#allocation4], 1
    %14 = vsyncpa %s13, 0
    loop: start=0, step=1, limit=7
    $region2: #{tpu_custom_call.1} parent=1 // loop_pre_header
      _
    $region3: #{tpu_custom_call.1} parent=1 // loop_header
      %s16 = sphi 0, %s20
      %p17 = scmp.ge.s32.totalorder %s16, 7
      %s24 = sphi 0, %s24
      %s26 = sphi 0, %s24
      %s27 = sphi 0, %s26
      %s41 = sphi 0, %s27
      %s45 = sphi 0, %s45
      %s47 = sphi 0, %s45
      %s48 = sphi 0, %s47
      %s62 = sphi 0, %s48
      %s66 = sphi 0, %s66
      %s68 = sphi 0, %s66
      %s69 = sphi 0, %s68
      %s83 = sphi 0, %s69
      %s87 = sphi 0, %s87
      %s89 = sphi 0, %s87
      %s90 = sphi 0, %s89
      %s104 = sphi 0, %s90
      %s110 = sphi 0, %s112
      %s113 = sphi 0, %s110
      %s114 = sphi 0, %s113
      %s130 = sphi 0, %s114
      %s136 = sphi 0, %s138
      %s139 = sphi 0, %s136
      %s140 = sphi 0, %s139
      %s156 = sphi 0, %s140
      %s162 = sphi 0, %s164
      %s165 = sphi 0, %s162
      %s166 = sphi 0, %s165
      %s182 = sphi 0, %s166
      %s188 = sphi 0, %s190
      %s191 = sphi 0, %s188
      %s192 = sphi 0, %s191
      %s208 = sphi 0, %s192
    $region4: #{tpu_custom_call.1} parent=1 // loop_header_branch
      %19 = sbr.rel (%p17) target = $region8
    $region5: #{tpu_custom_call.1} parent=1 // loop_body
      %s21 = ssub.s32 %s16, 1
      %s22 = ssub.s32 %s16, 2
      %s23 = sadd.s32 %s16, 1
      %s25 = sadd.s32 %s24, 1
      %p28 = scmp.eq.s32.totalorder %s16, 4
      %p29 = scmp.ne.s32.totalorder %s24, %s26
      %p30 = scmp.eq.s32.totalorder %s16, 0
      %p31 = por %p29, %p30
      %p32 = scmp.ne.s32.totalorder %s24, %s26
      %p33 = scmp.eq.s32.totalorder %s21, 4
      %p34 = por %p32, %p33
      %p35 = scmp.ne.s32.totalorder %s26, %s27
      %p36 = scmp.eq.s32.totalorder %s21, 0
      %p37 = por %p35, %p36
      %p38 = scmp.ne.s32.totalorder %s26, %s27
      %p39 = scmp.eq.s32.totalorder %s22, 4
      %p40 = por %p38, %p39
      %p42 = scmp.ne.s32.totalorder %s27, %s41
      %p43 = scmp.eq.s32.totalorder %s22, 0
      %p44 = por %p42, %p43
      %s46 = sadd.s32 %s45, 1
      %p49 = scmp.eq.s32.totalorder %s16, 4
      %p50 = scmp.ne.s32.totalorder %s45, %s47
      %p51 = scmp.eq.s32.totalorder %s16, 0
      %p52 = por %p50, %p51
      %p53 = scmp.ne.s32.totalorder %s45, %s47
      %p54 = scmp.eq.s32.totalorder %s21, 4
      %p55 = por %p53, %p54
      %p56 = scmp.ne.s32.totalorder %s47, %s48
      %p57 = scmp.eq.s32.totalorder %s21, 0
      %p58 = por %p56, %p57
      %p59 = scmp.ne.s32.totalorder %s47, %s48
      %p60 = scmp.eq.s32.totalorder %s22, 4
      %p61 = por %p59, %p60
      %p63 = scmp.ne.s32.totalorder %s48, %s62
      %p64 = scmp.eq.s32.totalorder %s22, 0
      %p65 = por %p63, %p64
      %s67 = sadd.s32 %s66, 1
      %p70 = scmp.eq.s32.totalorder %s16, 4
      %p71 = scmp.ne.s32.totalorder %s66, %s68
      %p72 = scmp.eq.s32.totalorder %s16, 0
      %p73 = por %p71, %p72
      %p74 = scmp.ne.s32.totalorder %s66, %s68
      %p75 = scmp.eq.s32.totalorder %s21, 4
      %p76 = por %p74, %p75
      %p77 = scmp.ne.s32.totalorder %s68, %s69
      %p78 = scmp.eq.s32.totalorder %s21, 0
      %p79 = por %p77, %p78
      %p80 = scmp.ne.s32.totalorder %s68, %s69
      %p81 = scmp.eq.s32.totalorder %s22, 4
      %p82 = por %p80, %p81
      %p84 = scmp.ne.s32.totalorder %s69, %s83
      %p85 = scmp.eq.s32.totalorder %s22, 0
      %p86 = por %p84, %p85
      %s88 = sadd.s32 %s87, 1
      %p91 = scmp.eq.s32.totalorder %s16, 4
      %p92 = scmp.ne.s32.totalorder %s87, %s89
      %p93 = scmp.eq.s32.totalorder %s16, 0
      %p94 = por %p92, %p93
      %p95 = scmp.ne.s32.totalorder %s87, %s89
      %p96 = scmp.eq.s32.totalorder %s21, 4
      %p97 = por %p95, %p96
      %p98 = scmp.ne.s32.totalorder %s89, %s90
      %p99 = scmp.eq.s32.totalorder %s21, 0
      %p100 = por %p98, %p99
      %p101 = scmp.ne.s32.totalorder %s89, %s90
      %p102 = scmp.eq.s32.totalorder %s22, 4
      %p103 = por %p101, %p102
      %p105 = scmp.ne.s32.totalorder %s90, %s104
      %p106 = scmp.eq.s32.totalorder %s22, 0
      %p107 = por %p105, %p106
      %s108 = ssub.s32 %s16, %s23
      %p109 = scmp.eq.s32.totalorder %s108, 0
      %s111 = sadd.s32 %s110, 1
      %s112 = scalar_select %p109, %s110, %s111
      %p115 = pneg %p109
      %p116 = scmp.eq.s32.totalorder %s16, 4
      %p117 = por %p115, %p116
      %p118 = scmp.ne.s32.totalorder %s110, %s113
      %p119 = scmp.eq.s32.totalorder %s16, 0
      %p120 = por %p118, %p119
      %p121 = scmp.ne.s32.totalorder %s110, %s113
      %p122 = scmp.eq.s32.totalorder %s21, 4
      %p123 = por %p121, %p122
      %p124 = scmp.ne.s32.totalorder %s113, %s114
      %p125 = scmp.eq.s32.totalorder %s21, 0
      %p126 = por %p124, %p125
      %p127 = scmp.ne.s32.totalorder %s113, %s114
      %p128 = scmp.eq.s32.totalorder %s22, 4
      %p129 = por %p127, %p128
      %p131 = scmp.ne.s32.totalorder %s114, %s130
      %p132 = scmp.eq.s32.totalorder %s22, 0
      %p133 = por %p131, %p132
      %s134 = ssub.s32 %s16, %s23
      %p135 = scmp.eq.s32.totalorder %s134, 0
      %s137 = sadd.s32 %s136, 1
      %s138 = scalar_select %p135, %s136, %s137
      %p141 = pneg %p135
      %p142 = scmp.eq.s32.totalorder %s16, 4
      %p143 = por %p141, %p142
      %p144 = scmp.ne.s32.totalorder %s136, %s139
      %p145 = scmp.eq.s32.totalorder %s16, 0
      %p146 = por %p144, %p145
      %p147 = scmp.ne.s32.totalorder %s136, %s139
      %p148 = scmp.eq.s32.totalorder %s21, 4
      %p149 = por %p147, %p148
      %p150 = scmp.ne.s32.totalorder %s139, %s140
      %p151 = scmp.eq.s32.totalorder %s21, 0
      %p152 = por %p150, %p151
      %p153 = scmp.ne.s32.totalorder %s139, %s140
      %p154 = scmp.eq.s32.totalorder %s22, 4
      %p155 = por %p153, %p154
      %p157 = scmp.ne.s32.totalorder %s140, %s156
      %p158 = scmp.eq.s32.totalorder %s22, 0
      %p159 = por %p157, %p158
      %s160 = ssub.s32 %s16, %s23
      %p161 = scmp.eq.s32.totalorder %s160, 0
      %s163 = sadd.s32 %s162, 1
      %s164 = scalar_select %p161, %s162, %s163
      %p167 = pneg %p161
      %p168 = scmp.eq.s32.totalorder %s16, 4
      %p169 = por %p167, %p168
      %p170 = scmp.ne.s32.totalorder %s162, %s165
      %p171 = scmp.eq.s32.totalorder %s16, 0
      %p172 = por %p170, %p171
      %p173 = scmp.ne.s32.totalorder %s162, %s165
      %p174 = scmp.eq.s32.totalorder %s21, 4
      %p175 = por %p173, %p174
      %p176 = scmp.ne.s32.totalorder %s165, %s166
      %p177 = scmp.eq.s32.totalorder %s21, 0
      %p178 = por %p176, %p177
      %p179 = scmp.ne.s32.totalorder %s165, %s166
      %p180 = scmp.eq.s32.totalorder %s22, 4
      %p181 = por %p179, %p180
      %p183 = scmp.ne.s32.totalorder %s166, %s182
      %p184 = scmp.eq.s32.totalorder %s22, 0
      %p185 = por %p183, %p184
      %s186 = ssub.s32 %s16, %s23
      %p187 = scmp.eq.s32.totalorder %s186, 0
      %s189 = sadd.s32 %s188, 1
      %s190 = scalar_select %p187, %s188, %s189
      %p193 = pneg %p187
      %p194 = scmp.eq.s32.totalorder %s16, 4
      %p195 = por %p193, %p194
      %p196 = scmp.ne.s32.totalorder %s188, %s191
      %p197 = scmp.eq.s32.totalorder %s16, 0
      %p198 = por %p196, %p197
      %p199 = scmp.ne.s32.totalorder %s188, %s191
      %p200 = scmp.eq.s32.totalorder %s21, 4
      %p201 = por %p199, %p200
      %p202 = scmp.ne.s32.totalorder %s191, %s192
      %p203 = scmp.eq.s32.totalorder %s21, 0
      %p204 = por %p202, %p203
      %p205 = scmp.ne.s32.totalorder %s191, %s192
      %p206 = scmp.eq.s32.totalorder %s22, 4
      %p207 = por %p205, %p206
      %p209 = scmp.ne.s32.totalorder %s192, %s208
      %p210 = scmp.eq.s32.totalorder %s22, 0
      %p211 = por %p209, %p210
      %p212 = scmp.le.s32.totalorder 1, %s16
      %p213 = scmp.lt.s32.totalorder %s16, 6
      %p214 = pnand %p212, %p213
      %p215 = pneg %p214
      // Predicated region
      $region9: #{tpu_custom_call.1} parent=5 // pred_check
        _
      $region10: #{tpu_custom_call.1} parent=5 // pred_check_branch
        %217 = sbr.rel (%p214) target = $region12
      $region11: #{tpu_custom_call.1} parent=5 // pred_region
        %s218 = ssub.s32 %s16, 1
        // Predicated region
        $region13: #{tpu_custom_call.1} parent=11 // pred_check
          %p219 = pneg %p37
        $region14: #{tpu_custom_call.1} parent=11 // pred_check_branch
          %221 = sbr.rel (%p219) target = $region16
        $region15: #{tpu_custom_call.1} parent=11 // pred_region
          _
        $region16: #{tpu_custom_call.1} parent=11 // pred_fallthru
          _
        // Predicated region
        $region17: #{tpu_custom_call.1} parent=11 // pred_check
          %p222 = pneg %p58
        $region18: #{tpu_custom_call.1} parent=11 // pred_check_branch
          %224 = sbr.rel (%p222) target = $region20
        $region19: #{tpu_custom_call.1} parent=11 // pred_region
          _
        $region20: #{tpu_custom_call.1} parent=11 // pred_fallthru
          _
        // Predicated region
        $region21: #{tpu_custom_call.1} parent=11 // pred_check
          %p225 = pneg %p79
        $region22: #{tpu_custom_call.1} parent=11 // pred_check_branch
          %227 = sbr.rel (%p225) target = $region24
        $region23: #{tpu_custom_call.1} parent=11 // pred_region
          _
        $region24: #{tpu_custom_call.1} parent=11 // pred_fallthru
          _
        // Predicated region
        $region25: #{tpu_custom_call.1} parent=11 // pred_check
          %p228 = pneg %p100
        $region26: #{tpu_custom_call.1} parent=11 // pred_check_branch
          %230 = sbr.rel (%p228) target = $region28
        $region27: #{tpu_custom_call.1} parent=11 // pred_region
          _
        $region28: #{tpu_custom_call.1} parent=11 // pred_fallthru
          _
      $region12: #{tpu_custom_call.1} parent=5 // pred_fallthru
        _
      %p231 = scmp.lt.s32.totalorder %s16, 5
      // Predicated region
      $region29: #{tpu_custom_call.1} parent=5 // pred_check
        %p232 = pneg %p231
      $region30: #{tpu_custom_call.1} parent=5 // pred_check_branch
        %234 = sbr.rel (%p232) target = $region32
      $region31: #{tpu_custom_call.1} parent=5 // pred_region
        // Predicated region
        $region33: #{tpu_custom_call.1} parent=31 // pred_check
          %p235 = pneg %p120
        $region34: #{tpu_custom_call.1} parent=31 // pred_check_branch
          %237 = sbr.rel (%p235) target = $region36
        $region35: #{tpu_custom_call.1} parent=31 // pred_region
          %s238 = sand.u32 %s110, 1
          %s239 = sand.u32 %s110, 1
          %s240 = smul.addr %s239, 960
          %s241 = scalar_lea.vmem [#allocation2], %s240
          %s242 = smul.u32 3, %s16
          %s243 = smul.addr %s242, 8
          %s244 = scalar_lea.vmem %s4, %s243
          // Predicated region
          $region37: #{tpu_custom_call.1} parent=35 // pred_check
            _
          $region38: #{tpu_custom_call.1} parent=35 // pred_check_branch
            %246 = sbr.rel (0) target = $region40
          $region39: #{tpu_custom_call.1} parent=35 // pred_region
            // Predicated region
            $region41: #{tpu_custom_call.1} parent=39 // pred_check
              _
            $region42: #{tpu_custom_call.1} parent=39 // pred_check_branch
              %248 = sbr.rel (0) target = $region44
            $region43: #{tpu_custom_call.1} parent=39 // pred_region
              loop: start=0, step=1, limit=1
              $region45: #{tpu_custom_call.1} parent=43 // loop_pre_header
                _
              $region46: #{tpu_custom_call.1} parent=43 // loop_header
                %s250 = sphi 0, %s254
                %p251 = scmp.ge.s32.totalorder %s250, 1
                %s255 = sphi %s244, %s244
                %s256 = sphi %s241, %s241
              $region47: #{tpu_custom_call.1} parent=43 // loop_header_branch
                %253 = sbr.rel (%p251) target = $region51
              $region48: #{tpu_custom_call.1} parent=43 // loop_body
                %v257 = vld [vmem:[%s255] sm:$0xff]
                %258 = vst [vmem:[%s256] sm:$0xff] %v257
                %v259 = vld [vmem:[%s255 + $0x8] sm:$0xff]
                %260 = vst [vmem:[%s256 + $0x8] sm:$0xff] %v259
                %v261 = vld [vmem:[%s255 + $0x10] sm:$0xff]
                %262 = vst [vmem:[%s256 + $0x10] sm:$0xff] %v261
                %v263 = vld [vmem:[%s255 + $0x78] sm:$0xff]
                %264 = vst [vmem:[%s256 + $0x18] sm:$0xff] %v263
                %v265 = vld [vmem:[%s255 + $0x80] sm:$0xff]
                %266 = vst [vmem:[%s256 + $0x20] sm:$0xff] %v265
                %v267 = vld [vmem:[%s255 + $0x88] sm:$0xff]
                %268 = vst [vmem:[%s256 + $0x28] sm:$0xff] %v267
                %v269 = vld [vmem:[%s255 + $0xf0] sm:$0xff]
                %270 = vst [vmem:[%s256 + $0x30] sm:$0xff] %v269
                %v271 = vld [vmem:[%s255 + $0xf8] sm:$0xff]
                %272 = vst [vmem:[%s256 + $0x38] sm:$0xff] %v271
                %v273 = vld [vmem:[%s255 + $0x100] sm:$0xff]
                %274 = vst [vmem:[%s256 + $0x40] sm:$0xff] %v273
                %v275 = vld [vmem:[%s255 + $0x168] sm:$0xff]
                %276 = vst [vmem:[%s256 + $0x48] sm:$0xff] %v275
                %v277 = vld [vmem:[%s255 + $0x170] sm:$0xff]
                %278 = vst [vmem:[%s256 + $0x50] sm:$0xff] %v277
                %v279 = vld [vmem:[%s255 + $0x178] sm:$0xff]
                %280 = vst [vmem:[%s256 + $0x58] sm:$0xff] %v279
                %v281 = vld [vmem:[%s255 + $0x1e0] sm:$0xff]
                %282 = vst [vmem:[%s256 + $0x60] sm:$0xff] %v281
                %v283 = vld [vmem:[%s255 + $0x1e8] sm:$0xff]
                %284 = vst [vmem:[%s256 + $0x68] sm:$0xff] %v283
                %v285 = vld [vmem:[%s255 + $0x1f0] sm:$0xff]
                %286 = vst [vmem:[%s256 + $0x70] sm:$0xff] %v285
                %v287 = vld [vmem:[%s255 + $0x258] sm:$0xff]
                %288 = vst [vmem:[%s256 + $0x78] sm:$0xff] %v287
                %v289 = vld [vmem:[%s255 + $0x260] sm:$0xff]
                %290 = vst [vmem:[%s256 + $0x80] sm:$0xff] %v289
                %v291 = vld [vmem:[%s255 + $0x268] sm:$0xff]
                %292 = vst [vmem:[%s256 + $0x88] sm:$0xff] %v291
                %v293 = vld [vmem:[%s255 + $0x2d0] sm:$0xff]
                %294 = vst [vmem:[%s256 + $0x90] sm:$0xff] %v293
                %v295 = vld [vmem:[%s255 + $0x2d8] sm:$0xff]
                %296 = vst [vmem:[%s256 + $0x98] sm:$0xff] %v295
                %v297 = vld [vmem:[%s255 + $0x2e0] sm:$0xff]
                %298 = vst [vmem:[%s256 + $0xa0] sm:$0xff] %v297
                %v299 = vld [vmem:[%s255 + $0x348] sm:$0xff]
                %300 = vst [vmem:[%s256 + $0xa8] sm:$0xff] %v299
                %v301 = vld [vmem:[%s255 + $0x350] sm:$0xff]
                %302 = vst [vmem:[%s256 + $0xb0] sm:$0xff] %v301
                %v303 = vld [vmem:[%s255 + $0x358] sm:$0xff]
                %304 = vst [vmem:[%s256 + $0xb8] sm:$0xff] %v303
                %v305 = vld [vmem:[%s255 + $0x3c0] sm:$0xff]
                %306 = vst [vmem:[%s256 + $0xc0] sm:$0xff] %v305
                %v307 = vld [vmem:[%s255 + $0x3c8] sm:$0xff]
                %308 = vst [vmem:[%s256 + $0xc8] sm:$0xff] %v307
                %v309 = vld [vmem:[%s255 + $0x3d0] sm:$0xff]
                %310 = vst [vmem:[%s256 + $0xd0] sm:$0xff] %v309
                %v311 = vld [vmem:[%s255 + $0x438] sm:$0xff]
                %312 = vst [vmem:[%s256 + $0xd8] sm:$0xff] %v311
                %v313 = vld [vmem:[%s255 + $0x440] sm:$0xff]
                %314 = vst [vmem:[%s256 + $0xe0] sm:$0xff] %v313
                %v315 = vld [vmem:[%s255 + $0x448] sm:$0xff]
                %316 = vst [vmem:[%s256 + $0xe8] sm:$0xff] %v315
                %v317 = vld [vmem:[%s255 + $0x4b0] sm:$0xff]
                %318 = vst [vmem:[%s256 + $0xf0] sm:$0xff] %v317
                %v319 = vld [vmem:[%s255 + $0x4b8] sm:$0xff]
                %320 = vst [vmem:[%s256 + $0xf8] sm:$0xff] %v319
                %v321 = vld [vmem:[%s255 + $0x4c0] sm:$0xff]
                %322 = vst [vmem:[%s256 + $0x100] sm:$0xff] %v321
                %v323 = vld [vmem:[%s255 + $0x528] sm:$0xff]
                %324 = vst [vmem:[%s256 + $0x108] sm:$0xff] %v323
                %v325 = vld [vmem:[%s255 + $0x530] sm:$0xff]
                %326 = vst [vmem:[%s256 + $0x110] sm:$0xff] %v325
                %v327 = vld [vmem:[%s255 + $0x538] sm:$0xff]
                %328 = vst [vmem:[%s256 + $0x118] sm:$0xff] %v327
                %v329 = vld [vmem:[%s255 + $0x5a0] sm:$0xff]
                %330 = vst [vmem:[%s256 + $0x120] sm:$0xff] %v329
                %v331 = vld [vmem:[%s255 + $0x5a8] sm:$0xff]
                %332 = vst [vmem:[%s256 + $0x128] sm:$0xff] %v331
                %v333 = vld [vmem:[%s255 + $0x5b0] sm:$0xff]
                %334 = vst [vmem:[%s256 + $0x130] sm:$0xff] %v333
                %v335 = vld [vmem:[%s255 + $0x618] sm:$0xff]
                %336 = vst [vmem:[%s256 + $0x138] sm:$0xff] %v335
                %v337 = vld [vmem:[%s255 + $0x620] sm:$0xff]
                %338 = vst [vmem:[%s256 + $0x140] sm:$0xff] %v337
                %v339 = vld [vmem:[%s255 + $0x628] sm:$0xff]
                %340 = vst [vmem:[%s256 + $0x148] sm:$0xff] %v339
                %v341 = vld [vmem:[%s255 + $0x690] sm:$0xff]
                %342 = vst [vmem:[%s256 + $0x150] sm:$0xff] %v341
                %v343 = vld [vmem:[%s255 + $0x698] sm:$0xff]
                %344 = vst [vmem:[%s256 + $0x158] sm:$0xff] %v343
                %v345 = vld [vmem:[%s255 + $0x6a0] sm:$0xff]
                %346 = vst [vmem:[%s256 + $0x160] sm:$0xff] %v345
                %v347 = vld [vmem:[%s255 + $0x708] sm:$0xff]
                %348 = vst [vmem:[%s256 + $0x168] sm:$0xff] %v347
                %v349 = vld [vmem:[%s255 + $0x710] sm:$0xff]
                %350 = vst [vmem:[%s256 + $0x170] sm:$0xff] %v349
                %v351 = vld [vmem:[%s255 + $0x718] sm:$0xff]
                %352 = vst [vmem:[%s256 + $0x178] sm:$0xff] %v351
                %v353 = vld [vmem:[%s255 + $0x780] sm:$0xff]
                %354 = vst [vmem:[%s256 + $0x180] sm:$0xff] %v353
                %v355 = vld [vmem:[%s255 + $0x788] sm:$0xff]
                %356 = vst [vmem:[%s256 + $0x188] sm:$0xff] %v355
                %v357 = vld [vmem:[%s255 + $0x790] sm:$0xff]
                %358 = vst [vmem:[%s256 + $0x190] sm:$0xff] %v357
                %v359 = vld [vmem:[%s255 + $0x7f8] sm:$0xff]
                %360 = vst [vmem:[%s256 + $0x198] sm:$0xff] %v359
                %v361 = vld [vmem:[%s255 + $0x800] sm:$0xff]
                %362 = vst [vmem:[%s256 + $0x1a0] sm:$0xff] %v361
                %v363 = vld [vmem:[%s255 + $0x808] sm:$0xff]
                %364 = vst [vmem:[%s256 + $0x1a8] sm:$0xff] %v363
                %v365 = vld [vmem:[%s255 + $0x870] sm:$0xff]
                %366 = vst [vmem:[%s256 + $0x1b0] sm:$0xff] %v365
                %v367 = vld [vmem:[%s255 + $0x878] sm:$0xff]
                %368 = vst [vmem:[%s256 + $0x1b8] sm:$0xff] %v367
                %v369 = vld [vmem:[%s255 + $0x880] sm:$0xff]
                %370 = vst [vmem:[%s256 + $0x1c0] sm:$0xff] %v369
                %v371 = vld [vmem:[%s255 + $0x8e8] sm:$0xff]
                %372 = vst [vmem:[%s256 + $0x1c8] sm:$0xff] %v371
                %v373 = vld [vmem:[%s255 + $0x8f0] sm:$0xff]
                %374 = vst [vmem:[%s256 + $0x1d0] sm:$0xff] %v373
                %v375 = vld [vmem:[%s255 + $0x8f8] sm:$0xff]
                %376 = vst [vmem:[%s256 + $0x1d8] sm:$0xff] %v375
                %v377 = vld [vmem:[%s255 + $0x960] sm:$0xff]
                %378 = vst [vmem:[%s256 + $0x1e0] sm:$0xff] %v377
                %v379 = vld [vmem:[%s255 + $0x968] sm:$0xff]
                %380 = vst [vmem:[%s256 + $0x1e8] sm:$0xff] %v379
                %v381 = vld [vmem:[%s255 + $0x970] sm:$0xff]
                %382 = vst [vmem:[%s256 + $0x1f0] sm:$0xff] %v381
                %v383 = vld [vmem:[%s255 + $0x9d8] sm:$0xff]
                %384 = vst [vmem:[%s256 + $0x1f8] sm:$0xff] %v383
                %v385 = vld [vmem:[%s255 + $0x9e0] sm:$0xff]
                %386 = vst [vmem:[%s256 + $0x200] sm:$0xff] %v385
                %v387 = vld [vmem:[%s255 + $0x9e8] sm:$0xff]
                %388 = vst [vmem:[%s256 + $0x208] sm:$0xff] %v387
                %v389 = vld [vmem:[%s255 + $0xa50] sm:$0xff]
                %390 = vst [vmem:[%s256 + $0x210] sm:$0xff] %v389
                %v391 = vld [vmem:[%s255 + $0xa58] sm:$0xff]
                %392 = vst [vmem:[%s256 + $0x218] sm:$0xff] %v391
                %v393 = vld [vmem:[%s255 + $0xa60] sm:$0xff]
                %394 = vst [vmem:[%s256 + $0x220] sm:$0xff] %v393
                %v395 = vld [vmem:[%s255 + $0xac8] sm:$0xff]
                %396 = vst [vmem:[%s256 + $0x228] sm:$0xff] %v395
                %v397 = vld [vmem:[%s255 + $0xad0] sm:$0xff]
                %398 = vst [vmem:[%s256 + $0x230] sm:$0xff] %v397
                %v399 = vld [vmem:[%s255 + $0xad8] sm:$0xff]
                %400 = vst [vmem:[%s256 + $0x238] sm:$0xff] %v399
                %v401 = vld [vmem:[%s255 + $0xb40] sm:$0xff]
                %402 = vst [vmem:[%s256 + $0x240] sm:$0xff] %v401
                %v403 = vld [vmem:[%s255 + $0xb48] sm:$0xff]
                %404 = vst [vmem:[%s256 + $0x248] sm:$0xff] %v403
                %v405 = vld [vmem:[%s255 + $0xb50] sm:$0xff]
                %406 = vst [vmem:[%s256 + $0x250] sm:$0xff] %v405
                %v407 = vld [vmem:[%s255 + $0xbb8] sm:$0xff]
                %408 = vst [vmem:[%s256 + $0x258] sm:$0xff] %v407
                %v409 = vld [vmem:[%s255 + $0xbc0] sm:$0xff]
                %410 = vst [vmem:[%s256 + $0x260] sm:$0xff] %v409
                %v411 = vld [vmem:[%s255 + $0xbc8] sm:$0xff]
                %412 = vst [vmem:[%s256 + $0x268] sm:$0xff] %v411
                %v413 = vld [vmem:[%s255 + $0xc30] sm:$0xff]
                %414 = vst [vmem:[%s256 + $0x270] sm:$0xff] %v413
                %v415 = vld [vmem:[%s255 + $0xc38] sm:$0xff]
                %416 = vst [vmem:[%s256 + $0x278] sm:$0xff] %v415
                %v417 = vld [vmem:[%s255 + $0xc40] sm:$0xff]
                %418 = vst [vmem:[%s256 + $0x280] sm:$0xff] %v417
                %v419 = vld [vmem:[%s255 + $0xca8] sm:$0xff]
                %420 = vst [vmem:[%s256 + $0x288] sm:$0xff] %v419
                %v421 = vld [vmem:[%s255 + $0xcb0] sm:$0xff]
                %422 = vst [vmem:[%s256 + $0x290] sm:$0xff] %v421
                %v423 = vld [vmem:[%s255 + $0xcb8] sm:$0xff]
                %424 = vst [vmem:[%s256 + $0x298] sm:$0xff] %v423
                %v425 = vld [vmem:[%s255 + $0xd20] sm:$0xff]
                %426 = vst [vmem:[%s256 + $0x2a0] sm:$0xff] %v425
                %v427 = vld [vmem:[%s255 + $0xd28] sm:$0xff]
                %428 = vst [vmem:[%s256 + $0x2a8] sm:$0xff] %v427
                %v429 = vld [vmem:[%s255 + $0xd30] sm:$0xff]
                %430 = vst [vmem:[%s256 + $0x2b0] sm:$0xff] %v429
                %v431 = vld [vmem:[%s255 + $0xd98] sm:$0xff]
                %432 = vst [vmem:[%s256 + $0x2b8] sm:$0xff] %v431
                %v433 = vld [vmem:[%s255 + $0xda0] sm:$0xff]
                %434 = vst [vmem:[%s256 + $0x2c0] sm:$0xff] %v433
                %v435 = vld [vmem:[%s255 + $0xda8] sm:$0xff]
                %436 = vst [vmem:[%s256 + $0x2c8] sm:$0xff] %v435
                %v437 = vld [vmem:[%s255 + $0xe10] sm:$0xff]
                %438 = vst [vmem:[%s256 + $0x2d0] sm:$0xff] %v437
                %v439 = vld [vmem:[%s255 + $0xe18] sm:$0xff]
                %440 = vst [vmem:[%s256 + $0x2d8] sm:$0xff] %v439
                %v441 = vld [vmem:[%s255 + $0xe20] sm:$0xff]
                %442 = vst [vmem:[%s256 + $0x2e0] sm:$0xff] %v441
                %v443 = vld [vmem:[%s255 + $0xe88] sm:$0xff]
                %444 = vst [vmem:[%s256 + $0x2e8] sm:$0xff] %v443
                %v445 = vld [vmem:[%s255 + $0xe90] sm:$0xff]
                %446 = vst [vmem:[%s256 + $0x2f0] sm:$0xff] %v445
                %v447 = vld [vmem:[%s255 + $0xe98] sm:$0xff]
                %448 = vst [vmem:[%s256 + $0x2f8] sm:$0xff] %v447
                %v449 = vld [vmem:[%s255 + $0xf00] sm:$0xff]
                %450 = vst [vmem:[%s256 + $0x300] sm:$0xff] %v449
                %v451 = vld [vmem:[%s255 + $0xf08] sm:$0xff]
                %452 = vst [vmem:[%s256 + $0x308] sm:$0xff] %v451
                %v453 = vld [vmem:[%s255 + $0xf10] sm:$0xff]
                %454 = vst [vmem:[%s256 + $0x310] sm:$0xff] %v453
                %v455 = vld [vmem:[%s255 + $0xf78] sm:$0xff]
                %456 = vst [vmem:[%s256 + $0x318] sm:$0xff] %v455
                %v457 = vld [vmem:[%s255 + $0xf80] sm:$0xff]
                %458 = vst [vmem:[%s256 + $0x320] sm:$0xff] %v457
                %v459 = vld [vmem:[%s255 + $0xf88] sm:$0xff]
                %460 = vst [vmem:[%s256 + $0x328] sm:$0xff] %v459
                %v461 = vld [vmem:[%s255 + $0xff0] sm:$0xff]
                %462 = vst [vmem:[%s256 + $0x330] sm:$0xff] %v461
                %v463 = vld [vmem:[%s255 + $0xff8] sm:$0xff]
                %464 = vst [vmem:[%s256 + $0x338] sm:$0xff] %v463
                %v465 = vld [vmem:[%s255 + $0x1000] sm:$0xff]
                %466 = vst [vmem:[%s256 + $0x340] sm:$0xff] %v465
                %v467 = vld [vmem:[%s255 + $0x1068] sm:$0xff]
                %468 = vst [vmem:[%s256 + $0x348] sm:$0xff] %v467
                %v469 = vld [vmem:[%s255 + $0x1070] sm:$0xff]
                %470 = vst [vmem:[%s256 + $0x350] sm:$0xff] %v469
                %v471 = vld [vmem:[%s255 + $0x1078] sm:$0xff]
                %472 = vst [vmem:[%s256 + $0x358] sm:$0xff] %v471
                %v473 = vld [vmem:[%s255 + $0x10e0] sm:$0xff]
                %474 = vst [vmem:[%s256 + $0x360] sm:$0xff] %v473
                %v475 = vld [vmem:[%s255 + $0x10e8] sm:$0xff]
                %476 = vst [vmem:[%s256 + $0x368] sm:$0xff] %v475
                %v477 = vld [vmem:[%s255 + $0x10f0] sm:$0xff]
                %478 = vst [vmem:[%s256 + $0x370] sm:$0xff] %v477
                %v479 = vld [vmem:[%s255 + $0x1158] sm:$0xff]
                %480 = vst [vmem:[%s256 + $0x378] sm:$0xff] %v479
                %v481 = vld [vmem:[%s255 + $0x1160] sm:$0xff]
                %482 = vst [vmem:[%s256 + $0x380] sm:$0xff] %v481
                %v483 = vld [vmem:[%s255 + $0x1168] sm:$0xff]
                %484 = vst [vmem:[%s256 + $0x388] sm:$0xff] %v483
                %v485 = vld [vmem:[%s255 + $0x11d0] sm:$0xff]
                %486 = vst [vmem:[%s256 + $0x390] sm:$0xff] %v485
                %v487 = vld [vmem:[%s255 + $0x11d8] sm:$0xff]
                %488 = vst [vmem:[%s256 + $0x398] sm:$0xff] %v487
                %v489 = vld [vmem:[%s255 + $0x11e0] sm:$0xff]
                %490 = vst [vmem:[%s256 + $0x3a0] sm:$0xff] %v489
                %v491 = vld [vmem:[%s255 + $0x1248] sm:$0xff]
                %492 = vst [vmem:[%s256 + $0x3a8] sm:$0xff] %v491
                %v493 = vld [vmem:[%s255 + $0x1250] sm:$0xff]
                %494 = vst [vmem:[%s256 + $0x3b0] sm:$0xff] %v493
                %v495 = vld [vmem:[%s255 + $0x1258] sm:$0xff]
                %496 = vst [vmem:[%s256 + $0x3b8] sm:$0xff] %v495
              $region49: #{tpu_custom_call.1} parent=43 // loop_footer
                %s254 = sadd.s32 1, %s250
              $region50: #{tpu_custom_call.1} parent=43 // loop_footer_branch
                %249 = sbr.rel target = $region46
              $region51: #{tpu_custom_call.1} parent=43 // loop_exit
                _
            $region44: #{tpu_custom_call.1} parent=39 // pred_fallthru
              _
            // Predicated region
            $region52: #{tpu_custom_call.1} parent=39 // pred_check
              _
            $region53: #{tpu_custom_call.1} parent=39 // pred_check_branch
              %498 = sbr.rel target = $region55
            $region54: #{tpu_custom_call.1} parent=39 // pred_region
              _
            $region55: #{tpu_custom_call.1} parent=39 // pred_fallthru
              _
          $region40: #{tpu_custom_call.1} parent=35 // pred_fallthru
            _
          %499 = vnop
        $region36: #{tpu_custom_call.1} parent=31 // pred_fallthru
          _
        // Predicated region
        $region56: #{tpu_custom_call.1} parent=31 // pred_check
          %p500 = pneg %p146
        $region57: #{tpu_custom_call.1} parent=31 // pred_check_branch
          %502 = sbr.rel (%p500) target = $region59
        $region58: #{tpu_custom_call.1} parent=31 // pred_region
          %s503 = smul.u32 3, %s16
          %p504 = scmp.lt.s32.totalorder %s503, 14
          %s505 = scalar_select %p504, %s503, 14
          %s506 = scalar_lea.vmem %s5, %s505
          %s507 = smul.u32 3, %s16
        $region59: #{tpu_custom_call.1} parent=31 // pred_fallthru
          _
        // Predicated region
        $region60: #{tpu_custom_call.1} parent=31 // pred_check
          %p508 = pneg %p172
        $region61: #{tpu_custom_call.1} parent=31 // pred_check_branch
          %510 = sbr.rel (%p508) target = $region63
        $region62: #{tpu_custom_call.1} parent=31 // pred_region
          %s511 = smul.u32 3, %s16
          %p512 = scmp.lt.s32.totalorder %s511, 14
          %s513 = scalar_select %p512, %s511, 14
          %s514 = scalar_lea.vmem %s6, %s513
          %s515 = smul.u32 3, %s16
        $region63: #{tpu_custom_call.1} parent=31 // pred_fallthru
          _
      $region32: #{tpu_custom_call.1} parent=5 // pred_fallthru
        _
      %p516 = scmp.le.s32.totalorder 1, %s16
      %p517 = scmp.lt.s32.totalorder %s16, 6
      %p518 = pnand %p516, %p517
      %p519 = pneg %p518
      // Predicated region
      $region64: #{tpu_custom_call.1} parent=5 // pred_check
        _
      $region65: #{tpu_custom_call.1} parent=5 // pred_check_branch
        %521 = sbr.rel (%p518) target = $region67
      $region66: #{tpu_custom_call.1} parent=5 // pred_region
        %s522 = ssub.s32 %s16, 1
        %s523 = sand.u32 %s113, 1
        %s524 = sand.u32 %s113, 1
        %s525 = smul.addr %s524, 960
        %s526 = scalar_lea.vmem [#allocation2], %s525
        // Predicated region
        $region68: #{tpu_custom_call.1} parent=66 // pred_check
          %p527 = pneg %p126
        $region69: #{tpu_custom_call.1} parent=66 // pred_check_branch
          %529 = sbr.rel (%p527) target = $region71
        $region70: #{tpu_custom_call.1} parent=66 // pred_region
          _
        $region71: #{tpu_custom_call.1} parent=66 // pred_fallthru
          _
        %p530 = pneg %p37
        %p531 = pneg %p34
        %p532 = pneg %p58
        %p533 = pneg %p55
        %p534 = pneg %p79
        %p535 = pneg %p76
        %p536 = pneg %p100
        %p537 = pneg %p97
        %s538 = sand.u32 %s113, 1
        %s539 = sand.u32 %s113, 1
        %s540 = smul.addr %s539, 960
        %s541 = scalar_lea.vmem [#allocation2], %s540
        %p542 = pneg %p126
        %p543 = pneg %p123
        %s544 = smul.u32 3, %s21
        %p545 = scmp.lt.s32.totalorder %s544, 14
        %s546 = scalar_select %p545, %s544, 14
        %s547 = scalar_lea.vmem %s5, %s546
        %p548 = pneg %p152
        %p549 = pneg %p149
        %s550 = smul.u32 3, %s21
        %p551 = scmp.lt.s32.totalorder %s550, 14
        %s552 = scalar_select %p551, %s550, 14
        %s553 = scalar_lea.vmem %s6, %s552
        %p554 = pneg %p178
        %p555 = pneg %p175
        %p556 = pneg %p204
        %p557 = pneg %p201
        %s558 = sand.u32 %s191, 1
        %s559 = scalar_lea.sflag [#allocation4], %s558
        %s560 = sand.u32 %s191, 1
        %s561 = smul.addr %s560, 168
        %s562 = scalar_lea.vmem [#allocation3], %s561
        %s563 = smul.u32 3, %s21
        %s564 = smul.u32 3, %s21
        %p565 = scmp.lt.s32.totalorder %s564, 14
        %s566 = scalar_select %p565, %s564, 14
        %s567 = scalar_lea.vmem %s5, %s566
        %s568 = smul.u32 3, %s21
        %s569 = smul.u32 3, %s21
        %p570 = scmp.lt.s32.totalorder %s569, 14
        %s571 = scalar_select %p570, %s569, 14
        %s572 = scalar_lea.vmem %s6, %s571
        %s573 = smul.u32 3, %s21
        %s574 = smul.u32 3, %s21
        %v575 = vld [vmem:[%s0] sm:$0xff]
        %v576 = vld [vmem:[%s0 + $0x8] sm:$0xff]
        %v577 = vld [vmem:[%s0 + $0x10] sm:$0xff]
        %v578 = vld [vmem:[%s0 + $0x18] sm:$0xff]
        %v579 = vld [vmem:[%s0 + $0x20] sm:$0xff]
        %v580 = vld [vmem:[%s0 + $0x28] sm:$0xff]
        %v581 = vld [vmem:[%s0 + $0x30] sm:$0xff]
        %v582 = vld [vmem:[%s0 + $0x38] sm:$0xff]
        %v583 = vld [vmem:[%s0 + $0x40] sm:$0xff]
        %v584 = vld [vmem:[%s0 + $0x48] sm:$0xff]
        %v585 = vld [vmem:[%s0 + $0x50] sm:$0xff]
        %v586 = vld [vmem:[%s0 + $0x58] sm:$0xff]
        %v587 = vld [vmem:[%s0 + $0x60] sm:$0xff]
        %v588 = vld [vmem:[%s0 + $0x68] sm:$0xff]
        %v589 = vld [vmem:[%s0 + $0x70] sm:$0xff]
        %v590 = vld [vmem:[%s0 + $0x78] sm:$0xff]
        %v591 = vld [vmem:[%s0 + $0x80] sm:$0xff]
        %v592 = vld [vmem:[%s0 + $0x88] sm:$0xff]
        %v593 = vld [vmem:[%s0 + $0x90] sm:$0xff]
        %v594 = vld [vmem:[%s0 + $0x98] sm:$0xff]
        %v595 = vld [vmem:[%s0 + $0xa0] sm:$0xff]
        %v596 = vld [vmem:[%s0 + $0xa8] sm:$0xff]
        %v597 = vld [vmem:[%s0 + $0xb0] sm:$0xff]
        %v598 = vld [vmem:[%s0 + $0xb8] sm:$0xff]
        %v599 = vld [vmem:[%s0 + $0xc0] sm:$0xff]
        %v600 = vld [vmem:[%s0 + $0xc8] sm:$0xff]
        %v601 = vld [vmem:[%s0 + $0xd0] sm:$0xff]
        %v602 = vld [vmem:[%s0 + $0xd8] sm:$0xff]
        %v603 = vld [vmem:[%s0 + $0xe0] sm:$0xff]
        %v604 = vld [vmem:[%s0 + $0xe8] sm:$0xff]
        %v605 = vld [vmem:[%s0 + $0xf0] sm:$0xff]
        %v606 = vld [vmem:[%s0 + $0xf8] sm:$0xff]
        %v607 = vld [vmem:[%s0 + $0x100] sm:$0xff]
        %v608 = vld [vmem:[%s0 + $0x108] sm:$0xff]
        %v609 = vld [vmem:[%s0 + $0x110] sm:$0xff]
        %v610 = vld [vmem:[%s0 + $0x118] sm:$0xff]
        %v611 = vld [vmem:[%s0 + $0x120] sm:$0xff]
        %v612 = vld [vmem:[%s0 + $0x128] sm:$0xff]
        %v613 = vld [vmem:[%s0 + $0x130] sm:$0xff]
        %v614 = vld [vmem:[%s0 + $0x138] sm:$0xff]
        %v615 = vld [vmem:[%s0 + $0x140] sm:$0xff]
        %v616 = vld [vmem:[%s0 + $0x148] sm:$0xff]
        %v617 = vld [vmem:[%s0 + $0x150] sm:$0xff]
        %v618 = vld [vmem:[%s0 + $0x158] sm:$0xff]
        %v619 = vld [vmem:[%s0 + $0x160] sm:$0xff]
        %v620 = vld [vmem:[%s0 + $0x168] sm:$0xff]
        %v621 = vld [vmem:[%s0 + $0x170] sm:$0xff]
        %v622 = vld [vmem:[%s0 + $0x178] sm:$0xff]
        %v623 = vld [vmem:[%s0 + $0x180] sm:$0xff]
        %v624 = vld [vmem:[%s0 + $0x188] sm:$0xff]
        %v625 = vld [vmem:[%s0 + $0x190] sm:$0xff]
        %v626 = vld [vmem:[%s0 + $0x198] sm:$0xff]
        %v627 = vld [vmem:[%s0 + $0x1a0] sm:$0xff]
        %v628 = vld [vmem:[%s0 + $0x1a8] sm:$0xff]
        %v629 = vld [vmem:[%s0 + $0x1b0] sm:$0xff]
        %v630 = vld [vmem:[%s0 + $0x1b8] sm:$0xff]
        %v631 = vld [vmem:[%s0 + $0x1c0] sm:$0xff]
        %v632 = vld [vmem:[%s0 + $0x1c8] sm:$0xff]
        %v633 = vld [vmem:[%s0 + $0x1d0] sm:$0xff]
        %v634 = vld [vmem:[%s0 + $0x1d8] sm:$0xff]
        %v635 = vld [vmem:[%s0 + $0x1e0] sm:$0xff]
        %v636 = vld [vmem:[%s0 + $0x1e8] sm:$0xff]
        %v637 = vld [vmem:[%s0 + $0x1f0] sm:$0xff]
        %v638 = vld [vmem:[%s0 + $0x1f8] sm:$0xff]
        %v639 = vld [vmem:[%s0 + $0x200] sm:$0xff]
        %v640 = vld [vmem:[%s0 + $0x208] sm:$0xff]
        %v641 = vld [vmem:[%s0 + $0x210] sm:$0xff]
        %v642 = vld [vmem:[%s0 + $0x218] sm:$0xff]
        %v643 = vld [vmem:[%s0 + $0x220] sm:$0xff]
        %v644 = vld [vmem:[%s0 + $0x228] sm:$0xff]
        %v645 = vld [vmem:[%s0 + $0x230] sm:$0xff]
        %v646 = vld [vmem:[%s0 + $0x238] sm:$0xff]
        %v647 = vld [vmem:[%s0 + $0x240] sm:$0xff]
        %v648 = vld [vmem:[%s0 + $0x248] sm:$0xff]
        %v649 = vld [vmem:[%s0 + $0x250] sm:$0xff]
        %v650 = vld [vmem:[%s0 + $0x258] sm:$0xff]
        %v651 = vld [vmem:[%s0 + $0x260] sm:$0xff]
        %v652 = vld [vmem:[%s0 + $0x268] sm:$0xff]
        %v653 = vld [vmem:[%s0 + $0x270] sm:$0xff]
        %v654 = vld [vmem:[%s0 + $0x278] sm:$0xff]
        %v655 = vld [vmem:[%s0 + $0x280] sm:$0xff]
        %v656 = vld [vmem:[%s0 + $0x288] sm:$0xff]
        %v657 = vld [vmem:[%s0 + $0x290] sm:$0xff]
        %v658 = vld [vmem:[%s0 + $0x298] sm:$0xff]
        %v659 = vld [vmem:[%s0 + $0x2a0] sm:$0xff]
        %v660 = vld [vmem:[%s0 + $0x2a8] sm:$0xff]
        %v661 = vld [vmem:[%s0 + $0x2b0] sm:$0xff]
        %v662 = vld [vmem:[%s0 + $0x2b8] sm:$0xff]
        %v663 = vld [vmem:[%s0 + $0x2c0] sm:$0xff]
        %v664 = vld [vmem:[%s0 + $0x2c8] sm:$0xff]
        %v665 = vld [vmem:[%s0 + $0x2d0] sm:$0xff]
        %v666 = vld [vmem:[%s0 + $0x2d8] sm:$0xff]
        %v667 = vld [vmem:[%s0 + $0x2e0] sm:$0xff]
        %v668 = vld [vmem:[%s0 + $0x2e8] sm:$0xff]
        %v669 = vld [vmem:[%s0 + $0x2f0] sm:$0xff]
        %v670 = vld [vmem:[%s0 + $0x2f8] sm:$0xff]
        %v671 = vld [vmem:[%s0 + $0x300] sm:$0xff]
        %v672 = vld [vmem:[%s0 + $0x308] sm:$0xff]
        %v673 = vld [vmem:[%s0 + $0x310] sm:$0xff]
        %v674 = vld [vmem:[%s0 + $0x318] sm:$0xff]
        %v675 = vld [vmem:[%s0 + $0x320] sm:$0xff]
        %v676 = vld [vmem:[%s0 + $0x328] sm:$0xff]
        %v677 = vld [vmem:[%s0 + $0x330] sm:$0xff]
        %v678 = vld [vmem:[%s0 + $0x338] sm:$0xff]
        %v679 = vld [vmem:[%s0 + $0x340] sm:$0xff]
        %v680 = vld [vmem:[%s0 + $0x348] sm:$0xff]
        %v681 = vld [vmem:[%s0 + $0x350] sm:$0xff]
        %v682 = vld [vmem:[%s0 + $0x358] sm:$0xff]
        %v683 = vld [vmem:[%s0 + $0x360] sm:$0xff]
        %v684 = vld [vmem:[%s0 + $0x368] sm:$0xff]
        %v685 = vld [vmem:[%s0 + $0x370] sm:$0xff]
        %v686 = vld [vmem:[%s0 + $0x378] sm:$0xff]
        %v687 = vld [vmem:[%s0 + $0x380] sm:$0xff]
        %v688 = vld [vmem:[%s0 + $0x388] sm:$0xff]
        %v689 = vld [vmem:[%s0 + $0x390] sm:$0xff]
        %v690 = vld [vmem:[%s0 + $0x398] sm:$0xff]
        %v691 = vld [vmem:[%s0 + $0x3a0] sm:$0xff]
        %v692 = vld [vmem:[%s0 + $0x3a8] sm:$0xff]
        %v693 = vld [vmem:[%s0 + $0x3b0] sm:$0xff]
        %v694 = vld [vmem:[%s0 + $0x3b8] sm:$0xff]
        %v695 = vld [vmem:[%s0 + $0x3c0] sm:$0xff]
        %v696 = vld [vmem:[%s0 + $0x3c8] sm:$0xff]
        %v697 = vld [vmem:[%s0 + $0x3d0] sm:$0xff]
        %v698 = vld [vmem:[%s0 + $0x3d8] sm:$0xff]
        %v699 = vld [vmem:[%s0 + $0x3e0] sm:$0xff]
        %v700 = vld [vmem:[%s0 + $0x3e8] sm:$0xff]
        %v701 = vld [vmem:[%s0 + $0x3f0] sm:$0xff]
        %v702 = vld [vmem:[%s0 + $0x3f8] sm:$0xff]
        %v703 = vld [vmem:[%s0 + $0x400] sm:$0xff]
        %v704 = vld [vmem:[%s0 + $0x408] sm:$0xff]
        %v705 = vld [vmem:[%s0 + $0x410] sm:$0xff]
        %v706 = vld [vmem:[%s0 + $0x418] sm:$0xff]
        %v707 = vld [vmem:[%s0 + $0x420] sm:$0xff]
        %v708 = vld [vmem:[%s0 + $0x428] sm:$0xff]
        %v709 = vld [vmem:[%s0 + $0x430] sm:$0xff]
        %v710 = vld [vmem:[%s0 + $0x438] sm:$0xff]
        %v711 = vld [vmem:[%s0 + $0x440] sm:$0xff]
        %v712 = vld [vmem:[%s0 + $0x448] sm:$0xff]
        %v713 = vld [vmem:[%s0 + $0x450] sm:$0xff]
        %v714 = vld [vmem:[%s0 + $0x458] sm:$0xff]
        %v715 = vld [vmem:[%s0 + $0x460] sm:$0xff]
        %v716 = vld [vmem:[%s0 + $0x468] sm:$0xff]
        %v717 = vld [vmem:[%s0 + $0x470] sm:$0xff]
        %v718 = vld [vmem:[%s0 + $0x478] sm:$0xff]
        %v719 = vld [vmem:[%s1] sm:$0xff]
        %v720 = vld [vmem:[%s1 + $0x8] sm:$0xff]
        %v721 = vld [vmem:[%s1 + $0x10] sm:$0xff]
        %v722 = vld [vmem:[%s1 + $0x18] sm:$0xff]
        %v723 = vld [vmem:[%s1 + $0x20] sm:$0xff]
        %v724 = vld [vmem:[%s1 + $0x28] sm:$0xff]
        %v725 = vld [vmem:[%s1 + $0x30] sm:$0xff]
        %v726 = vld [vmem:[%s1 + $0x38] sm:$0xff]
        %v727 = vld [vmem:[%s1 + $0x40] sm:$0xff]
        %v728 = vld [vmem:[%s1 + $0x48] sm:$0xff]
        %v729 = vld [vmem:[%s1 + $0x50] sm:$0xff]
        %v730 = vld [vmem:[%s1 + $0x58] sm:$0xff]
        %v731 = vld [vmem:[%s1 + $0x60] sm:$0xff]
        %v732 = vld [vmem:[%s1 + $0x68] sm:$0xff]
        %v733 = vld [vmem:[%s1 + $0x70] sm:$0xff]
        %v734 = vld [vmem:[%s1 + $0x78] sm:$0xff]
        %v735 = vld [vmem:[%s1 + $0x80] sm:$0xff]
        %v736 = vld [vmem:[%s1 + $0x88] sm:$0xff]
        %v737 = vld [vmem:[%s1 + $0x90] sm:$0xff]
        %v738 = vld [vmem:[%s1 + $0x98] sm:$0xff]
        %v739 = vld [vmem:[%s1 + $0xa0] sm:$0xff]
        %v740 = vld [vmem:[%s1 + $0xa8] sm:$0xff]
        %v741 = vld [vmem:[%s1 + $0xb0] sm:$0xff]
        %v742 = vld [vmem:[%s1 + $0xb8] sm:$0xff]
        %v743 = vld [vmem:[%s1 + $0xc0] sm:$0xff]
        %v744 = vld [vmem:[%s1 + $0xc8] sm:$0xff]
        %v745 = vld [vmem:[%s1 + $0xd0] sm:$0xff]
        %v746 = vld [vmem:[%s1 + $0xd8] sm:$0xff]
        %v747 = vld [vmem:[%s1 + $0xe0] sm:$0xff]
        %v748 = vld [vmem:[%s1 + $0xe8] sm:$0xff]
        %v749 = vld [vmem:[%s1 + $0xf0] sm:$0xff]
        %v750 = vld [vmem:[%s1 + $0xf8] sm:$0xff]
        %v751 = vld [vmem:[%s1 + $0x100] sm:$0xff]
        %v752 = vld [vmem:[%s1 + $0x108] sm:$0xff]
        %v753 = vld [vmem:[%s1 + $0x110] sm:$0xff]
        %v754 = vld [vmem:[%s1 + $0x118] sm:$0xff]
        %v755 = vld [vmem:[%s1 + $0x120] sm:$0xff]
        %v756 = vld [vmem:[%s1 + $0x128] sm:$0xff]
        %v757 = vld [vmem:[%s1 + $0x130] sm:$0xff]
        %v758 = vld [vmem:[%s1 + $0x138] sm:$0xff]
        %v759 = vld [vmem:[%s1 + $0x140] sm:$0xff]
        %v760 = vld [vmem:[%s1 + $0x148] sm:$0xff]
        %v761 = vld [vmem:[%s1 + $0x150] sm:$0xff]
        %v762 = vld [vmem:[%s1 + $0x158] sm:$0xff]
        %v763 = vld [vmem:[%s1 + $0x160] sm:$0xff]
        %v764 = vld [vmem:[%s1 + $0x168] sm:$0xff]
        %v765 = vld [vmem:[%s1 + $0x170] sm:$0xff]
        %v766 = vld [vmem:[%s1 + $0x178] sm:$0xff]
        %v767 = vld [vmem:[%s1 + $0x180] sm:$0xff]
        %v768 = vld [vmem:[%s1 + $0x188] sm:$0xff]
        %v769 = vld [vmem:[%s1 + $0x190] sm:$0xff]
        %v770 = vld [vmem:[%s1 + $0x198] sm:$0xff]
        %v771 = vld [vmem:[%s1 + $0x1a0] sm:$0xff]
        %v772 = vld [vmem:[%s1 + $0x1a8] sm:$0xff]
        %v773 = vld [vmem:[%s1 + $0x1b0] sm:$0xff]
        %v774 = vld [vmem:[%s1 + $0x1b8] sm:$0xff]
        %v775 = vld [vmem:[%s1 + $0x1c0] sm:$0xff]
        %v776 = vld [vmem:[%s1 + $0x1c8] sm:$0xff]
        %v777 = vld [vmem:[%s1 + $0x1d0] sm:$0xff]
        %v778 = vld [vmem:[%s1 + $0x1d8] sm:$0xff]
        %v779 = vld [vmem:[%s1 + $0x1e0] sm:$0xff]
        %v780 = vld [vmem:[%s1 + $0x1e8] sm:$0xff]
        %v781 = vld [vmem:[%s1 + $0x1f0] sm:$0xff]
        %v782 = vld [vmem:[%s1 + $0x1f8] sm:$0xff]
        %v783 = vld [vmem:[%s1 + $0x200] sm:$0xff]
        %v784 = vld [vmem:[%s1 + $0x208] sm:$0xff]
        %v785 = vld [vmem:[%s1 + $0x210] sm:$0xff]
        %v786 = vld [vmem:[%s1 + $0x218] sm:$0xff]
        %v787 = vld [vmem:[%s1 + $0x220] sm:$0xff]
        %v788 = vld [vmem:[%s1 + $0x228] sm:$0xff]
        %v789 = vld [vmem:[%s1 + $0x230] sm:$0xff]
        %v790 = vld [vmem:[%s1 + $0x238] sm:$0xff]
        %v791 = vld [vmem:[%s1 + $0x240] sm:$0xff]
        %v792 = vld [vmem:[%s1 + $0x248] sm:$0xff]
        %v793 = vld [vmem:[%s1 + $0x250] sm:$0xff]
        %v794 = vld [vmem:[%s1 + $0x258] sm:$0xff]
        %v795 = vld [vmem:[%s1 + $0x260] sm:$0xff]
        %v796 = vld [vmem:[%s1 + $0x268] sm:$0xff]
        %v797 = vld [vmem:[%s1 + $0x270] sm:$0xff]
        %v798 = vld [vmem:[%s1 + $0x278] sm:$0xff]
        %v799 = vld [vmem:[%s1 + $0x280] sm:$0xff]
        %v800 = vld [vmem:[%s1 + $0x288] sm:$0xff]
        %v801 = vld [vmem:[%s1 + $0x290] sm:$0xff]
        %v802 = vld [vmem:[%s1 + $0x298] sm:$0xff]
        %v803 = vld [vmem:[%s1 + $0x2a0] sm:$0xff]
        %v804 = vld [vmem:[%s1 + $0x2a8] sm:$0xff]
        %v805 = vld [vmem:[%s1 + $0x2b0] sm:$0xff]
        %v806 = vld [vmem:[%s1 + $0x2b8] sm:$0xff]
        %v807 = vld [vmem:[%s1 + $0x2c0] sm:$0xff]
        %v808 = vld [vmem:[%s1 + $0x2c8] sm:$0xff]
        %v809 = vld [vmem:[%s1 + $0x2d0] sm:$0xff]
        %v810 = vld [vmem:[%s1 + $0x2d8] sm:$0xff]
        %v811 = vld [vmem:[%s1 + $0x2e0] sm:$0xff]
        %v812 = vld [vmem:[%s1 + $0x2e8] sm:$0xff]
        %v813 = vld [vmem:[%s1 + $0x2f0] sm:$0xff]
        %v814 = vld [vmem:[%s1 + $0x2f8] sm:$0xff]
        %v815 = vld [vmem:[%s1 + $0x300] sm:$0xff]
        %v816 = vld [vmem:[%s1 + $0x308] sm:$0xff]
        %v817 = vld [vmem:[%s1 + $0x310] sm:$0xff]
        %v818 = vld [vmem:[%s1 + $0x318] sm:$0xff]
        %v819 = vld [vmem:[%s1 + $0x320] sm:$0xff]
        %v820 = vld [vmem:[%s1 + $0x328] sm:$0xff]
        %v821 = vld [vmem:[%s1 + $0x330] sm:$0xff]
        %v822 = vld [vmem:[%s1 + $0x338] sm:$0xff]
        %v823 = vld [vmem:[%s1 + $0x340] sm:$0xff]
        %v824 = vld [vmem:[%s1 + $0x348] sm:$0xff]
        %v825 = vld [vmem:[%s1 + $0x350] sm:$0xff]
        %v826 = vld [vmem:[%s1 + $0x358] sm:$0xff]
        %v827 = vld [vmem:[%s1 + $0x360] sm:$0xff]
        %v828 = vld [vmem:[%s1 + $0x368] sm:$0xff]
        %v829 = vld [vmem:[%s1 + $0x370] sm:$0xff]
        %v830 = vld [vmem:[%s1 + $0x378] sm:$0xff]
        %v831 = vld [vmem:[%s1 + $0x380] sm:$0xff]
        %v832 = vld [vmem:[%s1 + $0x388] sm:$0xff]
        %v833 = vld [vmem:[%s1 + $0x390] sm:$0xff]
        %v834 = vld [vmem:[%s1 + $0x398] sm:$0xff]
        %v835 = vld [vmem:[%s1 + $0x3a0] sm:$0xff]
        %v836 = vld [vmem:[%s1 + $0x3a8] sm:$0xff]
        %v837 = vld [vmem:[%s1 + $0x3b0] sm:$0xff]
        %v838 = vld [vmem:[%s1 + $0x3b8] sm:$0xff]
        %v839 = vld [vmem:[%s1 + $0x3c0] sm:$0xff]
        %v840 = vld [vmem:[%s1 + $0x3c8] sm:$0xff]
        %v841 = vld [vmem:[%s1 + $0x3d0] sm:$0xff]
        %v842 = vld [vmem:[%s1 + $0x3d8] sm:$0xff]
        %v843 = vld [vmem:[%s1 + $0x3e0] sm:$0xff]
        %v844 = vld [vmem:[%s1 + $0x3e8] sm:$0xff]
        %v845 = vld [vmem:[%s1 + $0x3f0] sm:$0xff]
        %v846 = vld [vmem:[%s1 + $0x3f8] sm:$0xff]
        %v847 = vld [vmem:[%s1 + $0x400] sm:$0xff]
        %v848 = vld [vmem:[%s1 + $0x408] sm:$0xff]
        %v849 = vld [vmem:[%s1 + $0x410] sm:$0xff]
        %v850 = vld [vmem:[%s1 + $0x418] sm:$0xff]
        %v851 = vld [vmem:[%s1 + $0x420] sm:$0xff]
        %v852 = vld [vmem:[%s1 + $0x428] sm:$0xff]
        %v853 = vld [vmem:[%s1 + $0x430] sm:$0xff]
        %v854 = vld [vmem:[%s1 + $0x438] sm:$0xff]
        %v855 = vld [vmem:[%s1 + $0x440] sm:$0xff]
        %v856 = vld [vmem:[%s1 + $0x448] sm:$0xff]
        %v857 = vld [vmem:[%s1 + $0x450] sm:$0xff]
        %v858 = vld [vmem:[%s1 + $0x458] sm:$0xff]
        %v859 = vld [vmem:[%s1 + $0x460] sm:$0xff]
        %v860 = vld [vmem:[%s1 + $0x468] sm:$0xff]
        %v861 = vld [vmem:[%s1 + $0x470] sm:$0xff]
        %v862 = vld [vmem:[%s1 + $0x478] sm:$0xff]
        %v863 = vld [vmem:[%s1 + $0x480] sm:$0xff]
        %v864 = vld [vmem:[%s1 + $0x488] sm:$0xff]
        %v865 = vld [vmem:[%s1 + $0x490] sm:$0xff]
        %v866 = vld [vmem:[%s1 + $0x498] sm:$0xff]
        %v867 = vld [vmem:[%s1 + $0x4a0] sm:$0xff]
        %v868 = vld [vmem:[%s1 + $0x4a8] sm:$0xff]
        %v869 = vld [vmem:[%s1 + $0x4b0] sm:$0xff]
        %v870 = vld [vmem:[%s1 + $0x4b8] sm:$0xff]
        %v871 = vld [vmem:[%s1 + $0x4c0] sm:$0xff]
        %v872 = vld [vmem:[%s1 + $0x4c8] sm:$0xff]
        %v873 = vld [vmem:[%s1 + $0x4d0] sm:$0xff]
        %v874 = vld [vmem:[%s1 + $0x4d8] sm:$0xff]
        %v875 = vld [vmem:[%s1 + $0x4e0] sm:$0xff]
        %v876 = vld [vmem:[%s1 + $0x4e8] sm:$0xff]
        %v877 = vld [vmem:[%s1 + $0x4f0] sm:$0xff]
        %v878 = vld [vmem:[%s1 + $0x4f8] sm:$0xff]
        %v879 = vld [vmem:[%s1 + $0x500] sm:$0xff]
        %v880 = vld [vmem:[%s1 + $0x508] sm:$0xff]
        %v881 = vld [vmem:[%s1 + $0x510] sm:$0xff]
        %v882 = vld [vmem:[%s1 + $0x518] sm:$0xff]
        %v883 = vld [vmem:[%s1 + $0x520] sm:$0xff]
        %v884 = vld [vmem:[%s1 + $0x528] sm:$0xff]
        %v885 = vld [vmem:[%s1 + $0x530] sm:$0xff]
        %v886 = vld [vmem:[%s1 + $0x538] sm:$0xff]
        %v887 = vld [vmem:[%s1 + $0x540] sm:$0xff]
        %v888 = vld [vmem:[%s1 + $0x548] sm:$0xff]
        %v889 = vld [vmem:[%s1 + $0x550] sm:$0xff]
        %v890 = vld [vmem:[%s1 + $0x558] sm:$0xff]
        %v891 = vld [vmem:[%s1 + $0x560] sm:$0xff]
        %v892 = vld [vmem:[%s1 + $0x568] sm:$0xff]
        %v893 = vld [vmem:[%s1 + $0x570] sm:$0xff]
        %v894 = vld [vmem:[%s1 + $0x578] sm:$0xff]
        %v895 = vld [vmem:[%s1 + $0x580] sm:$0xff]
        %v896 = vld [vmem:[%s1 + $0x588] sm:$0xff]
        %v897 = vld [vmem:[%s1 + $0x590] sm:$0xff]
        %v898 = vld [vmem:[%s1 + $0x598] sm:$0xff]
        %v899 = vld [vmem:[%s1 + $0x5a0] sm:$0xff]
        %v900 = vld [vmem:[%s1 + $0x5a8] sm:$0xff]
        %v901 = vld [vmem:[%s1 + $0x5b0] sm:$0xff]
        %v902 = vld [vmem:[%s1 + $0x5b8] sm:$0xff]
        %v903 = vld [vmem:[%s1 + $0x5c0] sm:$0xff]
        %v904 = vld [vmem:[%s1 + $0x5c8] sm:$0xff]
        %v905 = vld [vmem:[%s1 + $0x5d0] sm:$0xff]
        %v906 = vld [vmem:[%s1 + $0x5d8] sm:$0xff]
        %v907 = vld [vmem:[%s1 + $0x5e0] sm:$0xff]
        %v908 = vld [vmem:[%s1 + $0x5e8] sm:$0xff]
        %v909 = vld [vmem:[%s1 + $0x5f0] sm:$0xff]
        %v910 = vld [vmem:[%s1 + $0x5f8] sm:$0xff]
        %v911 = vld [vmem:[%s1 + $0x600] sm:$0xff]
        %v912 = vld [vmem:[%s1 + $0x608] sm:$0xff]
        %v913 = vld [vmem:[%s1 + $0x610] sm:$0xff]
        %v914 = vld [vmem:[%s1 + $0x618] sm:$0xff]
        %v915 = vld [vmem:[%s1 + $0x620] sm:$0xff]
        %v916 = vld [vmem:[%s1 + $0x628] sm:$0xff]
        %v917 = vld [vmem:[%s1 + $0x630] sm:$0xff]
        %v918 = vld [vmem:[%s1 + $0x638] sm:$0xff]
        %v919 = vld [vmem:[%s1 + $0x640] sm:$0xff]
        %v920 = vld [vmem:[%s1 + $0x648] sm:$0xff]
        %v921 = vld [vmem:[%s1 + $0x650] sm:$0xff]
        %v922 = vld [vmem:[%s1 + $0x658] sm:$0xff]
        %v923 = vld [vmem:[%s1 + $0x660] sm:$0xff]
        %v924 = vld [vmem:[%s1 + $0x668] sm:$0xff]
        %v925 = vld [vmem:[%s1 + $0x670] sm:$0xff]
        %v926 = vld [vmem:[%s1 + $0x678] sm:$0xff]
        %v927 = vld [vmem:[%s1 + $0x680] sm:$0xff]
        %v928 = vld [vmem:[%s1 + $0x688] sm:$0xff]
        %v929 = vld [vmem:[%s1 + $0x690] sm:$0xff]
        %v930 = vld [vmem:[%s1 + $0x698] sm:$0xff]
        %v931 = vld [vmem:[%s1 + $0x6a0] sm:$0xff]
        %v932 = vld [vmem:[%s1 + $0x6a8] sm:$0xff]
        %v933 = vld [vmem:[%s1 + $0x6b0] sm:$0xff]
        %v934 = vld [vmem:[%s1 + $0x6b8] sm:$0xff]
        %v935 = vld [vmem:[%s1 + $0x6c0] sm:$0xff]
        %v936 = vld [vmem:[%s1 + $0x6c8] sm:$0xff]
        %v937 = vld [vmem:[%s1 + $0x6d0] sm:$0xff]
        %v938 = vld [vmem:[%s1 + $0x6d8] sm:$0xff]
        %v939 = vld [vmem:[%s1 + $0x6e0] sm:$0xff]
        %v940 = vld [vmem:[%s1 + $0x6e8] sm:$0xff]
        %v941 = vld [vmem:[%s1 + $0x6f0] sm:$0xff]
        %v942 = vld [vmem:[%s1 + $0x6f8] sm:$0xff]
        %v943 = vld [vmem:[%s1 + $0x700] sm:$0xff]
        %v944 = vld [vmem:[%s1 + $0x708] sm:$0xff]
        %v945 = vld [vmem:[%s1 + $0x710] sm:$0xff]
        %v946 = vld [vmem:[%s1 + $0x718] sm:$0xff]
        %v947 = vld [vmem:[%s1 + $0x720] sm:$0xff]
        %v948 = vld [vmem:[%s1 + $0x728] sm:$0xff]
        %v949 = vld [vmem:[%s1 + $0x730] sm:$0xff]
        %v950 = vld [vmem:[%s1 + $0x738] sm:$0xff]
        %v951 = vld [vmem:[%s1 + $0x740] sm:$0xff]
        %v952 = vld [vmem:[%s1 + $0x748] sm:$0xff]
        %v953 = vld [vmem:[%s1 + $0x750] sm:$0xff]
        %v954 = vld [vmem:[%s1 + $0x758] sm:$0xff]
        %v955 = vld [vmem:[%s1 + $0x760] sm:$0xff]
        %v956 = vld [vmem:[%s1 + $0x768] sm:$0xff]
        %v957 = vld [vmem:[%s1 + $0x770] sm:$0xff]
        %v958 = vld [vmem:[%s1 + $0x778] sm:$0xff]
        %v959 = vld [vmem:[%s1 + $0x780] sm:$0xff]
        %v960 = vld [vmem:[%s1 + $0x788] sm:$0xff]
        %v961 = vld [vmem:[%s1 + $0x790] sm:$0xff]
        %v962 = vld [vmem:[%s1 + $0x798] sm:$0xff]
        %v963 = vld [vmem:[%s1 + $0x7a0] sm:$0xff]
        %v964 = vld [vmem:[%s1 + $0x7a8] sm:$0xff]
        %v965 = vld [vmem:[%s1 + $0x7b0] sm:$0xff]
        %v966 = vld [vmem:[%s1 + $0x7b8] sm:$0xff]
        %v967 = vld [vmem:[%s1 + $0x7c0] sm:$0xff]
        %v968 = vld [vmem:[%s1 + $0x7c8] sm:$0xff]
        %v969 = vld [vmem:[%s1 + $0x7d0] sm:$0xff]
        %v970 = vld [vmem:[%s1 + $0x7d8] sm:$0xff]
        %v971 = vld [vmem:[%s1 + $0x7e0] sm:$0xff]
        %v972 = vld [vmem:[%s1 + $0x7e8] sm:$0xff]
        %v973 = vld [vmem:[%s1 + $0x7f0] sm:$0xff]
        %v974 = vld [vmem:[%s1 + $0x7f8] sm:$0xff]
        %v975 = vld [vmem:[%s1 + $0x800] sm:$0xff]
        %v976 = vld [vmem:[%s1 + $0x808] sm:$0xff]
        %v977 = vld [vmem:[%s1 + $0x810] sm:$0xff]
        %v978 = vld [vmem:[%s1 + $0x818] sm:$0xff]
        %v979 = vld [vmem:[%s1 + $0x820] sm:$0xff]
        %v980 = vld [vmem:[%s1 + $0x828] sm:$0xff]
        %v981 = vld [vmem:[%s1 + $0x830] sm:$0xff]
        %v982 = vld [vmem:[%s1 + $0x838] sm:$0xff]
        %v983 = vld [vmem:[%s1 + $0x840] sm:$0xff]
        %v984 = vld [vmem:[%s1 + $0x848] sm:$0xff]
        %v985 = vld [vmem:[%s1 + $0x850] sm:$0xff]
        %v986 = vld [vmem:[%s1 + $0x858] sm:$0xff]
        %v987 = vld [vmem:[%s1 + $0x860] sm:$0xff]
        %v988 = vld [vmem:[%s1 + $0x868] sm:$0xff]
        %v989 = vld [vmem:[%s1 + $0x870] sm:$0xff]
        %v990 = vld [vmem:[%s1 + $0x878] sm:$0xff]
        %v991 = vld [vmem:[%s1 + $0x880] sm:$0xff]
        %v992 = vld [vmem:[%s1 + $0x888] sm:$0xff]
        %v993 = vld [vmem:[%s1 + $0x890] sm:$0xff]
        %v994 = vld [vmem:[%s1 + $0x898] sm:$0xff]
        %v995 = vld [vmem:[%s1 + $0x8a0] sm:$0xff]
        %v996 = vld [vmem:[%s1 + $0x8a8] sm:$0xff]
        %v997 = vld [vmem:[%s1 + $0x8b0] sm:$0xff]
        %v998 = vld [vmem:[%s1 + $0x8b8] sm:$0xff]
        %v999 = vld [vmem:[%s1 + $0x8c0] sm:$0xff]
        %v1000 = vld [vmem:[%s1 + $0x8c8] sm:$0xff]
        %v1001 = vld [vmem:[%s1 + $0x8d0] sm:$0xff]
        %v1002 = vld [vmem:[%s1 + $0x8d8] sm:$0xff]
        %v1003 = vld [vmem:[%s1 + $0x8e0] sm:$0xff]
        %v1004 = vld [vmem:[%s1 + $0x8e8] sm:$0xff]
        %v1005 = vld [vmem:[%s1 + $0x8f0] sm:$0xff]
        %v1006 = vld [vmem:[%s1 + $0x8f8] sm:$0xff]
        %v1007 = vld [vmem:[%s1 + $0x900] sm:$0xff]
        %v1008 = vld [vmem:[%s1 + $0x908] sm:$0xff]
        %v1009 = vld [vmem:[%s1 + $0x910] sm:$0xff]
        %v1010 = vld [vmem:[%s1 + $0x918] sm:$0xff]
        %v1011 = vld [vmem:[%s1 + $0x920] sm:$0xff]
        %v1012 = vld [vmem:[%s1 + $0x928] sm:$0xff]
        %v1013 = vld [vmem:[%s1 + $0x930] sm:$0xff]
        %v1014 = vld [vmem:[%s1 + $0x938] sm:$0xff]
        %v1015 = vld [vmem:[%s1 + $0x940] sm:$0xff]
        %v1016 = vld [vmem:[%s1 + $0x948] sm:$0xff]
        %v1017 = vld [vmem:[%s1 + $0x950] sm:$0xff]
        %v1018 = vld [vmem:[%s1 + $0x958] sm:$0xff]
        %v1019 = vld [vmem:[%s1 + $0x960] sm:$0xff]
        %v1020 = vld [vmem:[%s1 + $0x968] sm:$0xff]
        %v1021 = vld [vmem:[%s1 + $0x970] sm:$0xff]
        %v1022 = vld [vmem:[%s1 + $0x978] sm:$0xff]
        %v1023 = vld [vmem:[%s1 + $0x980] sm:$0xff]
        %v1024 = vld [vmem:[%s1 + $0x988] sm:$0xff]
        %v1025 = vld [vmem:[%s1 + $0x990] sm:$0xff]
        %v1026 = vld [vmem:[%s1 + $0x998] sm:$0xff]
        %v1027 = vld [vmem:[%s1 + $0x9a0] sm:$0xff]
        %v1028 = vld [vmem:[%s1 + $0x9a8] sm:$0xff]
        %v1029 = vld [vmem:[%s1 + $0x9b0] sm:$0xff]
        %v1030 = vld [vmem:[%s1 + $0x9b8] sm:$0xff]
        %v1031 = vld [vmem:[%s1 + $0x9c0] sm:$0xff]
        %v1032 = vld [vmem:[%s1 + $0x9c8] sm:$0xff]
        %v1033 = vld [vmem:[%s1 + $0x9d0] sm:$0xff]
        %v1034 = vld [vmem:[%s1 + $0x9d8] sm:$0xff]
        %v1035 = vld [vmem:[%s1 + $0x9e0] sm:$0xff]
        %v1036 = vld [vmem:[%s1 + $0x9e8] sm:$0xff]
        %v1037 = vld [vmem:[%s1 + $0x9f0] sm:$0xff]
        %v1038 = vld [vmem:[%s1 + $0x9f8] sm:$0xff]
        %v1039 = vld [vmem:[%s1 + $0xa00] sm:$0xff]
        %v1040 = vld [vmem:[%s1 + $0xa08] sm:$0xff]
        %v1041 = vld [vmem:[%s1 + $0xa10] sm:$0xff]
        %v1042 = vld [vmem:[%s1 + $0xa18] sm:$0xff]
        %v1043 = vld [vmem:[%s1 + $0xa20] sm:$0xff]
        %v1044 = vld [vmem:[%s1 + $0xa28] sm:$0xff]
        %v1045 = vld [vmem:[%s1 + $0xa30] sm:$0xff]
        %v1046 = vld [vmem:[%s1 + $0xa38] sm:$0xff]
        %v1047 = vld [vmem:[%s1 + $0xa40] sm:$0xff]
        %v1048 = vld [vmem:[%s1 + $0xa48] sm:$0xff]
        %v1049 = vld [vmem:[%s1 + $0xa50] sm:$0xff]
        %v1050 = vld [vmem:[%s1 + $0xa58] sm:$0xff]
        %v1051 = vld [vmem:[%s1 + $0xa60] sm:$0xff]
        %v1052 = vld [vmem:[%s1 + $0xa68] sm:$0xff]
        %v1053 = vld [vmem:[%s1 + $0xa70] sm:$0xff]
        %v1054 = vld [vmem:[%s1 + $0xa78] sm:$0xff]
        %v1055 = vld [vmem:[%s1 + $0xa80] sm:$0xff]
        %v1056 = vld [vmem:[%s1 + $0xa88] sm:$0xff]
        %v1057 = vld [vmem:[%s1 + $0xa90] sm:$0xff]
        %v1058 = vld [vmem:[%s1 + $0xa98] sm:$0xff]
        %v1059 = vld [vmem:[%s1 + $0xaa0] sm:$0xff]
        %v1060 = vld [vmem:[%s1 + $0xaa8] sm:$0xff]
        %v1061 = vld [vmem:[%s1 + $0xab0] sm:$0xff]
        %v1062 = vld [vmem:[%s1 + $0xab8] sm:$0xff]
        %v1063 = vld [vmem:[%s1 + $0xac0] sm:$0xff]
        %v1064 = vld [vmem:[%s1 + $0xac8] sm:$0xff]
        %v1065 = vld [vmem:[%s1 + $0xad0] sm:$0xff]
        %v1066 = vld [vmem:[%s1 + $0xad8] sm:$0xff]
        %v1067 = vld [vmem:[%s1 + $0xae0] sm:$0xff]
        %v1068 = vld [vmem:[%s1 + $0xae8] sm:$0xff]
        %v1069 = vld [vmem:[%s1 + $0xaf0] sm:$0xff]
        %v1070 = vld [vmem:[%s1 + $0xaf8] sm:$0xff]
        %v1071 = vld [vmem:[%s1 + $0xb00] sm:$0xff]
        %v1072 = vld [vmem:[%s1 + $0xb08] sm:$0xff]
        %v1073 = vld [vmem:[%s1 + $0xb10] sm:$0xff]
        %v1074 = vld [vmem:[%s1 + $0xb18] sm:$0xff]
        %v1075 = vld [vmem:[%s1 + $0xb20] sm:$0xff]
        %v1076 = vld [vmem:[%s1 + $0xb28] sm:$0xff]
        %v1077 = vld [vmem:[%s1 + $0xb30] sm:$0xff]
        %v1078 = vld [vmem:[%s1 + $0xb38] sm:$0xff]
        %v1079 = vld [vmem:[%s1 + $0xb40] sm:$0xff]
        %v1080 = vld [vmem:[%s1 + $0xb48] sm:$0xff]
        %v1081 = vld [vmem:[%s1 + $0xb50] sm:$0xff]
        %v1082 = vld [vmem:[%s1 + $0xb58] sm:$0xff]
        %v1083 = vld [vmem:[%s1 + $0xb60] sm:$0xff]
        %v1084 = vld [vmem:[%s1 + $0xb68] sm:$0xff]
        %v1085 = vld [vmem:[%s1 + $0xb70] sm:$0xff]
        %v1086 = vld [vmem:[%s1 + $0xb78] sm:$0xff]
        %v1087 = vld [vmem:[%s1 + $0xb80] sm:$0xff]
        %v1088 = vld [vmem:[%s1 + $0xb88] sm:$0xff]
        %v1089 = vld [vmem:[%s1 + $0xb90] sm:$0xff]
        %v1090 = vld [vmem:[%s1 + $0xb98] sm:$0xff]
        %v1091 = vld [vmem:[%s1 + $0xba0] sm:$0xff]
        %v1092 = vld [vmem:[%s1 + $0xba8] sm:$0xff]
        %v1093 = vld [vmem:[%s1 + $0xbb0] sm:$0xff]
        %v1094 = vld [vmem:[%s1 + $0xbb8] sm:$0xff]
        %v1095 = vld [vmem:[%s1 + $0xbc0] sm:$0xff]
        %v1096 = vld [vmem:[%s1 + $0xbc8] sm:$0xff]
        %v1097 = vld [vmem:[%s1 + $0xbd0] sm:$0xff]
        %v1098 = vld [vmem:[%s1 + $0xbd8] sm:$0xff]
        %v1099 = vld [vmem:[%s1 + $0xbe0] sm:$0xff]
        %v1100 = vld [vmem:[%s1 + $0xbe8] sm:$0xff]
        %v1101 = vld [vmem:[%s1 + $0xbf0] sm:$0xff]
        %v1102 = vld [vmem:[%s1 + $0xbf8] sm:$0xff]
        %v1103 = vld [vmem:[%s1 + $0xc00] sm:$0xff]
        %v1104 = vld [vmem:[%s1 + $0xc08] sm:$0xff]
        %v1105 = vld [vmem:[%s1 + $0xc10] sm:$0xff]
        %v1106 = vld [vmem:[%s1 + $0xc18] sm:$0xff]
        %v1107 = vld [vmem:[%s1 + $0xc20] sm:$0xff]
        %v1108 = vld [vmem:[%s1 + $0xc28] sm:$0xff]
        %v1109 = vld [vmem:[%s1 + $0xc30] sm:$0xff]
        %v1110 = vld [vmem:[%s1 + $0xc38] sm:$0xff]
        %v1111 = vld [vmem:[%s1 + $0xc40] sm:$0xff]
        %v1112 = vld [vmem:[%s1 + $0xc48] sm:$0xff]
        %v1113 = vld [vmem:[%s1 + $0xc50] sm:$0xff]
        %v1114 = vld [vmem:[%s1 + $0xc58] sm:$0xff]
        %v1115 = vld [vmem:[%s1 + $0xc60] sm:$0xff]
        %v1116 = vld [vmem:[%s1 + $0xc68] sm:$0xff]
        %v1117 = vld [vmem:[%s1 + $0xc70] sm:$0xff]
        %v1118 = vld [vmem:[%s1 + $0xc78] sm:$0xff]
        %v1119 = vld [vmem:[%s1 + $0xc80] sm:$0xff]
        %v1120 = vld [vmem:[%s1 + $0xc88] sm:$0xff]
        %v1121 = vld [vmem:[%s1 + $0xc90] sm:$0xff]
        %v1122 = vld [vmem:[%s1 + $0xc98] sm:$0xff]
        %v1123 = vld [vmem:[%s1 + $0xca0] sm:$0xff]
        %v1124 = vld [vmem:[%s1 + $0xca8] sm:$0xff]
        %v1125 = vld [vmem:[%s1 + $0xcb0] sm:$0xff]
        %v1126 = vld [vmem:[%s1 + $0xcb8] sm:$0xff]
        %v1127 = vld [vmem:[%s1 + $0xcc0] sm:$0xff]
        %v1128 = vld [vmem:[%s1 + $0xcc8] sm:$0xff]
        %v1129 = vld [vmem:[%s1 + $0xcd0] sm:$0xff]
        %v1130 = vld [vmem:[%s1 + $0xcd8] sm:$0xff]
        %v1131 = vld [vmem:[%s1 + $0xce0] sm:$0xff]
        %v1132 = vld [vmem:[%s1 + $0xce8] sm:$0xff]
        %v1133 = vld [vmem:[%s1 + $0xcf0] sm:$0xff]
        %v1134 = vld [vmem:[%s1 + $0xcf8] sm:$0xff]
        %v1135 = vld [vmem:[%s1 + $0xd00] sm:$0xff]
        %v1136 = vld [vmem:[%s1 + $0xd08] sm:$0xff]
        %v1137 = vld [vmem:[%s1 + $0xd10] sm:$0xff]
        %v1138 = vld [vmem:[%s1 + $0xd18] sm:$0xff]
        %v1139 = vld [vmem:[%s1 + $0xd20] sm:$0xff]
        %v1140 = vld [vmem:[%s1 + $0xd28] sm:$0xff]
        %v1141 = vld [vmem:[%s1 + $0xd30] sm:$0xff]
        %v1142 = vld [vmem:[%s1 + $0xd38] sm:$0xff]
        %v1143 = vld [vmem:[%s1 + $0xd40] sm:$0xff]
        %v1144 = vld [vmem:[%s1 + $0xd48] sm:$0xff]
        %v1145 = vld [vmem:[%s1 + $0xd50] sm:$0xff]
        %v1146 = vld [vmem:[%s1 + $0xd58] sm:$0xff]
        %v1147 = vld [vmem:[%s1 + $0xd60] sm:$0xff]
        %v1148 = vld [vmem:[%s1 + $0xd68] sm:$0xff]
        %v1149 = vld [vmem:[%s1 + $0xd70] sm:$0xff]
        %v1150 = vld [vmem:[%s1 + $0xd78] sm:$0xff]
        %1151 = vxpose.xlu0.b32.start [1/16] %v575, 128
        %1152 = vxpose.xlu0.b32.cont [2/16] %v576, 128
        %1153 = vxpose.xlu0.b32.cont [3/16] %v577, 128
        %1154 = vxpose.xlu0.b32.cont [4/16] %v578, 128
        %1155 = vxpose.xlu0.b32.cont [5/16] %v579, 128
        %1156 = vxpose.xlu0.b32.cont [6/16] %v580, 128
        %1157 = vxpose.xlu0.b32.cont [7/16] %v581, 128
        %1158 = vxpose.xlu0.b32.cont [8/16] %v582, 128
        %1159 = vxpose.xlu0.b32.cont [9/16] %v583, 128
        %1160 = vxpose.xlu0.b32.cont [10/16] %v584, 128
        %1161 = vxpose.xlu0.b32.cont [11/16] %v585, 128
        %1162 = vxpose.xlu0.b32.cont [12/16] %v586, 128
        %1163 = vxpose.xlu0.b32.cont [13/16] %v587, 128
        %1164 = vxpose.xlu0.b32.cont [14/16] %v588, 128
        %1165 = vxpose.xlu0.b32.cont [15/16] %v589, 128
        %1166 = vxpose.xlu0.b32.end [16/16] %v590, 128
        %v1167 = vpop.trf.xlu0
        %v1168 = vpop.trf.xlu0
        %v1169 = vpop.trf.xlu0
        %v1170 = vpop.trf.xlu0
        %v1171 = vpop.trf.xlu0
        %v1172 = vpop.trf.xlu0
        %v1173 = vpop.trf.xlu0
        %v1174 = vpop.trf.xlu0
        %v1175 = vpop.trf.xlu0
        %v1176 = vpop.trf.xlu0
        %v1177 = vpop.trf.xlu0
        %v1178 = vpop.trf.xlu0
        %v1179 = vpop.trf.xlu0
        %v1180 = vpop.trf.xlu0
        %v1181 = vpop.trf.xlu0
        %v1182 = vpop.trf.xlu0
        %1183 = vxpose.xlu0.b32.start [1/16] %v591, 128
        %1184 = vxpose.xlu0.b32.cont [2/16] %v592, 128
        %1185 = vxpose.xlu0.b32.cont [3/16] %v593, 128
        %1186 = vxpose.xlu0.b32.cont [4/16] %v594, 128
        %1187 = vxpose.xlu0.b32.cont [5/16] %v595, 128
        %1188 = vxpose.xlu0.b32.cont [6/16] %v596, 128
        %1189 = vxpose.xlu0.b32.cont [7/16] %v597, 128
        %1190 = vxpose.xlu0.b32.cont [8/16] %v598, 128
        %1191 = vxpose.xlu0.b32.cont [9/16] %v599, 128
        %1192 = vxpose.xlu0.b32.cont [10/16] %v600, 128
        %1193 = vxpose.xlu0.b32.cont [11/16] %v601, 128
        %1194 = vxpose.xlu0.b32.cont [12/16] %v602, 128
        %1195 = vxpose.xlu0.b32.cont [13/16] %v603, 128
        %1196 = vxpose.xlu0.b32.cont [14/16] %v604, 128
        %1197 = vxpose.xlu0.b32.cont [15/16] %v605, 128
        %1198 = vxpose.xlu0.b32.end [16/16] %v606, 128
        %v1199 = vpop.trf.xlu0
        %v1200 = vpop.trf.xlu0
        %v1201 = vpop.trf.xlu0
        %v1202 = vpop.trf.xlu0
        %v1203 = vpop.trf.xlu0
        %v1204 = vpop.trf.xlu0
        %v1205 = vpop.trf.xlu0
        %v1206 = vpop.trf.xlu0
        %v1207 = vpop.trf.xlu0
        %v1208 = vpop.trf.xlu0
        %v1209 = vpop.trf.xlu0
        %v1210 = vpop.trf.xlu0
        %v1211 = vpop.trf.xlu0
        %v1212 = vpop.trf.xlu0
        %v1213 = vpop.trf.xlu0
        %v1214 = vpop.trf.xlu0
        %1215 = vxpose.xlu0.b32.start [1/16] %v607, 128
        %1216 = vxpose.xlu0.b32.cont [2/16] %v608, 128
        %1217 = vxpose.xlu0.b32.cont [3/16] %v609, 128
        %1218 = vxpose.xlu0.b32.cont [4/16] %v610, 128
        %1219 = vxpose.xlu0.b32.cont [5/16] %v611, 128
        %1220 = vxpose.xlu0.b32.cont [6/16] %v612, 128
        %1221 = vxpose.xlu0.b32.cont [7/16] %v613, 128
        %1222 = vxpose.xlu0.b32.cont [8/16] %v614, 128
        %1223 = vxpose.xlu0.b32.cont [9/16] %v615, 128
        %1224 = vxpose.xlu0.b32.cont [10/16] %v616, 128
        %1225 = vxpose.xlu0.b32.cont [11/16] %v617, 128
        %1226 = vxpose.xlu0.b32.cont [12/16] %v618, 128
        %1227 = vxpose.xlu0.b32.cont [13/16] %v619, 128
        %1228 = vxpose.xlu0.b32.cont [14/16] %v620, 128
        %1229 = vxpose.xlu0.b32.cont [15/16] %v621, 128
        %1230 = vxpose.xlu0.b32.end [16/16] %v622, 128
        %v1231 = vpop.trf.xlu0
        %v1232 = vpop.trf.xlu0
        %v1233 = vpop.trf.xlu0
        %v1234 = vpop.trf.xlu0
        %v1235 = vpop.trf.xlu0
        %v1236 = vpop.trf.xlu0
        %v1237 = vpop.trf.xlu0
        %v1238 = vpop.trf.xlu0
        %v1239 = vpop.trf.xlu0
        %v1240 = vpop.trf.xlu0
        %v1241 = vpop.trf.xlu0
        %v1242 = vpop.trf.xlu0
        %v1243 = vpop.trf.xlu0
        %v1244 = vpop.trf.xlu0
        %v1245 = vpop.trf.xlu0
        %v1246 = vpop.trf.xlu0
        %1247 = vxpose.xlu0.b32.start [1/16] %v623, 128
        %1248 = vxpose.xlu0.b32.cont [2/16] %v624, 128
        %1249 = vxpose.xlu0.b32.cont [3/16] %v625, 128
        %1250 = vxpose.xlu0.b32.cont [4/16] %v626, 128
        %1251 = vxpose.xlu0.b32.cont [5/16] %v627, 128
        %1252 = vxpose.xlu0.b32.cont [6/16] %v628, 128
        %1253 = vxpose.xlu0.b32.cont [7/16] %v629, 128
        %1254 = vxpose.xlu0.b32.cont [8/16] %v630, 128
        %1255 = vxpose.xlu0.b32.cont [9/16] %v631, 128
        %1256 = vxpose.xlu0.b32.cont [10/16] %v632, 128
        %1257 = vxpose.xlu0.b32.cont [11/16] %v633, 128
        %1258 = vxpose.xlu0.b32.cont [12/16] %v634, 128
        %1259 = vxpose.xlu0.b32.cont [13/16] %v635, 128
        %1260 = vxpose.xlu0.b32.cont [14/16] %v636, 128
        %1261 = vxpose.xlu0.b32.cont [15/16] %v637, 128
        %1262 = vxpose.xlu0.b32.end [16/16] %v638, 128
        %v1263 = vpop.trf.xlu0
        %v1264 = vpop.trf.xlu0
        %v1265 = vpop.trf.xlu0
        %v1266 = vpop.trf.xlu0
        %v1267 = vpop.trf.xlu0
        %v1268 = vpop.trf.xlu0
        %v1269 = vpop.trf.xlu0
        %v1270 = vpop.trf.xlu0
        %v1271 = vpop.trf.xlu0
        %v1272 = vpop.trf.xlu0
        %v1273 = vpop.trf.xlu0
        %v1274 = vpop.trf.xlu0
        %v1275 = vpop.trf.xlu0
        %v1276 = vpop.trf.xlu0
        %v1277 = vpop.trf.xlu0
        %v1278 = vpop.trf.xlu0
        %1279 = vxpose.xlu0.b32.start [1/16] %v639, 128
        %1280 = vxpose.xlu0.b32.cont [2/16] %v640, 128
        %1281 = vxpose.xlu0.b32.cont [3/16] %v641, 128
        %1282 = vxpose.xlu0.b32.cont [4/16] %v642, 128
        %1283 = vxpose.xlu0.b32.cont [5/16] %v643, 128
        %1284 = vxpose.xlu0.b32.cont [6/16] %v644, 128
        %1285 = vxpose.xlu0.b32.cont [7/16] %v645, 128
        %1286 = vxpose.xlu0.b32.cont [8/16] %v646, 128
        %1287 = vxpose.xlu0.b32.cont [9/16] %v647, 128
        %1288 = vxpose.xlu0.b32.cont [10/16] %v648, 128
        %1289 = vxpose.xlu0.b32.cont [11/16] %v649, 128
        %1290 = vxpose.xlu0.b32.cont [12/16] %v650, 128
        %1291 = vxpose.xlu0.b32.cont [13/16] %v651, 128
        %1292 = vxpose.xlu0.b32.cont [14/16] %v652, 128
        %1293 = vxpose.xlu0.b32.cont [15/16] %v653, 128
        %1294 = vxpose.xlu0.b32.end [16/16] %v654, 128
        %v1295 = vpop.trf.xlu0
        %v1296 = vpop.trf.xlu0
        %v1297 = vpop.trf.xlu0
        %v1298 = vpop.trf.xlu0
        %v1299 = vpop.trf.xlu0
        %v1300 = vpop.trf.xlu0
        %v1301 = vpop.trf.xlu0
        %v1302 = vpop.trf.xlu0
        %v1303 = vpop.trf.xlu0
        %v1304 = vpop.trf.xlu0
        %v1305 = vpop.trf.xlu0
        %v1306 = vpop.trf.xlu0
        %v1307 = vpop.trf.xlu0
        %v1308 = vpop.trf.xlu0
        %v1309 = vpop.trf.xlu0
        %v1310 = vpop.trf.xlu0
        %1311 = vxpose.xlu0.b32.start [1/16] %v655, 128
        %1312 = vxpose.xlu0.b32.cont [2/16] %v656, 128
        %1313 = vxpose.xlu0.b32.cont [3/16] %v657, 128
        %1314 = vxpose.xlu0.b32.cont [4/16] %v658, 128
        %1315 = vxpose.xlu0.b32.cont [5/16] %v659, 128
        %1316 = vxpose.xlu0.b32.cont [6/16] %v660, 128
        %1317 = vxpose.xlu0.b32.cont [7/16] %v661, 128
        %1318 = vxpose.xlu0.b32.cont [8/16] %v662, 128
        %1319 = vxpose.xlu0.b32.cont [9/16] %v663, 128
        %1320 = vxpose.xlu0.b32.cont [10/16] %v664, 128
        %1321 = vxpose.xlu0.b32.cont [11/16] %v665, 128
        %1322 = vxpose.xlu0.b32.cont [12/16] %v666, 128
        %1323 = vxpose.xlu0.b32.cont [13/16] %v667, 128
        %1324 = vxpose.xlu0.b32.cont [14/16] %v668, 128
        %1325 = vxpose.xlu0.b32.cont [15/16] %v669, 128
        %1326 = vxpose.xlu0.b32.end [16/16] %v670, 128
        %v1327 = vpop.trf.xlu0
        %v1328 = vpop.trf.xlu0
        %v1329 = vpop.trf.xlu0
        %v1330 = vpop.trf.xlu0
        %v1331 = vpop.trf.xlu0
        %v1332 = vpop.trf.xlu0
        %v1333 = vpop.trf.xlu0
        %v1334 = vpop.trf.xlu0
        %v1335 = vpop.trf.xlu0
        %v1336 = vpop.trf.xlu0
        %v1337 = vpop.trf.xlu0
        %v1338 = vpop.trf.xlu0
        %v1339 = vpop.trf.xlu0
        %v1340 = vpop.trf.xlu0
        %v1341 = vpop.trf.xlu0
        %v1342 = vpop.trf.xlu0
        %1343 = vxpose.xlu0.b32.start [1/16] %v671, 128
        %1344 = vxpose.xlu0.b32.cont [2/16] %v672, 128
        %1345 = vxpose.xlu0.b32.cont [3/16] %v673, 128
        %1346 = vxpose.xlu0.b32.cont [4/16] %v674, 128
        %1347 = vxpose.xlu0.b32.cont [5/16] %v675, 128
        %1348 = vxpose.xlu0.b32.cont [6/16] %v676, 128
        %1349 = vxpose.xlu0.b32.cont [7/16] %v677, 128
        %1350 = vxpose.xlu0.b32.cont [8/16] %v678, 128
        %1351 = vxpose.xlu0.b32.cont [9/16] %v679, 128
        %1352 = vxpose.xlu0.b32.cont [10/16] %v680, 128
        %1353 = vxpose.xlu0.b32.cont [11/16] %v681, 128
        %1354 = vxpose.xlu0.b32.cont [12/16] %v682, 128
        %1355 = vxpose.xlu0.b32.cont [13/16] %v683, 128
        %1356 = vxpose.xlu0.b32.cont [14/16] %v684, 128
        %1357 = vxpose.xlu0.b32.cont [15/16] %v685, 128
        %1358 = vxpose.xlu0.b32.end [16/16] %v686, 128
        %v1359 = vpop.trf.xlu0
        %v1360 = vpop.trf.xlu0
        %v1361 = vpop.trf.xlu0
        %v1362 = vpop.trf.xlu0
        %v1363 = vpop.trf.xlu0
        %v1364 = vpop.trf.xlu0
        %v1365 = vpop.trf.xlu0
        %v1366 = vpop.trf.xlu0
        %v1367 = vpop.trf.xlu0
        %v1368 = vpop.trf.xlu0
        %v1369 = vpop.trf.xlu0
        %v1370 = vpop.trf.xlu0
        %v1371 = vpop.trf.xlu0
        %v1372 = vpop.trf.xlu0
        %v1373 = vpop.trf.xlu0
        %v1374 = vpop.trf.xlu0
        %1375 = vxpose.xlu0.b32.start [1/16] %v687, 128
        %1376 = vxpose.xlu0.b32.cont [2/16] %v688, 128
        %1377 = vxpose.xlu0.b32.cont [3/16] %v689, 128
        %1378 = vxpose.xlu0.b32.cont [4/16] %v690, 128
        %1379 = vxpose.xlu0.b32.cont [5/16] %v691, 128
        %1380 = vxpose.xlu0.b32.cont [6/16] %v692, 128
        %1381 = vxpose.xlu0.b32.cont [7/16] %v693, 128
        %1382 = vxpose.xlu0.b32.cont [8/16] %v694, 128
        %1383 = vxpose.xlu0.b32.cont [9/16] %v695, 128
        %1384 = vxpose.xlu0.b32.cont [10/16] %v696, 128
        %1385 = vxpose.xlu0.b32.cont [11/16] %v697, 128
        %1386 = vxpose.xlu0.b32.cont [12/16] %v698, 128
        %1387 = vxpose.xlu0.b32.cont [13/16] %v699, 128
        %1388 = vxpose.xlu0.b32.cont [14/16] %v700, 128
        %1389 = vxpose.xlu0.b32.cont [15/16] %v701, 128
        %1390 = vxpose.xlu0.b32.end [16/16] %v702, 128
        %v1391 = vpop.trf.xlu0
        %v1392 = vpop.trf.xlu0
        %v1393 = vpop.trf.xlu0
        %v1394 = vpop.trf.xlu0
        %v1395 = vpop.trf.xlu0
        %v1396 = vpop.trf.xlu0
        %v1397 = vpop.trf.xlu0
        %v1398 = vpop.trf.xlu0
        %v1399 = vpop.trf.xlu0
        %v1400 = vpop.trf.xlu0
        %v1401 = vpop.trf.xlu0
        %v1402 = vpop.trf.xlu0
        %v1403 = vpop.trf.xlu0
        %v1404 = vpop.trf.xlu0
        %v1405 = vpop.trf.xlu0
        %v1406 = vpop.trf.xlu0
        %1407 = vxpose.xlu0.b32.start [1/16] %v703, 128
        %1408 = vxpose.xlu0.b32.cont [2/16] %v704, 128
        %1409 = vxpose.xlu0.b32.cont [3/16] %v705, 128
        %1410 = vxpose.xlu0.b32.cont [4/16] %v706, 128
        %1411 = vxpose.xlu0.b32.cont [5/16] %v707, 128
        %1412 = vxpose.xlu0.b32.cont [6/16] %v708, 128
        %1413 = vxpose.xlu0.b32.cont [7/16] %v709, 128
        %1414 = vxpose.xlu0.b32.cont [8/16] %v710, 128
        %1415 = vxpose.xlu0.b32.cont [9/16] %v711, 128
        %1416 = vxpose.xlu0.b32.cont [10/16] %v712, 128
        %1417 = vxpose.xlu0.b32.cont [11/16] %v713, 128
        %1418 = vxpose.xlu0.b32.cont [12/16] %v714, 128
        %1419 = vxpose.xlu0.b32.cont [13/16] %v715, 128
        %1420 = vxpose.xlu0.b32.cont [14/16] %v716, 128
        %1421 = vxpose.xlu0.b32.cont [15/16] %v717, 128
        %1422 = vxpose.xlu0.b32.end [16/16] %v718, 128
        %v1423 = vpop.trf.xlu0
        %v1424 = vpop.trf.xlu0
        %v1425 = vpop.trf.xlu0
        %v1426 = vpop.trf.xlu0
        %v1427 = vpop.trf.xlu0
        %v1428 = vpop.trf.xlu0
        %v1429 = vpop.trf.xlu0
        %v1430 = vpop.trf.xlu0
        %v1431 = vpop.trf.xlu0
        %v1432 = vpop.trf.xlu0
        %v1433 = vpop.trf.xlu0
        %v1434 = vpop.trf.xlu0
        %v1435 = vpop.trf.xlu0
        %v1436 = vpop.trf.xlu0
        %v1437 = vpop.trf.xlu0
        %v1438 = vpop.trf.xlu0
        %1439 = vmatprep.subr.mxu0 %v720
        %1440 = vmatpush1.msra.mxu0 %v719
        %1441 = vmatprep.subr.mxu0 %v723
        %1442 = vmatpush1.msra.mxu0 %v722
        %1443 = vmatprep.subr.mxu0 %v726
        %1444 = vmatpush1.msra.mxu0 %v725
        %1445 = vmatprep.subr.mxu0 %v729
        %1446 = vmatpush1.msra.mxu0 %v728
        %1447 = vmatprep.subr.mxu0 %v732
        %1448 = vmatpush1.msra.mxu0 %v731
        %1449 = vmatprep.subr.mxu0 %v735
        %1450 = vmatpush1.msra.mxu0 %v734
        %1451 = vmatprep.subr.mxu0 %v738
        %1452 = vmatpush1.msra.mxu0 %v737
        %1453 = vmatprep.subr.mxu0 %v741
        %1454 = vmatpush1.msra.mxu0 %v740
        %1455 = vmatprep.subr.mxu0 %v744
        %1456 = vmatpush1.msra.mxu0 %v743
        %1457 = vmatprep.subr.mxu0 %v747
        %1458 = vmatpush1.msra.mxu0 %v746
        %1459 = vmatprep.subr.mxu0 %v750
        %1460 = vmatpush1.msra.mxu0 %v749
        %1461 = vmatprep.subr.mxu0 %v753
        %1462 = vmatpush1.msra.mxu0 %v752
        %1463 = vmatprep.subr.mxu0 %v756
        %1464 = vmatpush1.msra.mxu0 %v755
        %1465 = vmatprep.subr.mxu0 %v759
        %1466 = vmatpush1.msra.mxu0 %v758
        %1467 = vmatprep.subr.mxu0 %v762
        %1468 = vmatpush1.msra.mxu0 %v761
        %1469 = vmatprep.subr.mxu0 %v765
        %1470 = vmatpush1.msra.mxu0 %v764
        %1471 = vmatprep.subr.mxu0 %v768
        %1472 = vmatpush1.msra.mxu0 %v767
        %1473 = vmatprep.subr.mxu0 %v771
        %1474 = vmatpush1.msra.mxu0 %v770
        %1475 = vmatprep.subr.mxu0 %v774
        %1476 = vmatpush1.msra.mxu0 %v773
        %1477 = vmatprep.subr.mxu0 %v777
        %1478 = vmatpush1.msra.mxu0 %v776
        %1479 = vmatprep.subr.mxu0 %v780
        %1480 = vmatpush1.msra.mxu0 %v779
        %1481 = vmatprep.subr.mxu0 %v783
        %1482 = vmatpush1.msra.mxu0 %v782
        %1483 = vmatprep.subr.mxu0 %v786
        %1484 = vmatpush1.msra.mxu0 %v785
        %1485 = vmatprep.subr.mxu0 %v789
        %1486 = vmatpush1.msra.mxu0 %v788
        %1487 = vmatprep.subr.mxu0 %v792
        %1488 = vmatpush1.msra.mxu0 %v791
        %1489 = vmatprep.subr.mxu0 %v795
        %1490 = vmatpush1.msra.mxu0 %v794
        %1491 = vmatprep.subr.mxu0 %v798
        %1492 = vmatpush1.msra.mxu0 %v797
        %1493 = vmatprep.subr.mxu0 %v801
        %1494 = vmatpush1.msra.mxu0 %v800
        %1495 = vmatprep.subr.mxu0 %v804
        %1496 = vmatpush1.msra.mxu0 %v803
        %1497 = vmatprep.subr.mxu0 %v807
        %1498 = vmatpush1.msra.mxu0 %v806
        %1499 = vmatprep.subr.mxu0 %v810
        %1500 = vmatpush1.msra.mxu0 %v809
        %1501 = vmatprep.subr.mxu0 %v813
        %1502 = vmatpush1.msra.mxu0 %v812
        %1503 = vmatprep.mubr.f32.mxu0 %v1199
        %1504 = vmatmul.mubr.f32.gmra.mrb[0].mxu0 %v1167
        %v1505 = vpop.f32.mrb[0].mxu0
        %v1506 = vadd.f32 0.0, %v1505
        %v1507 = vpop.f32.mrb[0].mxu0
        %v1508 = vadd.f32 0.0, %v1507
        %1509 = vmatprep.mubr.f32.mxu0 %v1200
        %1510 = vmatmul.mubr.f32.gmra.mrb[0].mxu0 %v1168
        %v1511 = vpop.f32.mrb[0].mxu0
        %v1512 = vadd.f32 0.0, %v1511
        %v1513 = vpop.f32.mrb[0].mxu0
        %v1514 = vadd.f32 0.0, %v1513
        %1515 = vmatprep.mubr.f32.mxu0 %v1201
        %1516 = vmatmul.mubr.f32.gmra.mrb[0].mxu0 %v1169
        %v1517 = vpop.f32.mrb[0].mxu0
        %v1518 = vadd.f32 0.0, %v1517
        %v1519 = vpop.f32.mrb[0].mxu0
        %v1520 = vadd.f32 0.0, %v1519
        %1521 = vmatprep.mubr.f32.mxu0 %v1202
        %1522 = vmatmul.mubr.f32.gmra.mrb[0].mxu0 %v1170
        %v1523 = vpop.f32.mrb[0].mxu0
        %v1524 = vadd.f32 0.0, %v1523
        %v1525 = vpop.f32.mrb[0].mxu0
        %v1526 = vadd.f32 0.0, %v1525
        %1527 = vmatprep.mubr.f32.mxu0 %v1203
        %1528 = vmatmul.mubr.f32.gmra.mrb[0].mxu0 %v1171
        %v1529 = vpop.f32.mrb[0].mxu0
        %v1530 = vadd.f32 0.0, %v1529
        %v1531 = vpop.f32.mrb[0].mxu0
        %v1532 = vadd.f32 0.0, %v1531
        %1533 = vmatprep.mubr.f32.mxu0 %v1204
        %1534 = vmatmul.mubr.f32.gmra.mrb[0].mxu0 %v1172
        %v1535 = vpop.f32.mrb[0].mxu0
        %v1536 = vadd.f32 0.0, %v1535
        %v1537 = vpop.f32.mrb[0].mxu0
        %v1538 = vadd.f32 0.0, %v1537
        %1539 = vmatprep.mubr.f32.mxu0 %v1205
        %1540 = vmatmul.mubr.f32.gmra.mrb[0].mxu0 %v1173
        %v1541 = vpop.f32.mrb[0].mxu0
        %v1542 = vadd.f32 0.0, %v1541
        %v1543 = vpop.f32.mrb[0].mxu0
        %v1544 = vadd.f32 0.0, %v1543
        %1545 = vdwg.mxu0
        %1546 = vmatprep.subr.mxu0 %v816
        %1547 = vmatpush1.msra.mxu0 %v815
        %1548 = vmatprep.subr.mxu0 %v819
        %1549 = vmatpush1.msra.mxu0 %v818
        %1550 = vmatprep.subr.mxu0 %v822
        %1551 = vmatpush1.msra.mxu0 %v821
        %1552 = vmatprep.subr.mxu0 %v825
        %1553 = vmatpush1.msra.mxu0 %v824
        %1554 = vmatprep.subr.mxu0 %v828
        %1555 = vmatpush1.msra.mxu0 %v827
        %1556 = vmatprep.subr.mxu0 %v831
        %1557 = vmatpush1.msra.mxu0 %v830
        %1558 = vmatprep.subr.mxu0 %v834
        %1559 = vmatpush1.msra.mxu0 %v833
        %1560 = vmatprep.subr.mxu0 %v837
        %1561 = vmatpush1.msra.mxu0 %v836
        %1562 = vmatprep.subr.mxu0 %v840
        %1563 = vmatpush1.msra.mxu0 %v839
        %1564 = vmatprep.subr.mxu0 %v843
        %1565 = vmatpush1.msra.mxu0 %v842
        %1566 = vmatprep.subr.mxu0 %v846
        %1567 = vmatpush1.msra.mxu0 %v845
        %1568 = vmatprep.subr.mxu0 %v849
        %1569 = vmatpush1.msra.mxu0 %v848
        %1570 = vmatprep.subr.mxu0 %v852
        %1571 = vmatpush1.msra.mxu0 %v851
        %1572 = vmatprep.subr.mxu0 %v855
        %1573 = vmatpush1.msra.mxu0 %v854
        %1574 = vmatprep.subr.mxu0 %v858
        %1575 = vmatpush1.msra.mxu0 %v857
        %1576 = vmatprep.subr.mxu0 %v861
        %1577 = vmatpush1.msra.mxu0 %v860
        %1578 = vmatprep.subr.mxu0 %v864
        %1579 = vmatpush1.msra.mxu0 %v863
        %1580 = vmatprep.subr.mxu0 %v867
        %1581 = vmatpush1.msra.mxu0 %v866
        %1582 = vmatprep.subr.mxu0 %v870
        %1583 = vmatpush1.msra.mxu0 %v869
        %1584 = vmatprep.subr.mxu0 %v873
        %1585 = vmatpush1.msra.mxu0 %v872
        %1586 = vmatprep.subr.mxu0 %v876
        %1587 = vmatpush1.msra.mxu0 %v875
        %1588 = vmatprep.subr.mxu0 %v879
        %1589 = vmatpush1.msra.mxu0 %v878
        %1590 = vmatprep.subr.mxu0 %v882
        %1591 = vmatpush1.msra.mxu0 %v881
        %1592 = vmatprep.subr.mxu0 %v885
        %1593 = vmatpush1.msra.mxu0 %v884
        %1594 = vmatprep.subr.mxu0 %v888
        %1595 = vmatpush1.msra.mxu0 %v887
        %1596 = vmatprep.subr.mxu0 %v891
        %1597 = vmatpush1.msra.mxu0 %v890
        %1598 = vmatprep.subr.mxu0 %v894
        %1599 = vmatpush1.msra.mxu0 %v893
        %1600 = vmatprep.subr.mxu0 %v897
        %1601 = vmatpush1.msra.mxu0 %v896
        %1602 = vmatprep.subr.mxu0 %v900
        %1603 = vmatpush1.msra.mxu0 %v899
        %1604 = vmatprep.subr.mxu0 %v903
        %1605 = vmatpush1.msra.mxu0 %v902
        %1606 = vmatprep.subr.mxu0 %v906
        %1607 = vmatpush1.msra.mxu0 %v905
        %1608 = vmatprep.subr.mxu0 %v909
        %1609 = vmatpush1.msra.mxu0 %v908
        %1610 = vmatprep.mubr.f32.mxu0 %v1263
        %1611 = vmatmul.mubr.f32.gmra.mrb[0].mxu0 %v1231
        %v1612 = vpop.f32.mrb[0].mxu0
        %v1613 = vadd.f32 %v1506, %v1612
        %v1614 = vpop.f32.mrb[0].mxu0
        %v1615 = vadd.f32 %v1508, %v1614
        %1616 = vmatprep.mubr.f32.mxu0 %v1264
        %1617 = vmatmul.mubr.f32.gmra.mrb[0].mxu0 %v1232
        %v1618 = vpop.f32.mrb[0].mxu0
        %v1619 = vadd.f32 %v1512, %v1618
        %v1620 = vpop.f32.mrb[0].mxu0
        %v1621 = vadd.f32 %v1514, %v1620
        %1622 = vmatprep.mubr.f32.mxu0 %v1265
        %1623 = vmatmul.mubr.f32.gmra.mrb[0].mxu0 %v1233
        %v1624 = vpop.f32.mrb[0].mxu0
        %v1625 = vadd.f32 %v1518, %v1624
        %v1626 = vpop.f32.mrb[0].mxu0
        %v1627 = vadd.f32 %v1520, %v1626
        %1628 = vmatprep.mubr.f32.mxu0 %v1266
        %1629 = vmatmul.mubr.f32.gmra.mrb[0].mxu0 %v1234
        %v1630 = vpop.f32.mrb[0].mxu0
        %v1631 = vadd.f32 %v1524, %v1630
        %v1632 = vpop.f32.mrb[0].mxu0
        %v1633 = vadd.f32 %v1526, %v1632
        %1634 = vmatprep.mubr.f32.mxu0 %v1267
        %1635 = vmatmul.mubr.f32.gmra.mrb[0].mxu0 %v1235
        %v1636 = vpop.f32.mrb[0].mxu0
        %v1637 = vadd.f32 %v1530, %v1636
        %v1638 = vpop.f32.mrb[0].mxu0
        %v1639 = vadd.f32 %v1532, %v1638
        %1640 = vmatprep.mubr.f32.mxu0 %v1268
        %1641 = vmatmul.mubr.f32.gmra.mrb[0].mxu0 %v1236
        %v1642 = vpop.f32.mrb[0].mxu0
        %v1643 = vadd.f32 %v1536, %v1642
        %v1644 = vpop.f32.mrb[0].mxu0
        %v1645 = vadd.f32 %v1538, %v1644
        %1646 = vmatprep.mubr.f32.mxu0 %v1269
        %1647 = vmatmul.mubr.f32.gmra.mrb[0].mxu0 %v1237
        %v1648 = vpop.f32.mrb[0].mxu0
        %v1649 = vadd.f32 %v1542, %v1648
        %v1650 = vpop.f32.mrb[0].mxu0
        %v1651 = vadd.f32 %v1544, %v1650
        %1652 = vdwg.mxu0
        %1653 = vmatprep.subr.mxu0 %v912
        %1654 = vmatpush1.msra.mxu0 %v911
        %1655 = vmatprep.subr.mxu0 %v915
        %1656 = vmatpush1.msra.mxu0 %v914
        %1657 = vmatprep.subr.mxu0 %v918
        %1658 = vmatpush1.msra.mxu0 %v917
        %1659 = vmatprep.subr.mxu0 %v921
        %1660 = vmatpush1.msra.mxu0 %v920
        %1661 = vmatprep.subr.mxu0 %v924
        %1662 = vmatpush1.msra.mxu0 %v923
        %1663 = vmatprep.subr.mxu0 %v927
        %1664 = vmatpush1.msra.mxu0 %v926
        %1665 = vmatprep.subr.mxu0 %v930
        %1666 = vmatpush1.msra.mxu0 %v929
        %1667 = vmatprep.subr.mxu0 %v933
        %1668 = vmatpush1.msra.mxu0 %v932
        %1669 = vmatprep.subr.mxu0 %v936
        %1670 = vmatpush1.msra.mxu0 %v935
        %1671 = vmatprep.subr.mxu0 %v939
        %1672 = vmatpush1.msra.mxu0 %v938
        %1673 = vmatprep.subr.mxu0 %v942
        %1674 = vmatpush1.msra.mxu0 %v941
        %1675 = vmatprep.subr.mxu0 %v945
        %1676 = vmatpush1.msra.mxu0 %v944
        %1677 = vmatprep.subr.mxu0 %v948
        %1678 = vmatpush1.msra.mxu0 %v947
        %1679 = vmatprep.subr.mxu0 %v951
        %1680 = vmatpush1.msra.mxu0 %v950
        %1681 = vmatprep.subr.mxu0 %v954
        %1682 = vmatpush1.msra.mxu0 %v953
        %1683 = vmatprep.subr.mxu0 %v957
        %1684 = vmatpush1.msra.mxu0 %v956
        %1685 = vmatprep.subr.mxu0 %v960
        %1686 = vmatpush1.msra.mxu0 %v959
        %1687 = vmatprep.subr.mxu0 %v963
        %1688 = vmatpush1.msra.mxu0 %v962
        %1689 = vmatprep.subr.mxu0 %v966
        %1690 = vmatpush1.msra.mxu0 %v965
        %1691 = vmatprep.subr.mxu0 %v969
        %1692 = vmatpush1.msra.mxu0 %v968
        %1693 = vmatprep.subr.mxu0 %v972
        %1694 = vmatpush1.msra.mxu0 %v971
        %1695 = vmatprep.subr.mxu0 %v975
        %1696 = vmatpush1.msra.mxu0 %v974
        %1697 = vmatprep.subr.mxu0 %v978
        %1698 = vmatpush1.msra.mxu0 %v977
        %1699 = vmatprep.subr.mxu0 %v981
        %1700 = vmatpush1.msra.mxu0 %v980
        %1701 = vmatprep.subr.mxu0 %v984
        %1702 = vmatpush1.msra.mxu0 %v983
        %1703 = vmatprep.subr.mxu0 %v987
        %1704 = vmatpush1.msra.mxu0 %v986
        %1705 = vmatprep.subr.mxu0 %v990
        %1706 = vmatpush1.msra.mxu0 %v989
        %1707 = vmatprep.subr.mxu0 %v993
        %1708 = vmatpush1.msra.mxu0 %v992
        %1709 = vmatprep.subr.mxu0 %v996
        %1710 = vmatpush1.msra.mxu0 %v995
        %1711 = vmatprep.subr.mxu0 %v999
        %1712 = vmatpush1.msra.mxu0 %v998
        %1713 = vmatprep.subr.mxu0 %v1002
        %1714 = vmatpush1.msra.mxu0 %v1001
        %1715 = vmatprep.subr.mxu0 %v1005
        %1716 = vmatpush1.msra.mxu0 %v1004
        %1717 = vmatprep.mubr.f32.mxu0 %v1327
        %1718 = vmatmul.mubr.f32.gmra.mrb[0].mxu0 %v1295
        %v1719 = vpop.f32.mrb[0].mxu0
        %v1720 = vadd.f32 %v1613, %v1719
        %v1721 = vpop.f32.mrb[0].mxu0
        %v1722 = vadd.f32 %v1615, %v1721
        %1723 = vmatprep.mubr.f32.mxu0 %v1328
        %1724 = vmatmul.mubr.f32.gmra.mrb[0].mxu0 %v1296
        %v1725 = vpop.f32.mrb[0].mxu0
        %v1726 = vadd.f32 %v1619, %v1725
        %v1727 = vpop.f32.mrb[0].mxu0
        %v1728 = vadd.f32 %v1621, %v1727
        %1729 = vmatprep.mubr.f32.mxu0 %v1329
        %1730 = vmatmul.mubr.f32.gmra.mrb[0].mxu0 %v1297
        %v1731 = vpop.f32.mrb[0].mxu0
        %v1732 = vadd.f32 %v1625, %v1731
        %v1733 = vpop.f32.mrb[0].mxu0
        %v1734 = vadd.f32 %v1627, %v1733
        %1735 = vmatprep.mubr.f32.mxu0 %v1330
        %1736 = vmatmul.mubr.f32.gmra.mrb[0].mxu0 %v1298
        %v1737 = vpop.f32.mrb[0].mxu0
        %v1738 = vadd.f32 %v1631, %v1737
        %v1739 = vpop.f32.mrb[0].mxu0
        %v1740 = vadd.f32 %v1633, %v1739
        %1741 = vmatprep.mubr.f32.mxu0 %v1331
        %1742 = vmatmul.mubr.f32.gmra.mrb[0].mxu0 %v1299
        %v1743 = vpop.f32.mrb[0].mxu0
        %v1744 = vadd.f32 %v1637, %v1743
        %v1745 = vpop.f32.mrb[0].mxu0
        %v1746 = vadd.f32 %v1639, %v1745
        %1747 = vmatprep.mubr.f32.mxu0 %v1332
        %1748 = vmatmul.mubr.f32.gmra.mrb[0].mxu0 %v1300
        %v1749 = vpop.f32.mrb[0].mxu0
        %v1750 = vadd.f32 %v1643, %v1749
        %v1751 = vpop.f32.mrb[0].mxu0
        %v1752 = vadd.f32 %v1645, %v1751
        %1753 = vmatprep.mubr.f32.mxu0 %v1333
        %1754 = vmatmul.mubr.f32.gmra.mrb[0].mxu0 %v1301
        %v1755 = vpop.f32.mrb[0].mxu0
        %v1756 = vadd.f32 %v1649, %v1755
        %v1757 = vpop.f32.mrb[0].mxu0
        %v1758 = vadd.f32 %v1651, %v1757
        %1759 = vdwg.mxu0
        %1760 = vmatprep.subr.mxu0 %v1008
        %1761 = vmatpush1.msra.mxu0 %v1007
        %1762 = vmatprep.subr.mxu0 %v1011
        %1763 = vmatpush1.msra.mxu0 %v1010
        %1764 = vmatprep.subr.mxu0 %v1014
        %1765 = vmatpush1.msra.mxu0 %v1013
        %1766 = vmatprep.subr.mxu0 %v1017
        %1767 = vmatpush1.msra.mxu0 %v1016
        %1768 = vmatprep.subr.mxu0 %v1020
        %1769 = vmatpush1.msra.mxu0 %v1019
        %1770 = vmatprep.subr.mxu0 %v1023
        %1771 = vmatpush1.msra.mxu0 %v1022
        %1772 = vmatprep.subr.mxu0 %v1026
        %1773 = vmatpush1.msra.mxu0 %v1025
        %1774 = vmatprep.subr.mxu0 %v1029
        %1775 = vmatpush1.msra.mxu0 %v1028
        %1776 = vmatprep.subr.mxu0 %v1032
        %1777 = vmatpush1.msra.mxu0 %v1031
        %1778 = vmatprep.subr.mxu0 %v1035
        %1779 = vmatpush1.msra.mxu0 %v1034
        %1780 = vmatprep.subr.mxu0 %v1038
        %1781 = vmatpush1.msra.mxu0 %v1037
        %1782 = vmatprep.subr.mxu0 %v1041
        %1783 = vmatpush1.msra.mxu0 %v1040
        %1784 = vmatprep.subr.mxu0 %v1044
        %1785 = vmatpush1.msra.mxu0 %v1043
        %1786 = vmatprep.subr.mxu0 %v1047
        %1787 = vmatpush1.msra.mxu0 %v1046
        %1788 = vmatprep.subr.mxu0 %v1050
        %1789 = vmatpush1.msra.mxu0 %v1049
        %1790 = vmatprep.subr.mxu0 %v1053
        %1791 = vmatpush1.msra.mxu0 %v1052
        %1792 = vmatprep.subr.mxu0 %v1056
        %1793 = vmatpush1.msra.mxu0 %v1055
        %1794 = vmatprep.subr.mxu0 %v1059
        %1795 = vmatpush1.msra.mxu0 %v1058
        %1796 = vmatprep.subr.mxu0 %v1062
        %1797 = vmatpush1.msra.mxu0 %v1061
        %1798 = vmatprep.subr.mxu0 %v1065
        %1799 = vmatpush1.msra.mxu0 %v1064
        %1800 = vmatprep.subr.mxu0 %v1068
        %1801 = vmatpush1.msra.mxu0 %v1067
        %1802 = vmatprep.subr.mxu0 %v1071
        %1803 = vmatpush1.msra.mxu0 %v1070
        %1804 = vmatprep.subr.mxu0 %v1074
        %1805 = vmatpush1.msra.mxu0 %v1073
        %1806 = vmatprep.subr.mxu0 %v1077
        %1807 = vmatpush1.msra.mxu0 %v1076
        %1808 = vmatprep.subr.mxu0 %v1080
        %1809 = vmatpush1.msra.mxu0 %v1079
        %1810 = vmatprep.subr.mxu0 %v1083
        %1811 = vmatpush1.msra.mxu0 %v1082
        %1812 = vmatprep.subr.mxu0 %v1086
        %1813 = vmatpush1.msra.mxu0 %v1085
        %1814 = vmatprep.subr.mxu0 %v1089
        %1815 = vmatpush1.msra.mxu0 %v1088
        %1816 = vmatprep.subr.mxu0 %v1092
        %1817 = vmatpush1.msra.mxu0 %v1091
        %1818 = vmatprep.subr.mxu0 %v1095
        %1819 = vmatpush1.msra.mxu0 %v1094
        %1820 = vmatprep.subr.mxu0 %v1098
        %1821 = vmatpush1.msra.mxu0 %v1097
        %1822 = vmatprep.subr.mxu0 %v1101
        %1823 = vmatpush1.msra.mxu0 %v1100
        %1824 = vmatprep.mubr.f32.mxu0 %v1391
        %1825 = vmatmul.mubr.f32.gmra.mrb[0].mxu0 %v1359
        %v1826 = vpop.f32.mrb[0].mxu0
        %v1827 = vadd.f32 %v1720, %v1826
        %v1828 = vpop.f32.mrb[0].mxu0
        %v1829 = vadd.f32 %v1722, %v1828
        %1830 = vmatprep.mubr.f32.mxu0 %v1392
        %1831 = vmatmul.mubr.f32.gmra.mrb[0].mxu0 %v1360
        %v1832 = vpop.f32.mrb[0].mxu0
        %v1833 = vadd.f32 %v1726, %v1832
        %v1834 = vpop.f32.mrb[0].mxu0
        %v1835 = vadd.f32 %v1728, %v1834
        %1836 = vmatprep.mubr.f32.mxu0 %v1393
        %1837 = vmatmul.mubr.f32.gmra.mrb[0].mxu0 %v1361
        %v1838 = vpop.f32.mrb[0].mxu0
        %v1839 = vadd.f32 %v1732, %v1838
        %v1840 = vpop.f32.mrb[0].mxu0
        %v1841 = vadd.f32 %v1734, %v1840
        %1842 = vmatprep.mubr.f32.mxu0 %v1394
        %1843 = vmatmul.mubr.f32.gmra.mrb[0].mxu0 %v1362
        %v1844 = vpop.f32.mrb[0].mxu0
        %v1845 = vadd.f32 %v1738, %v1844
        %v1846 = vpop.f32.mrb[0].mxu0
        %v1847 = vadd.f32 %v1740, %v1846
        %1848 = vmatprep.mubr.f32.mxu0 %v1395
        %1849 = vmatmul.mubr.f32.gmra.mrb[0].mxu0 %v1363
        %v1850 = vpop.f32.mrb[0].mxu0
        %v1851 = vadd.f32 %v1744, %v1850
        %v1852 = vpop.f32.mrb[0].mxu0
        %v1853 = vadd.f32 %v1746, %v1852
        %1854 = vmatprep.mubr.f32.mxu0 %v1396
        %1855 = vmatmul.mubr.f32.gmra.mrb[0].mxu0 %v1364
        %v1856 = vpop.f32.mrb[0].mxu0
        %v1857 = vadd.f32 %v1750, %v1856
        %v1858 = vpop.f32.mrb[0].mxu0
        %v1859 = vadd.f32 %v1752, %v1858
        %1860 = vmatprep.mubr.f32.mxu0 %v1397
        %1861 = vmatmul.mubr.f32.gmra.mrb[0].mxu0 %v1365
        %v1862 = vpop.f32.mrb[0].mxu0
        %v1863 = vadd.f32 %v1756, %v1862
        %v1864 = vpop.f32.mrb[0].mxu0
        %v1865 = vadd.f32 %v1758, %v1864
        %1866 = vdwg.mxu0
        %1867 = vmatprep.subr.mxu0 %v1104
        %1868 = vmatpush1.msra.mxu0 %v1103
        %1869 = vmatprep.subr.mxu0 %v1107
        %1870 = vmatpush1.msra.mxu0 %v1106
        %1871 = vmatprep.subr.mxu0 %v1110
        %1872 = vmatpush1.msra.mxu0 %v1109
        %1873 = vmatprep.subr.mxu0 %v1113
        %1874 = vmatpush1.msra.mxu0 %v1112
        %1875 = vmatprep.subr.mxu0 %v1116
        %1876 = vmatpush1.msra.mxu0 %v1115
        %1877 = vmatprep.subr.mxu0 %v1119
        %1878 = vmatpush1.msra.mxu0 %v1118
        %1879 = vmatprep.subr.mxu0 %v1122
        %1880 = vmatpush1.msra.mxu0 %v1121
        %1881 = vmatprep.subr.mxu0 %v1125
        %1882 = vmatpush1.msra.mxu0 %v1124
        %1883 = vmatprep.subr.mxu0 %v1128
        %1884 = vmatpush1.msra.mxu0 %v1127
        %1885 = vmatprep.subr.mxu0 %v1131
        %1886 = vmatpush1.msra.mxu0 %v1130
        %1887 = vmatprep.subr.mxu0 %v1134
        %1888 = vmatpush1.msra.mxu0 %v1133
        %1889 = vmatprep.subr.mxu0 %v1137
        %1890 = vmatpush1.msra.mxu0 %v1136
        %1891 = vmatprep.subr.mxu0 %v1140
        %1892 = vmatpush1.msra.mxu0 %v1139
        %1893 = vmatprep.subr.mxu0 %v1143
        %1894 = vmatpush1.msra.mxu0 %v1142
        %1895 = vmatprep.subr.mxu0 %v1146
        %1896 = vmatpush1.msra.mxu0 %v1145
        %1897 = vmatprep.subr.mxu0 %v1149
        %1898 = vmatpush1.msra.mxu0 %v1148
        %1899 = vmatprep.subr.mxu0 0.0
        %1900 = vmatpush1.msra.mxu0 0.0
        %1901 = vmatprep.subr.mxu0 0.0
        %1902 = vmatpush1.msra.mxu0 0.0
        %1903 = vmatprep.subr.mxu0 0.0
        %1904 = vmatpush1.msra.mxu0 0.0
        %1905 = vmatprep.subr.mxu0 0.0
        %1906 = vmatpush1.msra.mxu0 0.0
        %1907 = vmatprep.subr.mxu0 0.0
        %1908 = vmatpush1.msra.mxu0 0.0
        %1909 = vmatprep.subr.mxu0 0.0
        %1910 = vmatpush1.msra.mxu0 0.0
        %1911 = vmatprep.subr.mxu0 0.0
        %1912 = vmatpush1.msra.mxu0 0.0
        %1913 = vmatprep.subr.mxu0 0.0
        %1914 = vmatpush1.msra.mxu0 0.0
        %1915 = vmatprep.subr.mxu0 0.0
        %1916 = vmatpush1.msra.mxu0 0.0
        %1917 = vmatprep.subr.mxu0 0.0
        %1918 = vmatpush1.msra.mxu0 0.0
        %1919 = vmatprep.subr.mxu0 0.0
        %1920 = vmatpush1.msra.mxu0 0.0
        %1921 = vmatprep.subr.mxu0 0.0
        %1922 = vmatpush1.msra.mxu0 0.0
        %1923 = vmatprep.subr.mxu0 0.0
        %1924 = vmatpush1.msra.mxu0 0.0
        %1925 = vmatprep.subr.mxu0 0.0
        %1926 = vmatpush1.msra.mxu0 0.0
        %1927 = vmatprep.subr.mxu0 0.0
        %1928 = vmatpush1.msra.mxu0 0.0
        %1929 = vmatprep.subr.mxu0 0.0
        %1930 = vmatpush1.msra.mxu0 0.0
        %1931 = vmatprep.mubr.f32.mxu0 0.0
        %1932 = vmatmul.mubr.f32.gmra.mrb[0].mxu0 %v1423
        %v1933 = vpop.f32.mrb[0].mxu0
        %v1934 = vadd.f32 %v1827, %v1933
        %v1935 = vpop.f32.mrb[0].mxu0
        %v1936 = vadd.f32 %v1829, %v1935
        %1937 = vmatprep.mubr.f32.mxu0 0.0
        %1938 = vmatmul.mubr.f32.gmra.mrb[0].mxu0 %v1424
        %v1939 = vpop.f32.mrb[0].mxu0
        %v1940 = vadd.f32 %v1833, %v1939
        %v1941 = vpop.f32.mrb[0].mxu0
        %v1942 = vadd.f32 %v1835, %v1941
        %1943 = vmatprep.mubr.f32.mxu0 0.0
        %1944 = vmatmul.mubr.f32.gmra.mrb[0].mxu0 %v1425
        %v1945 = vpop.f32.mrb[0].mxu0
        %v1946 = vadd.f32 %v1839, %v1945
        %v1947 = vpop.f32.mrb[0].mxu0
        %v1948 = vadd.f32 %v1841, %v1947
        %1949 = vmatprep.mubr.f32.mxu0 0.0
        %1950 = vmatmul.mubr.f32.gmra.mrb[0].mxu0 %v1426
        %v1951 = vpop.f32.mrb[0].mxu0
        %v1952 = vadd.f32 %v1845, %v1951
        %v1953 = vpop.f32.mrb[0].mxu0
        %v1954 = vadd.f32 %v1847, %v1953
        %1955 = vmatprep.mubr.f32.mxu0 0.0
        %1956 = vmatmul.mubr.f32.gmra.mrb[0].mxu0 %v1427
        %v1957 = vpop.f32.mrb[0].mxu0
        %v1958 = vadd.f32 %v1851, %v1957
        %v1959 = vpop.f32.mrb[0].mxu0
        %v1960 = vadd.f32 %v1853, %v1959
        %1961 = vmatprep.mubr.f32.mxu0 0.0
        %1962 = vmatmul.mubr.f32.gmra.mrb[0].mxu0 %v1428
        %v1963 = vpop.f32.mrb[0].mxu0
        %v1964 = vadd.f32 %v1857, %v1963
        %v1965 = vpop.f32.mrb[0].mxu0
        %v1966 = vadd.f32 %v1859, %v1965
        %1967 = vmatprep.mubr.f32.mxu0 0.0
        %1968 = vmatmul.mubr.f32.gmra.mrb[0].mxu0 %v1429
        %v1969 = vpop.f32.mrb[0].mxu0
        %v1970 = vadd.f32 %v1863, %v1969
        %v1971 = vpop.f32.mrb[0].mxu0
        %v1972 = vadd.f32 %v1865, %v1971
        %1973 = vdwg.mxu0
        %1974 = vmatprep.subr.mxu0 0.0
        %1975 = vmatpush1.msra.mxu0 %v721
        %1976 = vmatprep.subr.mxu0 0.0
        %1977 = vmatpush1.msra.mxu0 %v724
        %1978 = vmatprep.subr.mxu0 0.0
        %1979 = vmatpush1.msra.mxu0 %v727
        %1980 = vmatprep.subr.mxu0 0.0
        %1981 = vmatpush1.msra.mxu0 %v730
        %1982 = vmatprep.subr.mxu0 0.0
        %1983 = vmatpush1.msra.mxu0 %v733
        %1984 = vmatprep.subr.mxu0 0.0
        %1985 = vmatpush1.msra.mxu0 %v736
        %1986 = vmatprep.subr.mxu0 0.0
        %1987 = vmatpush1.msra.mxu0 %v739
        %1988 = vmatprep.subr.mxu0 0.0
        %1989 = vmatpush1.msra.mxu0 %v742
        %1990 = vmatprep.subr.mxu0 0.0
        %1991 = vmatpush1.msra.mxu0 %v745
        %1992 = vmatprep.subr.mxu0 0.0
        %1993 = vmatpush1.msra.mxu0 %v748
        %1994 = vmatprep.subr.mxu0 0.0
        %1995 = vmatpush1.msra.mxu0 %v751
        %1996 = vmatprep.subr.mxu0 0.0
        %1997 = vmatpush1.msra.mxu0 %v754
        %1998 = vmatprep.subr.mxu0 0.0
        %1999 = vmatpush1.msra.mxu0 %v757
        %2000 = vmatprep.subr.mxu0 0.0
        %2001 = vmatpush1.msra.mxu0 %v760
        %2002 = vmatprep.subr.mxu0 0.0
        %2003 = vmatpush1.msra.mxu0 %v763
        %2004 = vmatprep.subr.mxu0 0.0
        %2005 = vmatpush1.msra.mxu0 %v766
        %2006 = vmatprep.subr.mxu0 0.0
        %2007 = vmatpush1.msra.mxu0 %v769
        %2008 = vmatprep.subr.mxu0 0.0
        %2009 = vmatpush1.msra.mxu0 %v772
        %2010 = vmatprep.subr.mxu0 0.0
        %2011 = vmatpush1.msra.mxu0 %v775
        %2012 = vmatprep.subr.mxu0 0.0
        %2013 = vmatpush1.msra.mxu0 %v778
        %2014 = vmatprep.subr.mxu0 0.0
        %2015 = vmatpush1.msra.mxu0 %v781
        %2016 = vmatprep.subr.mxu0 0.0
        %2017 = vmatpush1.msra.mxu0 %v784
        %2018 = vmatprep.subr.mxu0 0.0
        %2019 = vmatpush1.msra.mxu0 %v787
        %2020 = vmatprep.subr.mxu0 0.0
        %2021 = vmatpush1.msra.mxu0 %v790
        %2022 = vmatprep.subr.mxu0 0.0
        %2023 = vmatpush1.msra.mxu0 %v793
        %2024 = vmatprep.subr.mxu0 0.0
        %2025 = vmatpush1.msra.mxu0 %v796
        %2026 = vmatprep.subr.mxu0 0.0
        %2027 = vmatpush1.msra.mxu0 %v799
        %2028 = vmatprep.subr.mxu0 0.0
        %2029 = vmatpush1.msra.mxu0 %v802
        %2030 = vmatprep.subr.mxu0 0.0
        %2031 = vmatpush1.msra.mxu0 %v805
        %2032 = vmatprep.subr.mxu0 0.0
        %2033 = vmatpush1.msra.mxu0 %v808
        %2034 = vmatprep.subr.mxu0 0.0
        %2035 = vmatpush1.msra.mxu0 %v811
        %2036 = vmatprep.subr.mxu0 0.0
        %2037 = vmatpush1.msra.mxu0 %v814
        %2038 = vmatprep.mubr.f32.mxu0 %v1199
        %2039 = vmatmul.mubr.f32.gmra.mrb[0].mxu0 %v1167
        %v2040 = vpop.f32.mrb[0].mxu0
        %v2041 = vadd.f32 0.0, %v2040
        %v2042 = vpop.f32.mrb[0].mxu0
        %2043 = vmatprep.mubr.f32.mxu0 %v1200
        %2044 = vmatmul.mubr.f32.gmra.mrb[0].mxu0 %v1168
        %v2045 = vpop.f32.mrb[0].mxu0
        %v2046 = vadd.f32 0.0, %v2045
        %v2047 = vpop.f32.mrb[0].mxu0
        %2048 = vmatprep.mubr.f32.mxu0 %v1201
        %2049 = vmatmul.mubr.f32.gmra.mrb[0].mxu0 %v1169
        %v2050 = vpop.f32.mrb[0].mxu0
        %v2051 = vadd.f32 0.0, %v2050
        %v2052 = vpop.f32.mrb[0].mxu0
        %2053 = vmatprep.mubr.f32.mxu0 %v1202
        %2054 = vmatmul.mubr.f32.gmra.mrb[0].mxu0 %v1170
        %v2055 = vpop.f32.mrb[0].mxu0
        %v2056 = vadd.f32 0.0, %v2055
        %v2057 = vpop.f32.mrb[0].mxu0
        %2058 = vmatprep.mubr.f32.mxu0 %v1203
        %2059 = vmatmul.mubr.f32.gmra.mrb[0].mxu0 %v1171
        %v2060 = vpop.f32.mrb[0].mxu0
        %v2061 = vadd.f32 0.0, %v2060
        %v2062 = vpop.f32.mrb[0].mxu0
        %2063 = vmatprep.mubr.f32.mxu0 %v1204
        %2064 = vmatmul.mubr.f32.gmra.mrb[0].mxu0 %v1172
        %v2065 = vpop.f32.mrb[0].mxu0
        %v2066 = vadd.f32 0.0, %v2065
        %v2067 = vpop.f32.mrb[0].mxu0
        %2068 = vmatprep.mubr.f32.mxu0 %v1205
        %2069 = vmatmul.mubr.f32.gmra.mrb[0].mxu0 %v1173
        %v2070 = vpop.f32.mrb[0].mxu0
        %v2071 = vadd.f32 0.0, %v2070
        %v2072 = vpop.f32.mrb[0].mxu0
        %2073 = vdwg.mxu0
        %2074 = vmatprep.subr.mxu0 0.0
        %2075 = vmatpush1.msra.mxu0 %v817
        %2076 = vmatprep.subr.mxu0 0.0
        %2077 = vmatpush1.msra.mxu0 %v820
        %2078 = vmatprep.subr.mxu0 0.0
        %2079 = vmatpush1.msra.mxu0 %v823
        %2080 = vmatprep.subr.mxu0 0.0
        %2081 = vmatpush1.msra.mxu0 %v826
        %2082 = vmatprep.subr.mxu0 0.0
        %2083 = vmatpush1.msra.mxu0 %v829
        %2084 = vmatprep.subr.mxu0 0.0
        %2085 = vmatpush1.msra.mxu0 %v832
        %2086 = vmatprep.subr.mxu0 0.0
        %2087 = vmatpush1.msra.mxu0 %v835
        %2088 = vmatprep.subr.mxu0 0.0
        %2089 = vmatpush1.msra.mxu0 %v838
        %2090 = vmatprep.subr.mxu0 0.0
        %2091 = vmatpush1.msra.mxu0 %v841
        %2092 = vmatprep.subr.mxu0 0.0
        %2093 = vmatpush1.msra.mxu0 %v844
        %2094 = vmatprep.subr.mxu0 0.0
        %2095 = vmatpush1.msra.mxu0 %v847
        %2096 = vmatprep.subr.mxu0 0.0
        %2097 = vmatpush1.msra.mxu0 %v850
        %2098 = vmatprep.subr.mxu0 0.0
        %2099 = vmatpush1.msra.mxu0 %v853
        %2100 = vmatprep.subr.mxu0 0.0
        %2101 = vmatpush1.msra.mxu0 %v856
        %2102 = vmatprep.subr.mxu0 0.0
        %2103 = vmatpush1.msra.mxu0 %v859
        %2104 = vmatprep.subr.mxu0 0.0
        %2105 = vmatpush1.msra.mxu0 %v862
        %2106 = vmatprep.subr.mxu0 0.0
        %2107 = vmatpush1.msra.mxu0 %v865
        %2108 = vmatprep.subr.mxu0 0.0
        %2109 = vmatpush1.msra.mxu0 %v868
        %2110 = vmatprep.subr.mxu0 0.0
        %2111 = vmatpush1.msra.mxu0 %v871
        %2112 = vmatprep.subr.mxu0 0.0
        %2113 = vmatpush1.msra.mxu0 %v874
        %2114 = vmatprep.subr.mxu0 0.0
        %2115 = vmatpush1.msra.mxu0 %v877
        %2116 = vmatprep.subr.mxu0 0.0
        %2117 = vmatpush1.msra.mxu0 %v880
        %2118 = vmatprep.subr.mxu0 0.0
        %2119 = vmatpush1.msra.mxu0 %v883
        %2120 = vmatprep.subr.mxu0 0.0
        %2121 = vmatpush1.msra.mxu0 %v886
        %2122 = vmatprep.subr.mxu0 0.0
        %2123 = vmatpush1.msra.mxu0 %v889
        %2124 = vmatprep.subr.mxu0 0.0
        %2125 = vmatpush1.msra.mxu0 %v892
        %2126 = vmatprep.subr.mxu0 0.0
        %2127 = vmatpush1.msra.mxu0 %v895
        %2128 = vmatprep.subr.mxu0 0.0
        %2129 = vmatpush1.msra.mxu0 %v898
        %2130 = vmatprep.subr.mxu0 0.0
        %2131 = vmatpush1.msra.mxu0 %v901
        %2132 = vmatprep.subr.mxu0 0.0
        %2133 = vmatpush1.msra.mxu0 %v904
        %2134 = vmatprep.subr.mxu0 0.0
        %2135 = vmatpush1.msra.mxu0 %v907
        %2136 = vmatprep.subr.mxu0 0.0
        %2137 = vmatpush1.msra.mxu0 %v910
        %2138 = vmatprep.mubr.f32.mxu0 %v1263
        %2139 = vmatmul.mubr.f32.gmra.mrb[0].mxu0 %v1231
        %v2140 = vpop.f32.mrb[0].mxu0
        %v2141 = vadd.f32 %v2041, %v2140
        %v2142 = vpop.f32.mrb[0].mxu0
        %2143 = vmatprep.mubr.f32.mxu0 %v1264
        %2144 = vmatmul.mubr.f32.gmra.mrb[0].mxu0 %v1232
        %v2145 = vpop.f32.mrb[0].mxu0
        %v2146 = vadd.f32 %v2046, %v2145
        %v2147 = vpop.f32.mrb[0].mxu0
        %2148 = vmatprep.mubr.f32.mxu0 %v1265
        %2149 = vmatmul.mubr.f32.gmra.mrb[0].mxu0 %v1233
        %v2150 = vpop.f32.mrb[0].mxu0
        %v2151 = vadd.f32 %v2051, %v2150
        %v2152 = vpop.f32.mrb[0].mxu0
        %2153 = vmatprep.mubr.f32.mxu0 %v1266
        %2154 = vmatmul.mubr.f32.gmra.mrb[0].mxu0 %v1234
        %v2155 = vpop.f32.mrb[0].mxu0
        %v2156 = vadd.f32 %v2056, %v2155
        %v2157 = vpop.f32.mrb[0].mxu0
        %2158 = vmatprep.mubr.f32.mxu0 %v1267
        %2159 = vmatmul.mubr.f32.gmra.mrb[0].mxu0 %v1235
        %v2160 = vpop.f32.mrb[0].mxu0
        %v2161 = vadd.f32 %v2061, %v2160
        %v2162 = vpop.f32.mrb[0].mxu0
        %2163 = vmatprep.mubr.f32.mxu0 %v1268
        %2164 = vmatmul.mubr.f32.gmra.mrb[0].mxu0 %v1236
        %v2165 = vpop.f32.mrb[0].mxu0
        %v2166 = vadd.f32 %v2066, %v2165
        %v2167 = vpop.f32.mrb[0].mxu0
        %2168 = vmatprep.mubr.f32.mxu0 %v1269
        %2169 = vmatmul.mubr.f32.gmra.mrb[0].mxu0 %v1237
        %v2170 = vpop.f32.mrb[0].mxu0
        %v2171 = vadd.f32 %v2071, %v2170
        %v2172 = vpop.f32.mrb[0].mxu0
        %2173 = vdwg.mxu0
        %2174 = vmatprep.subr.mxu0 0.0
        %2175 = vmatpush1.msra.mxu0 %v913
        %2176 = vmatprep.subr.mxu0 0.0
        %2177 = vmatpush1.msra.mxu0 %v916
        %2178 = vmatprep.subr.mxu0 0.0
        %2179 = vmatpush1.msra.mxu0 %v919
        %2180 = vmatprep.subr.mxu0 0.0
        %2181 = vmatpush1.msra.mxu0 %v922
        %2182 = vmatprep.subr.mxu0 0.0
        %2183 = vmatpush1.msra.mxu0 %v925
        %2184 = vmatprep.subr.mxu0 0.0
        %2185 = vmatpush1.msra.mxu0 %v928
        %2186 = vmatprep.subr.mxu0 0.0
        %2187 = vmatpush1.msra.mxu0 %v931
        %2188 = vmatprep.subr.mxu0 0.0
        %2189 = vmatpush1.msra.mxu0 %v934
        %2190 = vmatprep.subr.mxu0 0.0
        %2191 = vmatpush1.msra.mxu0 %v937
        %2192 = vmatprep.subr.mxu0 0.0
        %2193 = vmatpush1.msra.mxu0 %v940
        %2194 = vmatprep.subr.mxu0 0.0
        %2195 = vmatpush1.msra.mxu0 %v943
        %2196 = vmatprep.subr.mxu0 0.0
        %2197 = vmatpush1.msra.mxu0 %v946
        %2198 = vmatprep.subr.mxu0 0.0
        %2199 = vmatpush1.msra.mxu0 %v949
        %2200 = vmatprep.subr.mxu0 0.0
        %2201 = vmatpush1.msra.mxu0 %v952
        %2202 = vmatprep.subr.mxu0 0.0
        %2203 = vmatpush1.msra.mxu0 %v955
        %2204 = vmatprep.subr.mxu0 0.0
        %2205 = vmatpush1.msra.mxu0 %v958
        %2206 = vmatprep.subr.mxu0 0.0
        %2207 = vmatpush1.msra.mxu0 %v961
        %2208 = vmatprep.subr.mxu0 0.0
        %2209 = vmatpush1.msra.mxu0 %v964
        %2210 = vmatprep.subr.mxu0 0.0
        %2211 = vmatpush1.msra.mxu0 %v967
        %2212 = vmatprep.subr.mxu0 0.0
        %2213 = vmatpush1.msra.mxu0 %v970
        %2214 = vmatprep.subr.mxu0 0.0
        %2215 = vmatpush1.msra.mxu0 %v973
        %2216 = vmatprep.subr.mxu0 0.0
        %2217 = vmatpush1.msra.mxu0 %v976
        %2218 = vmatprep.subr.mxu0 0.0
        %2219 = vmatpush1.msra.mxu0 %v979
        %2220 = vmatprep.subr.mxu0 0.0
        %2221 = vmatpush1.msra.mxu0 %v982
        %2222 = vmatprep.subr.mxu0 0.0
        %2223 = vmatpush1.msra.mxu0 %v985
        %2224 = vmatprep.subr.mxu0 0.0
        %2225 = vmatpush1.msra.mxu0 %v988
        %2226 = vmatprep.subr.mxu0 0.0
        %2227 = vmatpush1.msra.mxu0 %v991
        %2228 = vmatprep.subr.mxu0 0.0
        %2229 = vmatpush1.msra.mxu0 %v994
        %2230 = vmatprep.subr.mxu0 0.0
        %2231 = vmatpush1.msra.mxu0 %v997
        %2232 = vmatprep.subr.mxu0 0.0
        %2233 = vmatpush1.msra.mxu0 %v1000
        %2234 = vmatprep.subr.mxu0 0.0
        %2235 = vmatpush1.msra.mxu0 %v1003
        %2236 = vmatprep.subr.mxu0 0.0
        %2237 = vmatpush1.msra.mxu0 %v1006
        %2238 = vmatprep.mubr.f32.mxu0 %v1327
        %2239 = vmatmul.mubr.f32.gmra.mrb[0].mxu0 %v1295
        %v2240 = vpop.f32.mrb[0].mxu0
        %v2241 = vadd.f32 %v2141, %v2240
        %v2242 = vpop.f32.mrb[0].mxu0
        %2243 = vmatprep.mubr.f32.mxu0 %v1328
        %2244 = vmatmul.mubr.f32.gmra.mrb[0].mxu0 %v1296
        %v2245 = vpop.f32.mrb[0].mxu0
        %v2246 = vadd.f32 %v2146, %v2245
        %v2247 = vpop.f32.mrb[0].mxu0
        %2248 = vmatprep.mubr.f32.mxu0 %v1329
        %2249 = vmatmul.mubr.f32.gmra.mrb[0].mxu0 %v1297
        %v2250 = vpop.f32.mrb[0].mxu0
        %v2251 = vadd.f32 %v2151, %v2250
        %v2252 = vpop.f32.mrb[0].mxu0
        %2253 = vmatprep.mubr.f32.mxu0 %v1330
        %2254 = vmatmul.mubr.f32.gmra.mrb[0].mxu0 %v1298
        %v2255 = vpop.f32.mrb[0].mxu0
        %v2256 = vadd.f32 %v2156, %v2255
        %v2257 = vpop.f32.mrb[0].mxu0
        %2258 = vmatprep.mubr.f32.mxu0 %v1331
        %2259 = vmatmul.mubr.f32.gmra.mrb[0].mxu0 %v1299
        %v2260 = vpop.f32.mrb[0].mxu0
        %v2261 = vadd.f32 %v2161, %v2260
        %v2262 = vpop.f32.mrb[0].mxu0
        %2263 = vmatprep.mubr.f32.mxu0 %v1332
        %2264 = vmatmul.mubr.f32.gmra.mrb[0].mxu0 %v1300
        %v2265 = vpop.f32.mrb[0].mxu0
        %v2266 = vadd.f32 %v2166, %v2265
        %v2267 = vpop.f32.mrb[0].mxu0
        %2268 = vmatprep.mubr.f32.mxu0 %v1333
        %2269 = vmatmul.mubr.f32.gmra.mrb[0].mxu0 %v1301
        %v2270 = vpop.f32.mrb[0].mxu0
        %v2271 = vadd.f32 %v2171, %v2270
        %v2272 = vpop.f32.mrb[0].mxu0
        %2273 = vdwg.mxu0
        %2274 = vmatprep.subr.mxu0 0.0
        %2275 = vmatpush1.msra.mxu0 %v1009
        %2276 = vmatprep.subr.mxu0 0.0
        %2277 = vmatpush1.msra.mxu0 %v1012
        %2278 = vmatprep.subr.mxu0 0.0
        %2279 = vmatpush1.msra.mxu0 %v1015
        %2280 = vmatprep.subr.mxu0 0.0
        %2281 = vmatpush1.msra.mxu0 %v1018
        %2282 = vmatprep.subr.mxu0 0.0
        %2283 = vmatpush1.msra.mxu0 %v1021
        %2284 = vmatprep.subr.mxu0 0.0
        %2285 = vmatpush1.msra.mxu0 %v1024
        %2286 = vmatprep.subr.mxu0 0.0
        %2287 = vmatpush1.msra.mxu0 %v1027
        %2288 = vmatprep.subr.mxu0 0.0
        %2289 = vmatpush1.msra.mxu0 %v1030
        %2290 = vmatprep.subr.mxu0 0.0
        %2291 = vmatpush1.msra.mxu0 %v1033
        %2292 = vmatprep.subr.mxu0 0.0
        %2293 = vmatpush1.msra.mxu0 %v1036
        %2294 = vmatprep.subr.mxu0 0.0
        %2295 = vmatpush1.msra.mxu0 %v1039
        %2296 = vmatprep.subr.mxu0 0.0
        %2297 = vmatpush1.msra.mxu0 %v1042
        %2298 = vmatprep.subr.mxu0 0.0
        %2299 = vmatpush1.msra.mxu0 %v1045
        %2300 = vmatprep.subr.mxu0 0.0
        %2301 = vmatpush1.msra.mxu0 %v1048
        %2302 = vmatprep.subr.mxu0 0.0
        %2303 = vmatpush1.msra.mxu0 %v1051
        %2304 = vmatprep.subr.mxu0 0.0
        %2305 = vmatpush1.msra.mxu0 %v1054
        %2306 = vmatprep.subr.mxu0 0.0
        %2307 = vmatpush1.msra.mxu0 %v1057
        %2308 = vmatprep.subr.mxu0 0.0
        %2309 = vmatpush1.msra.mxu0 %v1060
        %2310 = vmatprep.subr.mxu0 0.0
        %2311 = vmatpush1.msra.mxu0 %v1063
        %2312 = vmatprep.subr.mxu0 0.0
        %2313 = vmatpush1.msra.mxu0 %v1066
        %2314 = vmatprep.subr.mxu0 0.0
        %2315 = vmatpush1.msra.mxu0 %v1069
        %2316 = vmatprep.subr.mxu0 0.0
        %2317 = vmatpush1.msra.mxu0 %v1072
        %2318 = vmatprep.subr.mxu0 0.0
        %2319 = vmatpush1.msra.mxu0 %v1075
        %2320 = vmatprep.subr.mxu0 0.0
        %2321 = vmatpush1.msra.mxu0 %v1078
        %2322 = vmatprep.subr.mxu0 0.0
        %2323 = vmatpush1.msra.mxu0 %v1081
        %2324 = vmatprep.subr.mxu0 0.0
        %2325 = vmatpush1.msra.mxu0 %v1084
        %2326 = vmatprep.subr.mxu0 0.0
        %2327 = vmatpush1.msra.mxu0 %v1087
        %2328 = vmatprep.subr.mxu0 0.0
        %2329 = vmatpush1.msra.mxu0 %v1090
        %2330 = vmatprep.subr.mxu0 0.0
        %2331 = vmatpush1.msra.mxu0 %v1093
        %2332 = vmatprep.subr.mxu0 0.0
        %2333 = vmatpush1.msra.mxu0 %v1096
        %2334 = vmatprep.subr.mxu0 0.0
        %2335 = vmatpush1.msra.mxu0 %v1099
        %2336 = vmatprep.subr.mxu0 0.0
        %2337 = vmatpush1.msra.mxu0 %v1102
        %2338 = vmatprep.mubr.f32.mxu0 %v1391
        %2339 = vmatmul.mubr.f32.gmra.mrb[0].mxu0 %v1359
        %v2340 = vpop.f32.mrb[0].mxu0
        %v2341 = vadd.f32 %v2241, %v2340
        %v2342 = vpop.f32.mrb[0].mxu0
        %2343 = vmatprep.mubr.f32.mxu0 %v1392
        %2344 = vmatmul.mubr.f32.gmra.mrb[0].mxu0 %v1360
        %v2345 = vpop.f32.mrb[0].mxu0
        %v2346 = vadd.f32 %v2246, %v2345
        %v2347 = vpop.f32.mrb[0].mxu0
        %2348 = vmatprep.mubr.f32.mxu0 %v1393
        %2349 = vmatmul.mubr.f32.gmra.mrb[0].mxu0 %v1361
        %v2350 = vpop.f32.mrb[0].mxu0
        %v2351 = vadd.f32 %v2251, %v2350
        %v2352 = vpop.f32.mrb[0].mxu0
        %2353 = vmatprep.mubr.f32.mxu0 %v1394
        %2354 = vmatmul.mubr.f32.gmra.mrb[0].mxu0 %v1362
        %v2355 = vpop.f32.mrb[0].mxu0
        %v2356 = vadd.f32 %v2256, %v2355
        %v2357 = vpop.f32.mrb[0].mxu0
        %2358 = vmatprep.mubr.f32.mxu0 %v1395
        %2359 = vmatmul.mubr.f32.gmra.mrb[0].mxu0 %v1363
        %v2360 = vpop.f32.mrb[0].mxu0
        %v2361 = vadd.f32 %v2261, %v2360
        %v2362 = vpop.f32.mrb[0].mxu0
        %2363 = vmatprep.mubr.f32.mxu0 %v1396
        %2364 = vmatmul.mubr.f32.gmra.mrb[0].mxu0 %v1364
        %v2365 = vpop.f32.mrb[0].mxu0
        %v2366 = vadd.f32 %v2266, %v2365
        %v2367 = vpop.f32.mrb[0].mxu0
        %2368 = vmatprep.mubr.f32.mxu0 %v1397
        %2369 = vmatmul.mubr.f32.gmra.mrb[0].mxu0 %v1365
        %v2370 = vpop.f32.mrb[0].mxu0
        %v2371 = vadd.f32 %v2271, %v2370
        %v2372 = vpop.f32.mrb[0].mxu0
        %2373 = vdwg.mxu0
        %2374 = vmatprep.subr.mxu0 0.0
        %2375 = vmatpush1.msra.mxu0 %v1105
        %2376 = vmatprep.subr.mxu0 0.0
        %2377 = vmatpush1.msra.mxu0 %v1108
        %2378 = vmatprep.subr.mxu0 0.0
        %2379 = vmatpush1.msra.mxu0 %v1111
        %2380 = vmatprep.subr.mxu0 0.0
        %2381 = vmatpush1.msra.mxu0 %v1114
        %2382 = vmatprep.subr.mxu0 0.0
        %2383 = vmatpush1.msra.mxu0 %v1117
        %2384 = vmatprep.subr.mxu0 0.0
        %2385 = vmatpush1.msra.mxu0 %v1120
        %2386 = vmatprep.subr.mxu0 0.0
        %2387 = vmatpush1.msra.mxu0 %v1123
        %2388 = vmatprep.subr.mxu0 0.0
        %2389 = vmatpush1.msra.mxu0 %v1126
        %2390 = vmatprep.subr.mxu0 0.0
        %2391 = vmatpush1.msra.mxu0 %v1129
        %2392 = vmatprep.subr.mxu0 0.0
        %2393 = vmatpush1.msra.mxu0 %v1132
        %2394 = vmatprep.subr.mxu0 0.0
        %2395 = vmatpush1.msra.mxu0 %v1135
        %2396 = vmatprep.subr.mxu0 0.0
        %2397 = vmatpush1.msra.mxu0 %v1138
        %2398 = vmatprep.subr.mxu0 0.0
        %2399 = vmatpush1.msra.mxu0 %v1141
        %2400 = vmatprep.subr.mxu0 0.0
        %2401 = vmatpush1.msra.mxu0 %v1144
        %2402 = vmatprep.subr.mxu0 0.0
        %2403 = vmatpush1.msra.mxu0 %v1147
        %2404 = vmatprep.subr.mxu0 0.0
        %2405 = vmatpush1.msra.mxu0 %v1150
        %2406 = vmatprep.subr.mxu0 0.0
        %2407 = vmatpush1.msra.mxu0 0.0
        %2408 = vmatprep.subr.mxu0 0.0
        %2409 = vmatpush1.msra.mxu0 0.0
        %2410 = vmatprep.subr.mxu0 0.0
        %2411 = vmatpush1.msra.mxu0 0.0
        %2412 = vmatprep.subr.mxu0 0.0
        %2413 = vmatpush1.msra.mxu0 0.0
        %2414 = vmatprep.subr.mxu0 0.0
        %2415 = vmatpush1.msra.mxu0 0.0
        %2416 = vmatprep.subr.mxu0 0.0
        %2417 = vmatpush1.msra.mxu0 0.0
        %2418 = vmatprep.subr.mxu0 0.0
        %2419 = vmatpush1.msra.mxu0 0.0
        %2420 = vmatprep.subr.mxu0 0.0
        %2421 = vmatpush1.msra.mxu0 0.0
        %2422 = vmatprep.subr.mxu0 0.0
        %2423 = vmatpush1.msra.mxu0 0.0
        %2424 = vmatprep.subr.mxu0 0.0
        %2425 = vmatpush1.msra.mxu0 0.0
        %2426 = vmatprep.subr.mxu0 0.0
        %2427 = vmatpush1.msra.mxu0 0.0
        %2428 = vmatprep.subr.mxu0 0.0
        %2429 = vmatpush1.msra.mxu0 0.0
        %2430 = vmatprep.subr.mxu0 0.0
        %2431 = vmatpush1.msra.mxu0 0.0
        %2432 = vmatprep.subr.mxu0 0.0
        %2433 = vmatpush1.msra.mxu0 0.0
        %2434 = vmatprep.subr.mxu0 0.0
        %2435 = vmatpush1.msra.mxu0 0.0
        %2436 = vmatprep.subr.mxu0 0.0
        %2437 = vmatpush1.msra.mxu0 0.0
        %2438 = vmatprep.mubr.f32.mxu0 0.0
        %2439 = vmatmul.mubr.f32.gmra.mrb[0].mxu0 %v1423
        %v2440 = vpop.f32.mrb[0].mxu0
        %v2441 = vadd.f32 %v2341, %v2440
        %v2442 = vpop.f32.mrb[0].mxu0
        %2443 = vmatprep.mubr.f32.mxu0 0.0
        %2444 = vmatmul.mubr.f32.gmra.mrb[0].mxu0 %v1424
        %v2445 = vpop.f32.mrb[0].mxu0
        %v2446 = vadd.f32 %v2346, %v2445
        %v2447 = vpop.f32.mrb[0].mxu0
        %2448 = vmatprep.mubr.f32.mxu0 0.0
        %2449 = vmatmul.mubr.f32.gmra.mrb[0].mxu0 %v1425
        %v2450 = vpop.f32.mrb[0].mxu0
        %v2451 = vadd.f32 %v2351, %v2450
        %v2452 = vpop.f32.mrb[0].mxu0
        %2453 = vmatprep.mubr.f32.mxu0 0.0
        %2454 = vmatmul.mubr.f32.gmra.mrb[0].mxu0 %v1426
        %v2455 = vpop.f32.mrb[0].mxu0
        %v2456 = vadd.f32 %v2356, %v2455
        %v2457 = vpop.f32.mrb[0].mxu0
        %2458 = vmatprep.mubr.f32.mxu0 0.0
        %2459 = vmatmul.mubr.f32.gmra.mrb[0].mxu0 %v1427
        %v2460 = vpop.f32.mrb[0].mxu0
        %v2461 = vadd.f32 %v2361, %v2460
        %v2462 = vpop.f32.mrb[0].mxu0
        %2463 = vmatprep.mubr.f32.mxu0 0.0
        %2464 = vmatmul.mubr.f32.gmra.mrb[0].mxu0 %v1428
        %v2465 = vpop.f32.mrb[0].mxu0
        %v2466 = vadd.f32 %v2366, %v2465
        %v2467 = vpop.f32.mrb[0].mxu0
        %2468 = vmatprep.mubr.f32.mxu0 0.0
        %2469 = vmatmul.mubr.f32.gmra.mrb[0].mxu0 %v1429
        %v2470 = vpop.f32.mrb[0].mxu0
        %v2471 = vadd.f32 %v2371, %v2470
        %v2472 = vpop.f32.mrb[0].mxu0
        %2473 = vdwg.mxu0
        %v2474 = vadd.f32 %v1934, %v1940
        %v2475 = vadd.f32 %v2474, %v1946
        %v2476 = vadd.f32 %v2475, %v1952
        %v2477 = vadd.f32 %v2476, %v1958
        %v2478 = vadd.f32 %v2477, %v1964
        %vm2479 = vcmask 1040384
        %v2480 = vsel %vm2479, %v1970, 0.0
        %v2481 = vadd.f32 %v2478, %v2480
        %v2482 = vrot.slane %v2481, 4
        %v2483 = vadd.f32 %v2481, %v2482
        %v2484 = vrot.slane %v2483, 2
        %v2485 = vadd.f32 %v2483, %v2484
        %v2486 = vrot.slane %v2485, 1
        %v2487 = vadd.f32 %v2485, %v2486
        %v2488 = vadd.f32 %v1936, %v1942
        %v2489 = vadd.f32 %v2488, %v1948
        %v2490 = vadd.f32 %v2489, %v1954
        %v2491 = vadd.f32 %v2490, %v1960
        %v2492 = vadd.f32 %v2491, %v1966
        %v2493 = vsel %vm2479, %v1972, 0.0
        %v2494 = vadd.f32 %v2492, %v2493
        %v2495 = vrot.slane %v2494, 4
        %v2496 = vadd.f32 %v2494, %v2495
        %v2497 = vrot.slane %v2496, 2
        %v2498 = vadd.f32 %v2496, %v2497
        %v2499 = vrot.slane %v2498, 1
        %v2500 = vadd.f32 %v2498, %v2499
        %vm2501 = vcmask 523264
        %v2502 = vsel %vm2501, %v2441, 0.0
        %v2503 = vsel %vm2501, %v2446, 0.0
        %v2504 = vadd.f32 %v2502, %v2503
        %v2505 = vsel %vm2501, %v2451, 0.0
        %v2506 = vadd.f32 %v2504, %v2505
        %v2507 = vsel %vm2501, %v2456, 0.0
        %v2508 = vadd.f32 %v2506, %v2507
        %v2509 = vsel %vm2501, %v2461, 0.0
        %v2510 = vadd.f32 %v2508, %v2509
        %v2511 = vsel %vm2501, %v2466, 0.0
        %v2512 = vadd.f32 %v2510, %v2511
        %vm2513 = vcmask 516096
        %v2514 = vsel %vm2513, %v2471, 0.0
        %v2515 = vadd.f32 %v2512, %v2514
        %v2516 = vrot.slane %v2515, 4
        %v2517 = vadd.f32 %v2515, %v2516
        %v2518 = vrot.slane %v2517, 2
        %v2519 = vadd.f32 %v2517, %v2518
        %v2520 = vrot.slane %v2519, 1
        %v2521 = vadd.f32 %v2519, %v2520
        %v2522 = vmul.f32 %v2487, 0.020408163
        %v2523 = vmul.f32 %v2500, 0.020408163
        %v2524 = vmul.f32 %v2521, 0.020408163
        %v2525 = vmul.f32 %v1934, %v1934
        %v2526 = vmul.f32 %v1936, %v1936
        %v2527 = vmul.f32 %v2441, %v2441
        %v2528 = vmul.f32 %v1940, %v1940
        %v2529 = vmul.f32 %v1942, %v1942
        %v2530 = vmul.f32 %v2446, %v2446
        %v2531 = vmul.f32 %v1946, %v1946
        %v2532 = vmul.f32 %v1948, %v1948
        %v2533 = vmul.f32 %v2451, %v2451
        %v2534 = vmul.f32 %v1952, %v1952
        %v2535 = vmul.f32 %v1954, %v1954
        %v2536 = vmul.f32 %v2456, %v2456
        %v2537 = vmul.f32 %v1958, %v1958
        %v2538 = vmul.f32 %v1960, %v1960
        %v2539 = vmul.f32 %v2461, %v2461
        %v2540 = vmul.f32 %v1964, %v1964
        %v2541 = vmul.f32 %v1966, %v1966
        %v2542 = vmul.f32 %v2466, %v2466
        %v2543 = vmul.f32 %v1970, %v1970
        %v2544 = vmul.f32 %v1972, %v1972
        %v2545 = vmul.f32 %v2471, %v2471
        %v2546 = vadd.f32 %v2525, %v2528
        %v2547 = vadd.f32 %v2546, %v2531
        %v2548 = vadd.f32 %v2547, %v2534
        %v2549 = vadd.f32 %v2548, %v2537
        %v2550 = vadd.f32 %v2549, %v2540
        %v2551 = vsel %vm2479, %v2543, 0.0
        %v2552 = vadd.f32 %v2550, %v2551
        %v2553 = vrot.slane %v2552, 4
        %v2554 = vadd.f32 %v2552, %v2553
        %v2555 = vrot.slane %v2554, 2
        %v2556 = vadd.f32 %v2554, %v2555
        %v2557 = vrot.slane %v2556, 1
        %v2558 = vadd.f32 %v2556, %v2557
        %v2559 = vadd.f32 %v2526, %v2529
        %v2560 = vadd.f32 %v2559, %v2532
        %v2561 = vadd.f32 %v2560, %v2535
        %v2562 = vadd.f32 %v2561, %v2538
        %v2563 = vadd.f32 %v2562, %v2541
        %v2564 = vsel %vm2479, %v2544, 0.0
        %v2565 = vadd.f32 %v2563, %v2564
        %v2566 = vrot.slane %v2565, 4
        %v2567 = vadd.f32 %v2565, %v2566
        %v2568 = vrot.slane %v2567, 2
        %v2569 = vadd.f32 %v2567, %v2568
        %v2570 = vrot.slane %v2569, 1
        %v2571 = vadd.f32 %v2569, %v2570
        %v2572 = vsel %vm2501, %v2527, 0.0
        %v2573 = vsel %vm2501, %v2530, 0.0
        %v2574 = vadd.f32 %v2572, %v2573
        %v2575 = vsel %vm2501, %v2533, 0.0
        %v2576 = vadd.f32 %v2574, %v2575
        %v2577 = vsel %vm2501, %v2536, 0.0
        %v2578 = vadd.f32 %v2576, %v2577
        %v2579 = vsel %vm2501, %v2539, 0.0
        %v2580 = vadd.f32 %v2578, %v2579
        %v2581 = vsel %vm2501, %v2542, 0.0
        %v2582 = vadd.f32 %v2580, %v2581
        %v2583 = vsel %vm2513, %v2545, 0.0
        %v2584 = vadd.f32 %v2582, %v2583
        %v2585 = vrot.slane %v2584, 4
        %v2586 = vadd.f32 %v2584, %v2585
        %v2587 = vrot.slane %v2586, 2
        %v2588 = vadd.f32 %v2586, %v2587
        %v2589 = vrot.slane %v2588, 1
        %v2590 = vadd.f32 %v2588, %v2589
        %v2591 = vmul.f32 %v2558, 0.020408163
        %v2592 = vmul.f32 %v2571, 0.020408163
        %v2593 = vmul.f32 %v2590, 0.020408163
        %v2594 = vmul.f32 %v2522, %v2522
        %v2595 = vmul.f32 %v2523, %v2523
        %v2596 = vmul.f32 %v2524, %v2524
        %v2597 = vsub.f32 %v2591, %v2594
        %v2598 = vsub.f32 %v2592, %v2595
        %v2599 = vsub.f32 %v2593, %v2596
        %v2600 = vsub.f32 %v1934, %v2522
        %v2601 = vsub.f32 %v1936, %v2523
        %v2602 = vsub.f32 %v2441, %v2524
        %v2603 = vsub.f32 %v1940, %v2522
        %v2604 = vsub.f32 %v1942, %v2523
        %v2605 = vsub.f32 %v2446, %v2524
        %v2606 = vsub.f32 %v1946, %v2522
        %v2607 = vsub.f32 %v1948, %v2523
        %v2608 = vsub.f32 %v2451, %v2524
        %v2609 = vsub.f32 %v1952, %v2522
        %v2610 = vsub.f32 %v1954, %v2523
        %v2611 = vsub.f32 %v2456, %v2524
        %v2612 = vsub.f32 %v1958, %v2522
        %v2613 = vsub.f32 %v1960, %v2523
        %v2614 = vsub.f32 %v2461, %v2524
        %v2615 = vsub.f32 %v1964, %v2522
        %v2616 = vsub.f32 %v1966, %v2523
        %v2617 = vsub.f32 %v2466, %v2524
        %v2618 = vsub.f32 %v1970, %v2522
        %v2619 = vsub.f32 %v1972, %v2523
        %v2620 = vsub.f32 %v2471, %v2524
        %v2621 = vadd.f32 %v2597, 1e-05
        %v2622 = vadd.f32 %v2598, 1e-05
        %v2623 = vadd.f32 %v2599, 1e-05
        %v2624 = vrsqrt.pop %v2621
        %v2625 = vrsqrt.pop %v2622
        %v2626 = vrsqrt.pop %v2623
        %v2627 = vld [vmem:[%s2] sm:$0x7]
        %v2629 = vlaneseq
        %v2630 = vshrl.u32 %v2629, 7
        %v2631 = vsub.s32 0, %v2630
        %v2632 = vrot.slane %v2627, %v2631
        %v2633 = vlaneseq
        %v2634 = vshrl.u32 %v2633, 7
        %v2635 = vsub.s32 1, %v2634
        %v2636 = vrot.slane %v2627, %v2635
        %v2637 = vlaneseq
        %v2638 = vshrl.u32 %v2637, 7
        %v2639 = vsub.s32 2, %v2638
        %v2640 = vrot.slane %v2627, %v2639
        %v2644 = vmul.f32 %v2624, %v2632
        %v2645 = vmul.f32 %v2625, %v2636
        %v2646 = vmul.f32 %v2626, %v2640
        %v2647 = vlaneseq
        %v2648 = vshrl.u32 %v2647, 7
        %v2649 = vsub.s32 0, %v2648
        %v2650 = vrot.slane %v2644, %v2649
        %v2651 = vlaneseq
        %v2652 = vshrl.u32 %v2651, 7
        %v2653 = vsub.s32 0, %v2652
        %v2654 = vrot.slane %v2645, %v2653
        %v2655 = vlaneseq
        %v2656 = vshrl.u32 %v2655, 7
        %v2657 = vsub.s32 0, %v2656
        %v2658 = vrot.slane %v2646, %v2657
        %v2659 = vmul.f32 %v2600, %v2650
        %v2660 = vmul.f32 %v2601, %v2654
        %v2661 = vmul.f32 %v2602, %v2658
        %v2662 = vmul.f32 %v2603, %v2650
        %v2663 = vmul.f32 %v2604, %v2654
        %v2664 = vmul.f32 %v2605, %v2658
        %v2665 = vmul.f32 %v2606, %v2650
        %v2666 = vmul.f32 %v2607, %v2654
        %v2667 = vmul.f32 %v2608, %v2658
        %v2668 = vmul.f32 %v2609, %v2650
        %v2669 = vmul.f32 %v2610, %v2654
        %v2670 = vmul.f32 %v2611, %v2658
        %v2671 = vmul.f32 %v2612, %v2650
        %v2672 = vmul.f32 %v2613, %v2654
        %v2673 = vmul.f32 %v2614, %v2658
        %v2674 = vmul.f32 %v2615, %v2650
        %v2675 = vmul.f32 %v2616, %v2654
        %v2676 = vmul.f32 %v2617, %v2658
        %v2677 = vmul.f32 %v2618, %v2650
        %v2678 = vmul.f32 %v2619, %v2654
        %v2679 = vmul.f32 %v2620, %v2658
        %v2680 = vld [vmem:[%s3] sm:$0x7]
        %v2682 = vlaneseq
        %v2683 = vshrl.u32 %v2682, 7
        %v2684 = vsub.s32 0, %v2683
        %v2685 = vrot.slane %v2680, %v2684
        %v2686 = vlaneseq
        %v2687 = vshrl.u32 %v2686, 7
        %v2688 = vsub.s32 1, %v2687
        %v2689 = vrot.slane %v2680, %v2688
        %v2690 = vlaneseq
        %v2691 = vshrl.u32 %v2690, 7
        %v2692 = vsub.s32 2, %v2691
        %v2693 = vrot.slane %v2680, %v2692
        %v2697 = vadd.f32 %v2659, %v2685
        %v2698 = vadd.f32 %v2660, %v2689
        %v2699 = vadd.f32 %v2661, %v2693
        %v2700 = vadd.f32 %v2662, %v2685
        %v2701 = vadd.f32 %v2663, %v2689
        %v2702 = vadd.f32 %v2664, %v2693
        %v2703 = vadd.f32 %v2665, %v2685
        %v2704 = vadd.f32 %v2666, %v2689
        %v2705 = vadd.f32 %v2667, %v2693
        %v2706 = vadd.f32 %v2668, %v2685
        %v2707 = vadd.f32 %v2669, %v2689
        %v2708 = vadd.f32 %v2670, %v2693
        %v2709 = vadd.f32 %v2671, %v2685
        %v2710 = vadd.f32 %v2672, %v2689
        %v2711 = vadd.f32 %v2673, %v2693
        %v2712 = vadd.f32 %v2674, %v2685
        %v2713 = vadd.f32 %v2675, %v2689
        %v2714 = vadd.f32 %v2676, %v2693
        %v2715 = vadd.f32 %v2677, %v2685
        %v2716 = vadd.f32 %v2678, %v2689
        %v2717 = vadd.f32 %v2679, %v2693
        %v2718 = vld [vmem:[%s526] sm:$0xff]
        %v2719 = vld [vmem:[%s526 + $0x8] sm:$0xff]
        %v2720 = vld [vmem:[%s526 + $0x10] sm:$0xff]
        %v2721 = vld [vmem:[%s526 + $0x18] sm:$0xff]
        %v2722 = vld [vmem:[%s526 + $0x20] sm:$0xff]
        %v2723 = vld [vmem:[%s526 + $0x28] sm:$0xff]
        %v2724 = vld [vmem:[%s526 + $0x30] sm:$0xff]
        %v2725 = vld [vmem:[%s526 + $0x38] sm:$0xff]
        %v2726 = vld [vmem:[%s526 + $0x40] sm:$0xff]
        %v2727 = vld [vmem:[%s526 + $0x48] sm:$0xff]
        %v2728 = vld [vmem:[%s526 + $0x50] sm:$0xff]
        %v2729 = vld [vmem:[%s526 + $0x58] sm:$0xff]
        %v2730 = vld [vmem:[%s526 + $0x60] sm:$0xff]
        %v2731 = vld [vmem:[%s526 + $0x68] sm:$0xff]
        %v2732 = vld [vmem:[%s526 + $0x70] sm:$0xff]
        %v2733 = vld [vmem:[%s526 + $0x78] sm:$0xff]
        %v2734 = vld [vmem:[%s526 + $0x80] sm:$0xff]
        %v2735 = vld [vmem:[%s526 + $0x88] sm:$0xff]
        %v2736 = vld [vmem:[%s526 + $0x90] sm:$0xff]
        %v2737 = vld [vmem:[%s526 + $0x98] sm:$0xff]
        %v2738 = vld [vmem:[%s526 + $0xa0] sm:$0xff]
        %v2739 = vld [vmem:[%s526 + $0xa8] sm:$0xff]
        %v2740 = vld [vmem:[%s526 + $0xb0] sm:$0xff]
        %v2741 = vld [vmem:[%s526 + $0xb8] sm:$0xff]
        %v2742 = vld [vmem:[%s526 + $0xc0] sm:$0xff]
        %v2743 = vld [vmem:[%s526 + $0xc8] sm:$0xff]
        %v2744 = vld [vmem:[%s526 + $0xd0] sm:$0xff]
        %v2745 = vld [vmem:[%s526 + $0xd8] sm:$0xff]
        %v2746 = vld [vmem:[%s526 + $0xe0] sm:$0xff]
        %v2747 = vld [vmem:[%s526 + $0xe8] sm:$0xff]
        %v2748 = vld [vmem:[%s526 + $0xf0] sm:$0xff]
        %v2749 = vld [vmem:[%s526 + $0xf8] sm:$0xff]
        %v2750 = vld [vmem:[%s526 + $0x100] sm:$0xff]
        %v2751 = vld [vmem:[%s526 + $0x108] sm:$0xff]
        %v2752 = vld [vmem:[%s526 + $0x110] sm:$0xff]
        %v2753 = vld [vmem:[%s526 + $0x118] sm:$0xff]
        %v2754 = vld [vmem:[%s526 + $0x120] sm:$0xff]
        %v2755 = vld [vmem:[%s526 + $0x128] sm:$0xff]
        %v2756 = vld [vmem:[%s526 + $0x130] sm:$0xff]
        %v2757 = vld [vmem:[%s526 + $0x138] sm:$0xff]
        %v2758 = vld [vmem:[%s526 + $0x140] sm:$0xff]
        %v2759 = vld [vmem:[%s526 + $0x148] sm:$0xff]
        %v2760 = vld [vmem:[%s526 + $0x150] sm:$0xff]
        %v2761 = vld [vmem:[%s526 + $0x158] sm:$0xff]
        %v2762 = vld [vmem:[%s526 + $0x160] sm:$0xff]
        %v2763 = vld [vmem:[%s526 + $0x168] sm:$0xff]
        %v2764 = vld [vmem:[%s526 + $0x170] sm:$0xff]
        %v2765 = vld [vmem:[%s526 + $0x178] sm:$0xff]
        %v2766 = vld [vmem:[%s526 + $0x180] sm:$0xff]
        %v2767 = vld [vmem:[%s526 + $0x188] sm:$0xff]
        %v2768 = vld [vmem:[%s526 + $0x190] sm:$0xff]
        %v2769 = vld [vmem:[%s526 + $0x198] sm:$0xff]
        %v2770 = vld [vmem:[%s526 + $0x1a0] sm:$0xff]
        %v2771 = vld [vmem:[%s526 + $0x1a8] sm:$0xff]
        %v2772 = vld [vmem:[%s526 + $0x1b0] sm:$0xff]
        %v2773 = vld [vmem:[%s526 + $0x1b8] sm:$0xff]
        %v2774 = vld [vmem:[%s526 + $0x1c0] sm:$0xff]
        %v2775 = vld [vmem:[%s526 + $0x1c8] sm:$0xff]
        %v2776 = vld [vmem:[%s526 + $0x1d0] sm:$0xff]
        %v2777 = vld [vmem:[%s526 + $0x1d8] sm:$0xff]
        %v2778 = vld [vmem:[%s526 + $0x1e0] sm:$0xff]
        %v2779 = vld [vmem:[%s526 + $0x1e8] sm:$0xff]
        %v2780 = vld [vmem:[%s526 + $0x1f0] sm:$0xff]
        %v2781 = vld [vmem:[%s526 + $0x1f8] sm:$0xff]
        %v2782 = vld [vmem:[%s526 + $0x200] sm:$0xff]
        %v2783 = vld [vmem:[%s526 + $0x208] sm:$0xff]
        %v2784 = vld [vmem:[%s526 + $0x210] sm:$0xff]
        %v2785 = vld [vmem:[%s526 + $0x218] sm:$0xff]
        %v2786 = vld [vmem:[%s526 + $0x220] sm:$0xff]
        %v2787 = vld [vmem:[%s526 + $0x228] sm:$0xff]
        %v2788 = vld [vmem:[%s526 + $0x230] sm:$0xff]
        %v2789 = vld [vmem:[%s526 + $0x238] sm:$0xff]
        %v2790 = vld [vmem:[%s526 + $0x240] sm:$0xff]
        %v2791 = vld [vmem:[%s526 + $0x248] sm:$0xff]
        %v2792 = vld [vmem:[%s526 + $0x250] sm:$0xff]
        %v2793 = vld [vmem:[%s526 + $0x258] sm:$0xff]
        %v2794 = vld [vmem:[%s526 + $0x260] sm:$0xff]
        %v2795 = vld [vmem:[%s526 + $0x268] sm:$0xff]
        %v2796 = vld [vmem:[%s526 + $0x270] sm:$0xff]
        %v2797 = vld [vmem:[%s526 + $0x278] sm:$0xff]
        %v2798 = vld [vmem:[%s526 + $0x280] sm:$0xff]
        %v2799 = vld [vmem:[%s526 + $0x288] sm:$0xff]
        %v2800 = vld [vmem:[%s526 + $0x290] sm:$0xff]
        %v2801 = vld [vmem:[%s526 + $0x298] sm:$0xff]
        %v2802 = vld [vmem:[%s526 + $0x2a0] sm:$0xff]
        %v2803 = vld [vmem:[%s526 + $0x2a8] sm:$0xff]
        %v2804 = vld [vmem:[%s526 + $0x2b0] sm:$0xff]
        %v2805 = vld [vmem:[%s526 + $0x2b8] sm:$0xff]
        %v2806 = vld [vmem:[%s526 + $0x2c0] sm:$0xff]
        %v2807 = vld [vmem:[%s526 + $0x2c8] sm:$0xff]
        %v2808 = vld [vmem:[%s526 + $0x2d0] sm:$0xff]
        %v2809 = vld [vmem:[%s526 + $0x2d8] sm:$0xff]
        %v2810 = vld [vmem:[%s526 + $0x2e0] sm:$0xff]
        %v2811 = vld [vmem:[%s526 + $0x2e8] sm:$0xff]
        %v2812 = vld [vmem:[%s526 + $0x2f0] sm:$0xff]
        %v2813 = vld [vmem:[%s526 + $0x2f8] sm:$0xff]
        %v2814 = vld [vmem:[%s526 + $0x300] sm:$0xff]
        %v2815 = vld [vmem:[%s526 + $0x308] sm:$0xff]
        %v2816 = vld [vmem:[%s526 + $0x310] sm:$0xff]
        %v2817 = vld [vmem:[%s526 + $0x318] sm:$0xff]
        %v2818 = vld [vmem:[%s526 + $0x320] sm:$0xff]
        %v2819 = vld [vmem:[%s526 + $0x328] sm:$0xff]
        %v2820 = vld [vmem:[%s526 + $0x330] sm:$0xff]
        %v2821 = vld [vmem:[%s526 + $0x338] sm:$0xff]
        %v2822 = vld [vmem:[%s526 + $0x340] sm:$0xff]
        %v2823 = vld [vmem:[%s526 + $0x348] sm:$0xff]
        %v2824 = vld [vmem:[%s526 + $0x350] sm:$0xff]
        %v2825 = vld [vmem:[%s526 + $0x358] sm:$0xff]
        %v2826 = vld [vmem:[%s526 + $0x360] sm:$0xff]
        %v2827 = vld [vmem:[%s526 + $0x368] sm:$0xff]
        %v2828 = vld [vmem:[%s526 + $0x370] sm:$0xff]
        %v2829 = vld [vmem:[%s526 + $0x378] sm:$0xff]
        %v2830 = vld [vmem:[%s526 + $0x380] sm:$0xff]
        %v2831 = vld [vmem:[%s526 + $0x388] sm:$0xff]
        %v2832 = vld [vmem:[%s526 + $0x390] sm:$0xff]
        %v2833 = vld [vmem:[%s526 + $0x398] sm:$0xff]
        %v2834 = vld [vmem:[%s526 + $0x3a0] sm:$0xff]
        %v2835 = vld [vmem:[%s526 + $0x3a8] sm:$0xff]
        %v2836 = vld [vmem:[%s526 + $0x3b0] sm:$0xff]
        %v2837 = vld [vmem:[%s526 + $0x3b8] sm:$0xff]
        %v2839 = vsel %vm2501, %v2699, 0
        %v2842 = vsel %vm2501, %v2702, 0
        %v2845 = vsel %vm2501, %v2705, 0
        %v2848 = vsel %vm2501, %v2708, 0
        %v2851 = vsel %vm2501, %v2711, 0
        %v2854 = vsel %vm2501, %v2714, 0
        %v2857 = vsel %vm2501, %v2717, 0
        %2859 = vmatprep.subr.mxu0 %v2719
        %2860 = vmatpush1.msra.mxu0 %v2718
        %2861 = vmatprep.subr.mxu0 %v2722
        %2862 = vmatpush1.msra.mxu0 %v2721
        %2863 = vmatprep.subr.mxu0 %v2725
        %2864 = vmatpush1.msra.mxu0 %v2724
        %2865 = vmatprep.subr.mxu0 %v2728
        %2866 = vmatpush1.msra.mxu0 %v2727
        %2867 = vmatprep.subr.mxu0 %v2731
        %2868 = vmatpush1.msra.mxu0 %v2730
        %2869 = vmatprep.subr.mxu0 %v2734
        %2870 = vmatpush1.msra.mxu0 %v2733
        %2871 = vmatprep.subr.mxu0 %v2737
        %2872 = vmatpush1.msra.mxu0 %v2736
        %2873 = vmatprep.subr.mxu0 %v2740
        %2874 = vmatpush1.msra.mxu0 %v2739
        %2875 = vmatprep.subr.mxu0 %v2743
        %2876 = vmatpush1.msra.mxu0 %v2742
        %2877 = vmatprep.subr.mxu0 %v2746
        %2878 = vmatpush1.msra.mxu0 %v2745
        %2879 = vmatprep.subr.mxu0 %v2749
        %2880 = vmatpush1.msra.mxu0 %v2748
        %2881 = vmatprep.subr.mxu0 %v2752
        %2882 = vmatpush1.msra.mxu0 %v2751
        %2883 = vmatprep.subr.mxu0 %v2755
        %2884 = vmatpush1.msra.mxu0 %v2754
        %2885 = vmatprep.subr.mxu0 %v2758
        %2886 = vmatpush1.msra.mxu0 %v2757
        %2887 = vmatprep.subr.mxu0 %v2761
        %2888 = vmatpush1.msra.mxu0 %v2760
        %2889 = vmatprep.subr.mxu0 %v2764
        %2890 = vmatpush1.msra.mxu0 %v2763
        %2891 = vmatprep.subr.mxu0 %v2767
        %2892 = vmatpush1.msra.mxu0 %v2766
        %2893 = vmatprep.subr.mxu0 %v2770
        %2894 = vmatpush1.msra.mxu0 %v2769
        %2895 = vmatprep.subr.mxu0 %v2773
        %2896 = vmatpush1.msra.mxu0 %v2772
        %2897 = vmatprep.subr.mxu0 %v2776
        %2898 = vmatpush1.msra.mxu0 %v2775
        %2899 = vmatprep.subr.mxu0 %v2779
        %2900 = vmatpush1.msra.mxu0 %v2778
        %2901 = vmatprep.subr.mxu0 %v2782
        %2902 = vmatpush1.msra.mxu0 %v2781
        %2903 = vmatprep.subr.mxu0 %v2785
        %2904 = vmatpush1.msra.mxu0 %v2784
        %2905 = vmatprep.subr.mxu0 %v2788
        %2906 = vmatpush1.msra.mxu0 %v2787
        %2907 = vmatprep.subr.mxu0 %v2791
        %2908 = vmatpush1.msra.mxu0 %v2790
        %2909 = vmatprep.subr.mxu0 %v2794
        %2910 = vmatpush1.msra.mxu0 %v2793
        %2911 = vmatprep.subr.mxu0 %v2797
        %2912 = vmatpush1.msra.mxu0 %v2796
        %2913 = vmatprep.subr.mxu0 %v2800
        %2914 = vmatpush1.msra.mxu0 %v2799
        %2915 = vmatprep.subr.mxu0 %v2803
        %2916 = vmatpush1.msra.mxu0 %v2802
        %2917 = vmatprep.subr.mxu0 %v2806
        %2918 = vmatpush1.msra.mxu0 %v2805
        %2919 = vmatprep.subr.mxu0 %v2809
        %2920 = vmatpush1.msra.mxu0 %v2808
        %2921 = vmatprep.subr.mxu0 %v2812
        %2922 = vmatpush1.msra.mxu0 %v2811
        %2923 = vmatprep.mubr.f32.mxu0 %v2698
        %2924 = vmatmul.mubr.f32.gmra.mrb[0].mxu0 %v2697
        %v2925 = vpop.f32.mrb[0].mxu0
        %v2926 = vadd.f32 0.0, %v2925
        %v2927 = vpop.f32.mrb[0].mxu0
        %v2928 = vadd.f32 0.0, %v2927
        %2929 = vmatprep.mubr.f32.mxu0 %v2701
        %2930 = vmatmul.mubr.f32.gmra.mrb[0].mxu0 %v2700
        %v2931 = vpop.f32.mrb[0].mxu0
        %v2932 = vadd.f32 0.0, %v2931
        %v2933 = vpop.f32.mrb[0].mxu0
        %v2934 = vadd.f32 0.0, %v2933
        %2935 = vmatprep.mubr.f32.mxu0 %v2704
        %2936 = vmatmul.mubr.f32.gmra.mrb[0].mxu0 %v2703
        %v2937 = vpop.f32.mrb[0].mxu0
        %v2938 = vadd.f32 0.0, %v2937
        %v2939 = vpop.f32.mrb[0].mxu0
        %v2940 = vadd.f32 0.0, %v2939
        %2941 = vmatprep.mubr.f32.mxu0 %v2707
        %2942 = vmatmul.mubr.f32.gmra.mrb[0].mxu0 %v2706
        %v2943 = vpop.f32.mrb[0].mxu0
        %v2944 = vadd.f32 0.0, %v2943
        %v2945 = vpop.f32.mrb[0].mxu0
        %v2946 = vadd.f32 0.0, %v2945
        %2947 = vmatprep.mubr.f32.mxu0 %v2710
        %2948 = vmatmul.mubr.f32.gmra.mrb[0].mxu0 %v2709
        %v2949 = vpop.f32.mrb[0].mxu0
        %v2950 = vadd.f32 0.0, %v2949
        %v2951 = vpop.f32.mrb[0].mxu0
        %v2952 = vadd.f32 0.0, %v2951
        %2953 = vmatprep.mubr.f32.mxu0 %v2713
        %2954 = vmatmul.mubr.f32.gmra.mrb[0].mxu0 %v2712
        %v2955 = vpop.f32.mrb[0].mxu0
        %v2956 = vadd.f32 0.0, %v2955
        %v2957 = vpop.f32.mrb[0].mxu0
        %v2958 = vadd.f32 0.0, %v2957
        %2959 = vmatprep.mubr.f32.mxu0 %v2716
        %2960 = vmatmul.mubr.f32.gmra.mrb[0].mxu0 %v2715
        %v2961 = vpop.f32.mrb[0].mxu0
        %v2962 = vadd.f32 0.0, %v2961
        %v2963 = vpop.f32.mrb[0].mxu0
        %v2964 = vadd.f32 0.0, %v2963
        %2965 = vdwg.mxu0
        %2966 = vmatprep.subr.mxu0 %v2815
        %2967 = vmatpush1.msra.mxu0 %v2814
        %2968 = vmatprep.subr.mxu0 %v2818
        %2969 = vmatpush1.msra.mxu0 %v2817
        %2970 = vmatprep.subr.mxu0 %v2821
        %2971 = vmatpush1.msra.mxu0 %v2820
        %2972 = vmatprep.subr.mxu0 %v2824
        %2973 = vmatpush1.msra.mxu0 %v2823
        %2974 = vmatprep.subr.mxu0 %v2827
        %2975 = vmatpush1.msra.mxu0 %v2826
        %2976 = vmatprep.subr.mxu0 %v2830
        %2977 = vmatpush1.msra.mxu0 %v2829
        %2978 = vmatprep.subr.mxu0 %v2833
        %2979 = vmatpush1.msra.mxu0 %v2832
        %2980 = vmatprep.subr.mxu0 %v2836
        %2981 = vmatpush1.msra.mxu0 %v2835
        %2982 = vmatprep.subr.mxu0 0.0
        %2983 = vmatpush1.msra.mxu0 0.0
        %2984 = vmatprep.subr.mxu0 0.0
        %2985 = vmatpush1.msra.mxu0 0.0
        %2986 = vmatprep.subr.mxu0 0.0
        %2987 = vmatpush1.msra.mxu0 0.0
        %2988 = vmatprep.subr.mxu0 0.0
        %2989 = vmatpush1.msra.mxu0 0.0
        %2990 = vmatprep.subr.mxu0 0.0
        %2991 = vmatpush1.msra.mxu0 0.0
        %2992 = vmatprep.subr.mxu0 0.0
        %2993 = vmatpush1.msra.mxu0 0.0
        %2994 = vmatprep.subr.mxu0 0.0
        %2995 = vmatpush1.msra.mxu0 0.0
        %2996 = vmatprep.subr.mxu0 0.0
        %2997 = vmatpush1.msra.mxu0 0.0
        %2998 = vmatprep.subr.mxu0 0.0
        %2999 = vmatpush1.msra.mxu0 0.0
        %3000 = vmatprep.subr.mxu0 0.0
        %3001 = vmatpush1.msra.mxu0 0.0
        %3002 = vmatprep.subr.mxu0 0.0
        %3003 = vmatpush1.msra.mxu0 0.0
        %3004 = vmatprep.subr.mxu0 0.0
        %3005 = vmatpush1.msra.mxu0 0.0
        %3006 = vmatprep.subr.mxu0 0.0
        %3007 = vmatpush1.msra.mxu0 0.0
        %3008 = vmatprep.subr.mxu0 0.0
        %3009 = vmatpush1.msra.mxu0 0.0
        %3010 = vmatprep.subr.mxu0 0.0
        %3011 = vmatpush1.msra.mxu0 0.0
        %3012 = vmatprep.subr.mxu0 0.0
        %3013 = vmatpush1.msra.mxu0 0.0
        %3014 = vmatprep.subr.mxu0 0.0
        %3015 = vmatpush1.msra.mxu0 0.0
        %3016 = vmatprep.subr.mxu0 0.0
        %3017 = vmatpush1.msra.mxu0 0.0
        %3018 = vmatprep.subr.mxu0 0.0
        %3019 = vmatpush1.msra.mxu0 0.0
        %3020 = vmatprep.subr.mxu0 0.0
        %3021 = vmatpush1.msra.mxu0 0.0
        %3022 = vmatprep.subr.mxu0 0.0
        %3023 = vmatpush1.msra.mxu0 0.0
        %3024 = vmatprep.subr.mxu0 0.0
        %3025 = vmatpush1.msra.mxu0 0.0
        %3026 = vmatprep.subr.mxu0 0.0
        %3027 = vmatpush1.msra.mxu0 0.0
        %3028 = vmatprep.subr.mxu0 0.0
        %3029 = vmatpush1.msra.mxu0 0.0
        %3030 = vmatprep.mubr.f32.mxu0 0.0
        %3031 = vmatmul.mubr.f32.gmra.mrb[0].mxu0 %v2839
        %v3032 = vpop.f32.mrb[0].mxu0
        %v3033 = vadd.f32 %v2926, %v3032
        %v3034 = vpop.f32.mrb[0].mxu0
        %v3035 = vadd.f32 %v2928, %v3034
        %3036 = vmatprep.mubr.f32.mxu0 0.0
        %3037 = vmatmul.mubr.f32.gmra.mrb[0].mxu0 %v2842
        %v3038 = vpop.f32.mrb[0].mxu0
        %v3039 = vadd.f32 %v2932, %v3038
        %v3040 = vpop.f32.mrb[0].mxu0
        %v3041 = vadd.f32 %v2934, %v3040
        %3042 = vmatprep.mubr.f32.mxu0 0.0
        %3043 = vmatmul.mubr.f32.gmra.mrb[0].mxu0 %v2845
        %v3044 = vpop.f32.mrb[0].mxu0
        %v3045 = vadd.f32 %v2938, %v3044
        %v3046 = vpop.f32.mrb[0].mxu0
        %v3047 = vadd.f32 %v2940, %v3046
        %3048 = vmatprep.mubr.f32.mxu0 0.0
        %3049 = vmatmul.mubr.f32.gmra.mrb[0].mxu0 %v2848
        %v3050 = vpop.f32.mrb[0].mxu0
        %v3051 = vadd.f32 %v2944, %v3050
        %v3052 = vpop.f32.mrb[0].mxu0
        %v3053 = vadd.f32 %v2946, %v3052
        %3054 = vmatprep.mubr.f32.mxu0 0.0
        %3055 = vmatmul.mubr.f32.gmra.mrb[0].mxu0 %v2851
        %v3056 = vpop.f32.mrb[0].mxu0
        %v3057 = vadd.f32 %v2950, %v3056
        %v3058 = vpop.f32.mrb[0].mxu0
        %v3059 = vadd.f32 %v2952, %v3058
        %3060 = vmatprep.mubr.f32.mxu0 0.0
        %3061 = vmatmul.mubr.f32.gmra.mrb[0].mxu0 %v2854
        %v3062 = vpop.f32.mrb[0].mxu0
        %v3063 = vadd.f32 %v2956, %v3062
        %v3064 = vpop.f32.mrb[0].mxu0
        %v3065 = vadd.f32 %v2958, %v3064
        %3066 = vmatprep.mubr.f32.mxu0 0.0
        %3067 = vmatmul.mubr.f32.gmra.mrb[0].mxu0 %v2857
        %v3068 = vpop.f32.mrb[0].mxu0
        %v3069 = vadd.f32 %v2962, %v3068
        %v3070 = vpop.f32.mrb[0].mxu0
        %v3071 = vadd.f32 %v2964, %v3070
        %3072 = vdwg.mxu0
        %3073 = vmatprep.subr.mxu0 0.0
        %3074 = vmatpush1.msra.mxu0 %v2720
        %3075 = vmatprep.subr.mxu0 0.0
        %3076 = vmatpush1.msra.mxu0 %v2723
        %3077 = vmatprep.subr.mxu0 0.0
        %3078 = vmatpush1.msra.mxu0 %v2726
        %3079 = vmatprep.subr.mxu0 0.0
        %3080 = vmatpush1.msra.mxu0 %v2729
        %3081 = vmatprep.subr.mxu0 0.0
        %3082 = vmatpush1.msra.mxu0 %v2732
        %3083 = vmatprep.subr.mxu0 0.0
        %3084 = vmatpush1.msra.mxu0 %v2735
        %3085 = vmatprep.subr.mxu0 0.0
        %3086 = vmatpush1.msra.mxu0 %v2738
        %3087 = vmatprep.subr.mxu0 0.0
        %3088 = vmatpush1.msra.mxu0 %v2741
        %3089 = vmatprep.subr.mxu0 0.0
        %3090 = vmatpush1.msra.mxu0 %v2744
        %3091 = vmatprep.subr.mxu0 0.0
        %3092 = vmatpush1.msra.mxu0 %v2747
        %3093 = vmatprep.subr.mxu0 0.0
        %3094 = vmatpush1.msra.mxu0 %v2750
        %3095 = vmatprep.subr.mxu0 0.0
        %3096 = vmatpush1.msra.mxu0 %v2753
        %3097 = vmatprep.subr.mxu0 0.0
        %3098 = vmatpush1.msra.mxu0 %v2756
        %3099 = vmatprep.subr.mxu0 0.0
        %3100 = vmatpush1.msra.mxu0 %v2759
        %3101 = vmatprep.subr.mxu0 0.0
        %3102 = vmatpush1.msra.mxu0 %v2762
        %3103 = vmatprep.subr.mxu0 0.0
        %3104 = vmatpush1.msra.mxu0 %v2765
        %3105 = vmatprep.subr.mxu0 0.0
        %3106 = vmatpush1.msra.mxu0 %v2768
        %3107 = vmatprep.subr.mxu0 0.0
        %3108 = vmatpush1.msra.mxu0 %v2771
        %3109 = vmatprep.subr.mxu0 0.0
        %3110 = vmatpush1.msra.mxu0 %v2774
        %3111 = vmatprep.subr.mxu0 0.0
        %3112 = vmatpush1.msra.mxu0 %v2777
        %3113 = vmatprep.subr.mxu0 0.0
        %3114 = vmatpush1.msra.mxu0 %v2780
        %3115 = vmatprep.subr.mxu0 0.0
        %3116 = vmatpush1.msra.mxu0 %v2783
        %3117 = vmatprep.subr.mxu0 0.0
        %3118 = vmatpush1.msra.mxu0 %v2786
        %3119 = vmatprep.subr.mxu0 0.0
        %3120 = vmatpush1.msra.mxu0 %v2789
        %3121 = vmatprep.subr.mxu0 0.0
        %3122 = vmatpush1.msra.mxu0 %v2792
        %3123 = vmatprep.subr.mxu0 0.0
        %3124 = vmatpush1.msra.mxu0 %v2795
        %3125 = vmatprep.subr.mxu0 0.0
        %3126 = vmatpush1.msra.mxu0 %v2798
        %3127 = vmatprep.subr.mxu0 0.0
        %3128 = vmatpush1.msra.mxu0 %v2801
        %3129 = vmatprep.subr.mxu0 0.0
        %3130 = vmatpush1.msra.mxu0 %v2804
        %3131 = vmatprep.subr.mxu0 0.0
        %3132 = vmatpush1.msra.mxu0 %v2807
        %3133 = vmatprep.subr.mxu0 0.0
        %3134 = vmatpush1.msra.mxu0 %v2810
        %3135 = vmatprep.subr.mxu0 0.0
        %3136 = vmatpush1.msra.mxu0 %v2813
        %3137 = vmatprep.mubr.f32.mxu0 %v2698
        %3138 = vmatmul.mubr.f32.gmra.mrb[0].mxu0 %v2697
        %v3139 = vpop.f32.mrb[0].mxu0
        %v3140 = vadd.f32 0.0, %v3139
        %v3141 = vpop.f32.mrb[0].mxu0
        %3142 = vmatprep.mubr.f32.mxu0 %v2701
        %3143 = vmatmul.mubr.f32.gmra.mrb[0].mxu0 %v2700
        %v3144 = vpop.f32.mrb[0].mxu0
        %v3145 = vadd.f32 0.0, %v3144
        %v3146 = vpop.f32.mrb[0].mxu0
        %3147 = vmatprep.mubr.f32.mxu0 %v2704
        %3148 = vmatmul.mubr.f32.gmra.mrb[0].mxu0 %v2703
        %v3149 = vpop.f32.mrb[0].mxu0
        %v3150 = vadd.f32 0.0, %v3149
        %v3151 = vpop.f32.mrb[0].mxu0
        %3152 = vmatprep.mubr.f32.mxu0 %v2707
        %3153 = vmatmul.mubr.f32.gmra.mrb[0].mxu0 %v2706
        %v3154 = vpop.f32.mrb[0].mxu0
        %v3155 = vadd.f32 0.0, %v3154
        %v3156 = vpop.f32.mrb[0].mxu0
        %3157 = vmatprep.mubr.f32.mxu0 %v2710
        %3158 = vmatmul.mubr.f32.gmra.mrb[0].mxu0 %v2709
        %v3159 = vpop.f32.mrb[0].mxu0
        %v3160 = vadd.f32 0.0, %v3159
        %v3161 = vpop.f32.mrb[0].mxu0
        %3162 = vmatprep.mubr.f32.mxu0 %v2713
        %3163 = vmatmul.mubr.f32.gmra.mrb[0].mxu0 %v2712
        %v3164 = vpop.f32.mrb[0].mxu0
        %v3165 = vadd.f32 0.0, %v3164
        %v3166 = vpop.f32.mrb[0].mxu0
        %3167 = vmatprep.mubr.f32.mxu0 %v2716
        %3168 = vmatmul.mubr.f32.gmra.mrb[0].mxu0 %v2715
        %v3169 = vpop.f32.mrb[0].mxu0
        %v3170 = vadd.f32 0.0, %v3169
        %v3171 = vpop.f32.mrb[0].mxu0
        %3172 = vdwg.mxu0
        %3173 = vmatprep.subr.mxu0 0.0
        %3174 = vmatpush1.msra.mxu0 %v2816
        %3175 = vmatprep.subr.mxu0 0.0
        %3176 = vmatpush1.msra.mxu0 %v2819
        %3177 = vmatprep.subr.mxu0 0.0
        %3178 = vmatpush1.msra.mxu0 %v2822
        %3179 = vmatprep.subr.mxu0 0.0
        %3180 = vmatpush1.msra.mxu0 %v2825
        %3181 = vmatprep.subr.mxu0 0.0
        %3182 = vmatpush1.msra.mxu0 %v2828
        %3183 = vmatprep.subr.mxu0 0.0
        %3184 = vmatpush1.msra.mxu0 %v2831
        %3185 = vmatprep.subr.mxu0 0.0
        %3186 = vmatpush1.msra.mxu0 %v2834
        %3187 = vmatprep.subr.mxu0 0.0
        %3188 = vmatpush1.msra.mxu0 %v2837
        %3189 = vmatprep.subr.mxu0 0.0
        %3190 = vmatpush1.msra.mxu0 0.0
        %3191 = vmatprep.subr.mxu0 0.0
        %3192 = vmatpush1.msra.mxu0 0.0
        %3193 = vmatprep.subr.mxu0 0.0
        %3194 = vmatpush1.msra.mxu0 0.0
        %3195 = vmatprep.subr.mxu0 0.0
        %3196 = vmatpush1.msra.mxu0 0.0
        %3197 = vmatprep.subr.mxu0 0.0
        %3198 = vmatpush1.msra.mxu0 0.0
        %3199 = vmatprep.subr.mxu0 0.0
        %3200 = vmatpush1.msra.mxu0 0.0
        %3201 = vmatprep.subr.mxu0 0.0
        %3202 = vmatpush1.msra.mxu0 0.0
        %3203 = vmatprep.subr.mxu0 0.0
        %3204 = vmatpush1.msra.mxu0 0.0
        %3205 = vmatprep.subr.mxu0 0.0
        %3206 = vmatpush1.msra.mxu0 0.0
        %3207 = vmatprep.subr.mxu0 0.0
        %3208 = vmatpush1.msra.mxu0 0.0
        %3209 = vmatprep.subr.mxu0 0.0
        %3210 = vmatpush1.msra.mxu0 0.0
        %3211 = vmatprep.subr.mxu0 0.0
        %3212 = vmatpush1.msra.mxu0 0.0
        %3213 = vmatprep.subr.mxu0 0.0
        %3214 = vmatpush1.msra.mxu0 0.0
        %3215 = vmatprep.subr.mxu0 0.0
        %3216 = vmatpush1.msra.mxu0 0.0
        %3217 = vmatprep.subr.mxu0 0.0
        %3218 = vmatpush1.msra.mxu0 0.0
        %3219 = vmatprep.subr.mxu0 0.0
        %3220 = vmatpush1.msra.mxu0 0.0
        %3221 = vmatprep.subr.mxu0 0.0
        %3222 = vmatpush1.msra.mxu0 0.0
        %3223 = vmatprep.subr.mxu0 0.0
        %3224 = vmatpush1.msra.mxu0 0.0
        %3225 = vmatprep.subr.mxu0 0.0
        %3226 = vmatpush1.msra.mxu0 0.0
        %3227 = vmatprep.subr.mxu0 0.0
        %3228 = vmatpush1.msra.mxu0 0.0
        %3229 = vmatprep.subr.mxu0 0.0
        %3230 = vmatpush1.msra.mxu0 0.0
        %3231 = vmatprep.subr.mxu0 0.0
        %3232 = vmatpush1.msra.mxu0 0.0
        %3233 = vmatprep.subr.mxu0 0.0
        %3234 = vmatpush1.msra.mxu0 0.0
        %3235 = vmatprep.subr.mxu0 0.0
        %3236 = vmatpush1.msra.mxu0 0.0
        %3237 = vmatprep.mubr.f32.mxu0 0.0
        %3238 = vmatmul.mubr.f32.gmra.mrb[0].mxu0 %v2839
        %v3239 = vpop.f32.mrb[0].mxu0
        %v3240 = vadd.f32 %v3140, %v3239
        %v3241 = vpop.f32.mrb[0].mxu0
        %3242 = vmatprep.mubr.f32.mxu0 0.0
        %3243 = vmatmul.mubr.f32.gmra.mrb[0].mxu0 %v2842
        %v3244 = vpop.f32.mrb[0].mxu0
        %v3245 = vadd.f32 %v3145, %v3244
        %v3246 = vpop.f32.mrb[0].mxu0
        %3247 = vmatprep.mubr.f32.mxu0 0.0
        %3248 = vmatmul.mubr.f32.gmra.mrb[0].mxu0 %v2845
        %v3249 = vpop.f32.mrb[0].mxu0
        %v3250 = vadd.f32 %v3150, %v3249
        %v3251 = vpop.f32.mrb[0].mxu0
        %3252 = vmatprep.mubr.f32.mxu0 0.0
        %3253 = vmatmul.mubr.f32.gmra.mrb[0].mxu0 %v2848
        %v3254 = vpop.f32.mrb[0].mxu0
        %v3255 = vadd.f32 %v3155, %v3254
        %v3256 = vpop.f32.mrb[0].mxu0
        %3257 = vmatprep.mubr.f32.mxu0 0.0
        %3258 = vmatmul.mubr.f32.gmra.mrb[0].mxu0 %v2851
        %v3259 = vpop.f32.mrb[0].mxu0
        %v3260 = vadd.f32 %v3160, %v3259
        %v3261 = vpop.f32.mrb[0].mxu0
        %3262 = vmatprep.mubr.f32.mxu0 0.0
        %3263 = vmatmul.mubr.f32.gmra.mrb[0].mxu0 %v2854
        %v3264 = vpop.f32.mrb[0].mxu0
        %v3265 = vadd.f32 %v3165, %v3264
        %v3266 = vpop.f32.mrb[0].mxu0
        %3267 = vmatprep.mubr.f32.mxu0 0.0
        %3268 = vmatmul.mubr.f32.gmra.mrb[0].mxu0 %v2857
        %v3269 = vpop.f32.mrb[0].mxu0
        %v3270 = vadd.f32 %v3170, %v3269
        %v3271 = vpop.f32.mrb[0].mxu0
        %3272 = vdwg.mxu0
        %v3273 = vadd.f32 %v3033, %v3039
        %v3274 = vadd.f32 %v3273, %v3045
        %v3275 = vadd.f32 %v3274, %v3051
        %v3276 = vadd.f32 %v3275, %v3057
        %v3277 = vadd.f32 %v3276, %v3063
        %v3278 = vsel %vm2479, %v3069, 0.0
        %v3279 = vadd.f32 %v3277, %v3278
        %v3280 = vrot.slane %v3279, 4
        %v3281 = vadd.f32 %v3279, %v3280
        %v3282 = vrot.slane %v3281, 2
        %v3283 = vadd.f32 %v3281, %v3282
        %v3284 = vrot.slane %v3283, 1
        %v3285 = vadd.f32 %v3283, %v3284
        %v3286 = vadd.f32 %v3035, %v3041
        %v3287 = vadd.f32 %v3286, %v3047
        %v3288 = vadd.f32 %v3287, %v3053
        %v3289 = vadd.f32 %v3288, %v3059
        %v3290 = vadd.f32 %v3289, %v3065
        %v3291 = vsel %vm2479, %v3071, 0.0
        %v3292 = vadd.f32 %v3290, %v3291
        %v3293 = vrot.slane %v3292, 4
        %v3294 = vadd.f32 %v3292, %v3293
        %v3295 = vrot.slane %v3294, 2
        %v3296 = vadd.f32 %v3294, %v3295
        %v3297 = vrot.slane %v3296, 1
        %v3298 = vadd.f32 %v3296, %v3297
        %v3299 = vadd.f32 %v3240, %v3245
        %v3300 = vadd.f32 %v3299, %v3250
        %v3301 = vadd.f32 %v3300, %v3255
        %v3302 = vadd.f32 %v3301, %v3260
        %v3303 = vadd.f32 %v3302, %v3265
        %v3304 = vsel %vm2479, %v3270, 0.0
        %v3305 = vadd.f32 %v3303, %v3304
        %v3306 = vrot.slane %v3305, 4
        %v3307 = vadd.f32 %v3305, %v3306
        %v3308 = vrot.slane %v3307, 2
        %v3309 = vadd.f32 %v3307, %v3308
        %v3310 = vrot.slane %v3309, 1
        %v3311 = vadd.f32 %v3309, %v3310
        %v3312 = vmul.f32 %v3285, 0.020408163
        %v3313 = vmul.f32 %v3298, 0.020408163
        %v3314 = vmul.f32 %v3311, 0.020408163
        %v3315 = vmul.f32 %v3033, %v3033
        %v3316 = vmul.f32 %v3035, %v3035
        %v3317 = vmul.f32 %v3240, %v3240
        %v3318 = vmul.f32 %v3039, %v3039
        %v3319 = vmul.f32 %v3041, %v3041
        %v3320 = vmul.f32 %v3245, %v3245
        %v3321 = vmul.f32 %v3045, %v3045
        %v3322 = vmul.f32 %v3047, %v3047
        %v3323 = vmul.f32 %v3250, %v3250
        %v3324 = vmul.f32 %v3051, %v3051
        %v3325 = vmul.f32 %v3053, %v3053
        %v3326 = vmul.f32 %v3255, %v3255
        %v3327 = vmul.f32 %v3057, %v3057
        %v3328 = vmul.f32 %v3059, %v3059
        %v3329 = vmul.f32 %v3260, %v3260
        %v3330 = vmul.f32 %v3063, %v3063
        %v3331 = vmul.f32 %v3065, %v3065
        %v3332 = vmul.f32 %v3265, %v3265
        %v3333 = vmul.f32 %v3069, %v3069
        %v3334 = vmul.f32 %v3071, %v3071
        %v3335 = vmul.f32 %v3270, %v3270
        %v3336 = vadd.f32 %v3315, %v3318
        %v3337 = vadd.f32 %v3336, %v3321
        %v3338 = vadd.f32 %v3337, %v3324
        %v3339 = vadd.f32 %v3338, %v3327
        %v3340 = vadd.f32 %v3339, %v3330
        %v3341 = vsel %vm2479, %v3333, 0.0
        %v3342 = vadd.f32 %v3340, %v3341
        %v3343 = vrot.slane %v3342, 4
        %v3344 = vadd.f32 %v3342, %v3343
        %v3345 = vrot.slane %v3344, 2
        %v3346 = vadd.f32 %v3344, %v3345
        %v3347 = vrot.slane %v3346, 1
        %v3348 = vadd.f32 %v3346, %v3347
        %v3349 = vadd.f32 %v3316, %v3319
        %v3350 = vadd.f32 %v3349, %v3322
        %v3351 = vadd.f32 %v3350, %v3325
        %v3352 = vadd.f32 %v3351, %v3328
        %v3353 = vadd.f32 %v3352, %v3331
        %v3354 = vsel %vm2479, %v3334, 0.0
        %v3355 = vadd.f32 %v3353, %v3354
        %v3356 = vrot.slane %v3355, 4
        %v3357 = vadd.f32 %v3355, %v3356
        %v3358 = vrot.slane %v3357, 2
        %v3359 = vadd.f32 %v3357, %v3358
        %v3360 = vrot.slane %v3359, 1
        %v3361 = vadd.f32 %v3359, %v3360
        %v3362 = vadd.f32 %v3317, %v3320
        %v3363 = vadd.f32 %v3362, %v3323
        %v3364 = vadd.f32 %v3363, %v3326
        %v3365 = vadd.f32 %v3364, %v3329
        %v3366 = vadd.f32 %v3365, %v3332
        %v3367 = vsel %vm2479, %v3335, 0.0
        %v3368 = vadd.f32 %v3366, %v3367
        %v3369 = vrot.slane %v3368, 4
        %v3370 = vadd.f32 %v3368, %v3369
        %v3371 = vrot.slane %v3370, 2
        %v3372 = vadd.f32 %v3370, %v3371
        %v3373 = vrot.slane %v3372, 1
        %v3374 = vadd.f32 %v3372, %v3373
        %v3375 = vmul.f32 %v3348, 0.020408163
        %v3376 = vmul.f32 %v3361, 0.020408163
        %v3377 = vmul.f32 %v3374, 0.020408163
        %v3378 = vmul.f32 %v3312, %v3312
        %v3379 = vmul.f32 %v3313, %v3313
        %v3380 = vmul.f32 %v3314, %v3314
        %v3381 = vsub.f32 %v3375, %v3378
        %v3382 = vsub.f32 %v3376, %v3379
        %v3383 = vsub.f32 %v3377, %v3380
        %v3384 = vsub.f32 %v3033, %v3312
        %v3385 = vsub.f32 %v3035, %v3313
        %v3386 = vsub.f32 %v3240, %v3314
        %v3387 = vsub.f32 %v3039, %v3312
        %v3388 = vsub.f32 %v3041, %v3313
        %v3389 = vsub.f32 %v3245, %v3314
        %v3390 = vsub.f32 %v3045, %v3312
        %v3391 = vsub.f32 %v3047, %v3313
        %v3392 = vsub.f32 %v3250, %v3314
        %v3393 = vsub.f32 %v3051, %v3312
        %v3394 = vsub.f32 %v3053, %v3313
        %v3395 = vsub.f32 %v3255, %v3314
        %v3396 = vsub.f32 %v3057, %v3312
        %v3397 = vsub.f32 %v3059, %v3313
        %v3398 = vsub.f32 %v3260, %v3314
        %v3399 = vsub.f32 %v3063, %v3312
        %v3400 = vsub.f32 %v3065, %v3313
        %v3401 = vsub.f32 %v3265, %v3314
        %v3402 = vsub.f32 %v3069, %v3312
        %v3403 = vsub.f32 %v3071, %v3313
        %v3404 = vsub.f32 %v3270, %v3314
        %v3405 = vadd.f32 %v3381, 1e-05
        %v3406 = vadd.f32 %v3382, 1e-05
        %v3407 = vadd.f32 %v3383, 1e-05
        %v3408 = vrsqrt.pop %v3405
        %v3409 = vrsqrt.pop %v3406
        %v3410 = vrsqrt.pop %v3407
        %v3411 = vld [vmem:[%s567] sm:$0x7]
        %v3413 = vlaneseq
        %v3414 = vshrl.u32 %v3413, 7
        %v3415 = vsub.s32 0, %v3414
        %v3416 = vrot.slane %v3411, %v3415
        %v3417 = vlaneseq
        %v3418 = vshrl.u32 %v3417, 7
        %v3419 = vsub.s32 1, %v3418
        %v3420 = vrot.slane %v3411, %v3419
        %v3421 = vlaneseq
        %v3422 = vshrl.u32 %v3421, 7
        %v3423 = vsub.s32 2, %v3422
        %v3424 = vrot.slane %v3411, %v3423
        %v3428 = vmul.f32 %v3408, %v3416
        %v3429 = vmul.f32 %v3409, %v3420
        %v3430 = vmul.f32 %v3410, %v3424
        %v3431 = vlaneseq
        %v3432 = vshrl.u32 %v3431, 7
        %v3433 = vsub.s32 0, %v3432
        %v3434 = vrot.slane %v3428, %v3433
        %v3435 = vlaneseq
        %v3436 = vshrl.u32 %v3435, 7
        %v3437 = vsub.s32 0, %v3436
        %v3438 = vrot.slane %v3429, %v3437
        %v3439 = vlaneseq
        %v3440 = vshrl.u32 %v3439, 7
        %v3441 = vsub.s32 0, %v3440
        %v3442 = vrot.slane %v3430, %v3441
        %v3443 = vmul.f32 %v3384, %v3434
        %v3444 = vmul.f32 %v3385, %v3438
        %v3445 = vmul.f32 %v3386, %v3442
        %v3446 = vmul.f32 %v3387, %v3434
        %v3447 = vmul.f32 %v3388, %v3438
        %v3448 = vmul.f32 %v3389, %v3442
        %v3449 = vmul.f32 %v3390, %v3434
        %v3450 = vmul.f32 %v3391, %v3438
        %v3451 = vmul.f32 %v3392, %v3442
        %v3452 = vmul.f32 %v3393, %v3434
        %v3453 = vmul.f32 %v3394, %v3438
        %v3454 = vmul.f32 %v3395, %v3442
        %v3455 = vmul.f32 %v3396, %v3434
        %v3456 = vmul.f32 %v3397, %v3438
        %v3457 = vmul.f32 %v3398, %v3442
        %v3458 = vmul.f32 %v3399, %v3434
        %v3459 = vmul.f32 %v3400, %v3438
        %v3460 = vmul.f32 %v3401, %v3442
        %v3461 = vmul.f32 %v3402, %v3434
        %v3462 = vmul.f32 %v3403, %v3438
        %v3463 = vmul.f32 %v3404, %v3442
        %v3464 = vld [vmem:[%s572] sm:$0x7]
        %v3466 = vlaneseq
        %v3467 = vshrl.u32 %v3466, 7
        %v3468 = vsub.s32 0, %v3467
        %v3469 = vrot.slane %v3464, %v3468
        %v3470 = vlaneseq
        %v3471 = vshrl.u32 %v3470, 7
        %v3472 = vsub.s32 1, %v3471
        %v3473 = vrot.slane %v3464, %v3472
        %v3474 = vlaneseq
        %v3475 = vshrl.u32 %v3474, 7
        %v3476 = vsub.s32 2, %v3475
        %v3477 = vrot.slane %v3464, %v3476
        %v3481 = vadd.f32 %v3443, %v3469
        %v3482 = vadd.f32 %v3444, %v3473
        %v3483 = vadd.f32 %v3445, %v3477
        %v3484 = vadd.f32 %v3446, %v3469
        %v3485 = vadd.f32 %v3447, %v3473
        %v3486 = vadd.f32 %v3448, %v3477
        %v3487 = vadd.f32 %v3449, %v3469
        %v3488 = vadd.f32 %v3450, %v3473
        %v3489 = vadd.f32 %v3451, %v3477
        %v3490 = vadd.f32 %v3452, %v3469
        %v3491 = vadd.f32 %v3453, %v3473
        %v3492 = vadd.f32 %v3454, %v3477
        %v3493 = vadd.f32 %v3455, %v3469
        %v3494 = vadd.f32 %v3456, %v3473
        %v3495 = vadd.f32 %v3457, %v3477
        %v3496 = vadd.f32 %v3458, %v3469
        %v3497 = vadd.f32 %v3459, %v3473
        %v3498 = vadd.f32 %v3460, %v3477
        %v3499 = vadd.f32 %v3461, %v3469
        %v3500 = vadd.f32 %v3462, %v3473
        %v3501 = vadd.f32 %v3463, %v3477
        %3502 = vst [vmem:[%s562] sm:$0xff] %v3481
        %3503 = vst [vmem:[%s562 + $0x8] sm:$0xff] %v3482
        %3504 = vst [vmem:[%s562 + $0x10] sm:$0xff] %v3483
        %3505 = vst [vmem:[%s562 + $0x18] sm:$0xff] %v3484
        %3506 = vst [vmem:[%s562 + $0x20] sm:$0xff] %v3485
        %3507 = vst [vmem:[%s562 + $0x28] sm:$0xff] %v3486
        %3508 = vst [vmem:[%s562 + $0x30] sm:$0xff] %v3487
        %3509 = vst [vmem:[%s562 + $0x38] sm:$0xff] %v3488
        %3510 = vst [vmem:[%s562 + $0x40] sm:$0xff] %v3489
        %3511 = vst [vmem:[%s562 + $0x48] sm:$0xff] %v3490
        %3512 = vst [vmem:[%s562 + $0x50] sm:$0xff] %v3491
        %3513 = vst [vmem:[%s562 + $0x58] sm:$0xff] %v3492
        %3514 = vst [vmem:[%s562 + $0x60] sm:$0xff] %v3493
        %3515 = vst [vmem:[%s562 + $0x68] sm:$0xff] %v3494
        %3516 = vst [vmem:[%s562 + $0x70] sm:$0xff] %v3495
        %3517 = vst [vmem:[%s562 + $0x78] sm:$0xff] %v3496
        %3518 = vst [vmem:[%s562 + $0x80] sm:$0xff] %v3497
        %3519 = vst [vmem:[%s562 + $0x88] sm:$0xff] %v3498
        %3520 = vst [vmem:[%s562 + $0x90] sm:$0x1] %v3499
        %3521 = vst [vmem:[%s562 + $0x98] sm:$0x1] %v3500
        %3522 = vst [vmem:[%s562 + $0xa0] sm:$0x1] %v3501
        %s3523 = sand.u32 %s191, 1
        %s3524 = scalar_lea.sflag [#allocation4], %s3523
        %s3525 = sand.u32 %s191, 1
        %s3526 = smul.addr %s3525, 168
        %s3527 = scalar_lea.vmem [#allocation3], %s3526
        // Predicated region
        $region72: #{tpu_custom_call.1} parent=66 // pred_check
          %p3528 = pneg %p201
        $region73: #{tpu_custom_call.1} parent=66 // pred_check_branch
          %3530 = sbr.rel (%p3528) target = $region75
        $region74: #{tpu_custom_call.1} parent=66 // pred_region
          %s3531 = smul.u32 3, %s21
          %s3533 = ssub.s32 2688, 2688
          %3534 = vsyncadd %s3524, %s3533
          %s3535 = smul.addr %s3531, 128
          %s3536 = scalar_lea.hbm %s7, %s3535
          %s3537 = sshll.u32 %s3527, 4
          %s3538 = int_to_ptr.vmem [resolvable:$true] %s3537
          %3543 = dma.vmem_to_hbm [thread:$0]  %s3538, 2688, %s3536, %s3524, 384, 1920, 24
        $region75: #{tpu_custom_call.1} parent=66 // pred_fallthru
          _
      $region67: #{tpu_custom_call.1} parent=5 // pred_fallthru
        _
      %p3544 = scmp.le.s32.totalorder 2, %s16
      // Predicated region
      $region76: #{tpu_custom_call.1} parent=5 // pred_check
        %p3545 = pneg %p3544
      $region77: #{tpu_custom_call.1} parent=5 // pred_check_branch
        %3547 = sbr.rel (%p3545) target = $region79
      $region78: #{tpu_custom_call.1} parent=5 // pred_region
        %s3548 = ssub.s32 %s16, 2
        // Predicated region
        $region80: #{tpu_custom_call.1} parent=78 // pred_check
          %p3549 = pneg %p207
        $region81: #{tpu_custom_call.1} parent=78 // pred_check_branch
          %3551 = sbr.rel (%p3549) target = $region83
        $region82: #{tpu_custom_call.1} parent=78 // pred_region
          %s3552 = sand.u32 %s192, 1
          %s3553 = scalar_lea.sflag [#allocation4], %s3552
          %s3554 = sand.u32 %s192, 1
          %s3555 = smul.addr %s3554, 168
          %s3556 = scalar_lea.vmem [#allocation3], %s3555
          %3557 = dma.done %s3553, 2688
        $region83: #{tpu_custom_call.1} parent=78 // pred_fallthru
          _
      $region79: #{tpu_custom_call.1} parent=5 // pred_fallthru
        _
    $region6: #{tpu_custom_call.1} parent=1 // loop_footer
      %s20 = sadd.s32 1, %s16
    $region7: #{tpu_custom_call.1} parent=1 // loop_footer_branch
      %15 = sbr.rel target = $region3
    $region8: #{tpu_custom_call.1} parent=1 // loop_exit
      _
    %3558 = vsyncpa [#allocation4], 1
    %s3559 = scalar_lea.sflag [#allocation4], 1
    %3560 = vsyncpa %s3559, 1

</llo_original>
